<compile_context>
chip_gen: v5e
topology: v5e:2x2
jax: 0.10.0
libtpu: 0.0.40
codegen_flags: <defaults>
</compile_context>

<pallas_src>
import functools

import jax
import jax.numpy as jnp
from jax.experimental import pallas as pl
from jax.experimental.pallas import tpu as pltpu


def _round_up(x, m):
    return ((x + m - 1) // m) * m


# ---------------------------------------------------------------------------
# Fused forward kernel: everything VMEM-resident, single grid step.
# ---------------------------------------------------------------------------
def _fused_gcn_kernel(x_ref, emb_w_ref, emb_b_ref, a_ref, w_in_ref, b_in_ref,
                      w_out_ref, b_out_ref, src_ref, dst_ref, o_ref):
    f32 = jnp.float32

    # --- Linear(1, 64) embedding (rank-1), padded lanes stay exactly zero.
    h = (x_ref[...] * emb_w_ref[...] + emb_b_ref[...]).astype(jnp.bfloat16)  # (N, 128)

    a = a_ref[...]                                                           # (N, N) bf16

    # --- conv_in + ReLU, reassociated: relu((A @ H) @ W_in + b_in)
    #     (contract the N^2 matmul over the narrow 128-wide embedding).
    ah = jnp.dot(a, h, preferred_element_type=f32).astype(jnp.bfloat16)      # (N, 128)
    y1 = jnp.dot(ah, w_in_ref[...], preferred_element_type=f32) + b_in_ref[...]
    y1 = jnp.maximum(y1, 0.0).astype(jnp.bfloat16)                           # (N, 512)

    # --- conv_out: A @ (Y1 @ W_out) + b_out  (project 512->128 first).
    xw2 = jnp.dot(y1, w_out_ref[...], preferred_element_type=f32).astype(jnp.bfloat16)
    z = jnp.dot(a, xw2, preferred_element_type=f32) + b_out_ref[...]         # (N, 128) f32

    # --- decode: (z[src] * z[dst]).sum(-1), fused via exact one-hot selection
    #     matmuls (no gather lowering, lane-dense (1, E) output).
    n_pad = a_ref.shape[0]
    e_pad = src_ref.shape[1]
    z_t = z.T                                                                # (128, N) f32
    n_iota = jax.lax.broadcasted_iota(jnp.int32, (n_pad, e_pad), 0)
    s_src = (n_iota == src_ref[...]).astype(f32)                             # (N, E) one-hot^T
    s_dst = (n_iota == dst_ref[...]).astype(f32)
    zs_t = jnp.dot(z_t, s_src, preferred_element_type=f32)                   # (128, E)
    zd_t = jnp.dot(z_t, s_dst, preferred_element_type=f32)
    o_ref[...] = jnp.sum(zs_t * zd_t, axis=0, keepdims=True)                 # (1, E) f32


def fused_gcn_forward(x_pad, prep):
    n_pad = prep["a"].shape[0]
    e_pad = prep["src"].shape[1]
    d_emb_pad = prep["emb_w"].shape[1]
    hidden = prep["w_in"].shape[1]
    d_out_pad = prep["w_out"].shape[1]

    def full(shape):
        return pl.BlockSpec(shape, lambda i: (0, 0))

    return pl.pallas_call(
        _fused_gcn_kernel,
        out_shape=jax.ShapeDtypeStruct((1, e_pad), jnp.float32),
        grid_spec=pltpu.PrefetchScalarGridSpec(
            num_scalar_prefetch=0,
            grid=(1,),
            in_specs=[
                full((n_pad, 1)),            # x
                full((1, d_emb_pad)),        # emb_w
                full((1, d_emb_pad)),        # emb_b
                full((n_pad, n_pad)),        # A (normalized, bf16)
                full((d_emb_pad, hidden)),   # w_in
                full((1, hidden)),           # b_in
                full((hidden, d_out_pad)),   # w_out
                full((1, d_out_pad)),        # b_out
                full((1, e_pad)),            # src ids
                full((1, e_pad)),            # dst ids
            ],
            out_specs=full((1, e_pad)),
        ),
        compiler_params=pltpu.CompilerParams(
            dimension_semantics=("arbitrary",)),
    )(x_pad, prep["emb_w"], prep["emb_b"], prep["a"], prep["w_in"],
      prep["b_in"], prep["w_out"], prep["b_out"], prep["src"], prep["dst"])


# ---------------------------------------------------------------------------
# One-time prep (hoisted out of the hot path): dense symmetric GCN
# normalization (PyG gcn_norm, add_self_loops=True) + parameter padding.
# ---------------------------------------------------------------------------
def gcn_norm_dense(edge_index, edge_weight, num_nodes, num_nodes_padded,
                   dtype=jnp.bfloat16):
    row, col = edge_index[0], edge_index[1]
    loop = jnp.arange(num_nodes, dtype=edge_index.dtype)
    row = jnp.concatenate([row, loop])
    col = jnp.concatenate([col, loop])
    ew = jnp.concatenate([edge_weight, jnp.ones((num_nodes,), edge_weight.dtype)])
    deg = jnp.zeros((num_nodes,), ew.dtype).at[col].add(ew)
    dinv = jnp.where(deg > 0.0, jax.lax.rsqrt(deg), 0.0)
    norm = dinv[row] * ew * dinv[col]
    # A[dst, src] = norm so that (A @ X)[dst] = sum_src norm * X[src].
    # Padded rows/cols stay zero -> padding never affects valid outputs.
    a = (jnp.zeros((num_nodes_padded, num_nodes_padded), jnp.float32)
            .at[col, row].add(norm))
    return a.astype(dtype)


def prepare(params, edge_index, edge_attr, num_nodes):
    """One-time graph + parameter preparation (runs once, NOT per forward)."""
    e = edge_index.shape[1]
    n_pad = _round_up(num_nodes, 128)
    e_pad = _round_up(e, 128)

    d_emb = params["emb_w"].shape[1]            # 64
    hidden = params["w_in"].shape[1]            # 512
    d_out = params["w_out"].shape[1]            # 64
    d_emb_pad = _round_up(d_emb, 128)           # 128
    d_out_pad = _round_up(d_out, 128)           # 128

    a = gcn_norm_dense(edge_index, edge_attr, num_nodes, n_pad)

    emb_w = jnp.zeros((1, d_emb_pad), jnp.float32).at[:, :d_emb].set(params["emb_w"])
    emb_b = jnp.zeros((1, d_emb_pad), jnp.float32).at[:, :d_emb].set(params["emb_b"])
    w_in = (jnp.zeros((d_emb_pad, hidden), jnp.float32)
               .at[:d_emb, :].set(params["w_in"]).astype(jnp.bfloat16))
    b_in = params["b_in"].astype(jnp.float32)
    # NOTE: padded columns of w_out / b_out must stay exactly zero so padded
    # feature lanes of z are zero and decode's sum over 128 lanes is exact.
    w_out = (jnp.zeros((hidden, d_out_pad), jnp.float32)
                .at[:, :d_out].set(params["w_out"]).astype(jnp.bfloat16))
    b_out = jnp.zeros((1, d_out_pad), jnp.float32).at[:, :d_out].set(params["b_out"])

    src = jnp.zeros((1, e_pad), jnp.int32).at[0, :e].set(edge_index[0].astype(jnp.int32))
    dst = jnp.zeros((1, e_pad), jnp.int32).at[0, :e].set(edge_index[1].astype(jnp.int32))

    return {"a": a, "emb_w": emb_w, "emb_b": emb_b, "w_in": w_in, "b_in": b_in,
            "w_out": w_out, "b_out": b_out, "src": src, "dst": dst}


# ---------------------------------------------------------------------------
# Per-step forward (jitted): pad x -> one fused pallas_call -> static slice.
# ---------------------------------------------------------------------------
def my_gcn_forward(prep, x, *, num_edges):
    n = x.shape[0]
    n_pad = prep["a"].shape[0]
    x_pad = jnp.zeros((n_pad, 1), jnp.float32).at[:n, :].set(x)
    scores = fused_gcn_forward(x_pad, prep)          # (1, e_pad) f32
    return scores[0, :num_edges]


def init_params(key, node_in=1, emb_dim=64, hidden=512, out_dim=64):
    ks = jax.random.split(key, 6)

    def glorot(k, shape):
        fan = shape[0] + shape[1]
        return jax.random.normal(k, shape, jnp.float32) * jnp.sqrt(2.0 / fan)

    return {
        "emb_w": glorot(ks[0], (node_in, emb_dim)),      # Linear(1, 64) weight^T
        "emb_b": 0.01 * jax.random.normal(ks[1], (1, emb_dim), jnp.float32),
        "w_in": glorot(ks[2], (emb_dim, hidden)),        # GCNConv(64, 512) weight^T
        "b_in": 0.01 * jax.random.normal(ks[3], (1, hidden), jnp.float32),
        "w_out": glorot(ks[4], (hidden, out_dim)),       # GCNConv(512, 64) weight^T
        "b_out": 0.01 * jax.random.normal(ks[5], (1, out_dim), jnp.float32),
    }


if __name__ == "__main__":
    key = jax.random.PRNGKey(0)
    kp, kx, ks, kd, kw = jax.random.split(key, 5)

    N, E = 200, 384  # small graph: 200 nodes (padded to 256), 384 directed edges
    params = init_params(kp)

    x = jax.random.normal(kx, (N, 1), jnp.float32)                   # data.x
    src = jax.random.randint(ks, (E,), 0, N, jnp.int32)
    dst = jax.random.randint(kd, (E,), 0, N, jnp.int32)
    edge_index = jnp.stack([src, dst])                               # data.edge_index (2, E)
    edge_attr = jax.random.uniform(kw, (E,), jnp.float32,
                                   minval=0.1, maxval=1.0)           # data.edge_attr

    # One-time prep (hoisted): dense normalized A + padded/cast parameters.
    prep = prepare(params, edge_index, edge_attr, N)
    prep = jax.tree_util.tree_map(jax.block_until_ready, prep)

    fwd = jax.jit(functools.partial(my_gcn_forward, num_edges=E))
    link_predictions = fwd(prep, x)
    jax.block_until_ready(link_predictions)

    assert link_predictions.shape == (E,)
    assert link_predictions.dtype == jnp.float32
    assert bool(jnp.all(jnp.isfinite(link_predictions)))
    print("KERNEL_OK")
</pallas_src>

<mosaic_0001>
module attributes {stable_mosaic.version = 11 : i64} {
  func.func @_fused_gcn_kernel(%arg0: i32, %arg1: memref<256x1xf32, #tpu.memory_space<vmem>>, %arg2: memref<1x128xf32, #tpu.memory_space<vmem>>, %arg3: memref<1x128xf32, #tpu.memory_space<vmem>>, %arg4: memref<256x256xbf16, #tpu.memory_space<vmem>>, %arg5: memref<128x512xbf16, #tpu.memory_space<vmem>>, %arg6: memref<1x512xf32, #tpu.memory_space<vmem>>, %arg7: memref<512x128xbf16, #tpu.memory_space<vmem>>, %arg8: memref<1x128xf32, #tpu.memory_space<vmem>>, %arg9: memref<1x384xi32, #tpu.memory_space<vmem>>, %arg10: memref<1x384xi32, #tpu.memory_space<vmem>>, %arg11: memref<1x384xf32, #tpu.memory_space<vmem>>) attributes {dimension_semantics = [#tpu.dimension_semantics<arbitrary>], iteration_bounds = array<i64: 1>, scalar_prefetch = 0 : i64, scratch_operands = 0 : i64, tpu.core_type = #tpu.core_type<tc>, window_params = [{pipeline_mode = #tpu.pipeline_mode<synchronous>, transform_indices = @transform_0, window_bounds = array<i64: 256, 1>}, {pipeline_mode = #tpu.pipeline_mode<synchronous>, transform_indices = @transform_1, window_bounds = array<i64: 1, 128>}, {pipeline_mode = #tpu.pipeline_mode<synchronous>, transform_indices = @transform_2, window_bounds = array<i64: 1, 128>}, {pipeline_mode = #tpu.pipeline_mode<synchronous>, transform_indices = @transform_3, window_bounds = array<i64: 256, 256>}, {pipeline_mode = #tpu.pipeline_mode<synchronous>, transform_indices = @transform_4, window_bounds = array<i64: 128, 512>}, {pipeline_mode = #tpu.pipeline_mode<synchronous>, transform_indices = @transform_5, window_bounds = array<i64: 1, 512>}, {pipeline_mode = #tpu.pipeline_mode<synchronous>, transform_indices = @transform_6, window_bounds = array<i64: 512, 128>}, {pipeline_mode = #tpu.pipeline_mode<synchronous>, transform_indices = @transform_7, window_bounds = array<i64: 1, 128>}, {pipeline_mode = #tpu.pipeline_mode<synchronous>, transform_indices = @transform_8, window_bounds = array<i64: 1, 384>}, {pipeline_mode = #tpu.pipeline_mode<synchronous>, transform_indices = @transform_9, window_bounds = array<i64: 1, 384>}, {pipeline_mode = #tpu.pipeline_mode<synchronous>, transform_indices = @transform_10, window_bounds = array<i64: 1, 384>}]} {
    %c0 = arith.constant 0 : index
    %c0_0 = arith.constant 0 : index
    %0 = vector.load %arg1[%c0, %c0_0] : memref<256x1xf32, #tpu.memory_space<vmem>>, vector<256x1xf32>
    %c0_1 = arith.constant 0 : index
    %c0_2 = arith.constant 0 : index
    %1 = vector.load %arg2[%c0_1, %c0_2] : memref<1x128xf32, #tpu.memory_space<vmem>>, vector<1x128xf32>
    %2 = vector.broadcast %0 : vector<256x1xf32> to vector<256x128xf32>
    %3 = vector.broadcast %1 : vector<1x128xf32> to vector<256x128xf32>
    %4 = arith.mulf %2, %3 : vector<256x128xf32>
    %c0_3 = arith.constant 0 : index
    %c0_4 = arith.constant 0 : index
    %5 = vector.load %arg3[%c0_3, %c0_4] : memref<1x128xf32, #tpu.memory_space<vmem>>, vector<1x128xf32>
    %6 = vector.broadcast %5 : vector<1x128xf32> to vector<256x128xf32>
    %7 = arith.addf %4, %6 : vector<256x128xf32>
    %8 = arith.truncf %7 : vector<256x128xf32> to vector<256x128xbf16>
    %c0_5 = arith.constant 0 : index
    %c0_6 = arith.constant 0 : index
    %9 = vector.load %arg4[%c0_5, %c0_6] : memref<256x256xbf16, #tpu.memory_space<vmem>>, vector<256x256xbf16>
    %cst = arith.constant dense<0.000000e+00> : vector<256x128xf32>
    %10 = tpu.matmul %9, %8, %cst {dimension_numbers = #tpu.dot_dimension_numbers<[1], [0], [0], [1], [0, 0, 1, 1], [], []>} : vector<256x256xbf16>, vector<256x128xbf16>, vector<256x128xf32> -> vector<256x128xf32>
    %11 = arith.truncf %10 : vector<256x128xf32> to vector<256x128xbf16>
    %c0_7 = arith.constant 0 : index
    %c0_8 = arith.constant 0 : index
    %12 = vector.load %arg5[%c0_7, %c0_8] : memref<128x512xbf16, #tpu.memory_space<vmem>>, vector<128x512xbf16>
    %cst_9 = arith.constant dense<0.000000e+00> : vector<256x512xf32>
    %13 = tpu.matmul %11, %12, %cst_9 {dimension_numbers = #tpu.dot_dimension_numbers<[1], [0], [0], [1], [0, 0, 1, 1], [], []>} : vector<256x128xbf16>, vector<128x512xbf16>, vector<256x512xf32> -> vector<256x512xf32>
    %c0_10 = arith.constant 0 : index
    %c0_11 = arith.constant 0 : index
    %14 = vector.load %arg6[%c0_10, %c0_11] : memref<1x512xf32, #tpu.memory_space<vmem>>, vector<1x512xf32>
    %15 = vector.broadcast %14 : vector<1x512xf32> to vector<256x512xf32>
    %16 = arith.addf %13, %15 : vector<256x512xf32>
    %cst_12 = arith.constant 0.000000e+00 : f32
    %17 = vector.broadcast %cst_12 : f32 to vector<256x512xf32>
    %18 = arith.maximumf %16, %17 : vector<256x512xf32>
    %19 = arith.truncf %18 : vector<256x512xf32> to vector<256x512xbf16>
    %c0_13 = arith.constant 0 : index
    %c0_14 = arith.constant 0 : index
    %20 = vector.load %arg7[%c0_13, %c0_14] : memref<512x128xbf16, #tpu.memory_space<vmem>>, vector<512x128xbf16>
    %cst_15 = arith.constant dense<0.000000e+00> : vector<256x128xf32>
    %21 = tpu.matmul %19, %20, %cst_15 {dimension_numbers = #tpu.dot_dimension_numbers<[1], [0], [0], [1], [0, 0, 1, 1], [], []>} : vector<256x512xbf16>, vector<512x128xbf16>, vector<256x128xf32> -> vector<256x128xf32>
    %22 = arith.truncf %21 : vector<256x128xf32> to vector<256x128xbf16>
    %cst_16 = arith.constant dense<0.000000e+00> : vector<256x128xf32>
    %23 = tpu.matmul %9, %22, %cst_16 {dimension_numbers = #tpu.dot_dimension_numbers<[1], [0], [0], [1], [0, 0, 1, 1], [], []>} : vector<256x256xbf16>, vector<256x128xbf16>, vector<256x128xf32> -> vector<256x128xf32>
    %c0_17 = arith.constant 0 : index
    %c0_18 = arith.constant 0 : index
    %24 = vector.load %arg8[%c0_17, %c0_18] : memref<1x128xf32, #tpu.memory_space<vmem>>, vector<1x128xf32>
    %25 = vector.broadcast %24 : vector<1x128xf32> to vector<256x128xf32>
    %26 = arith.addf %23, %25 : vector<256x128xf32>
    %27 = tpu.transpose %26, [1, 0] : vector<256x128xf32> -> vector<128x256xf32>
    %28 = tpu.iota {dimensions = array<i32: 0>} : vector<256x384xi32>
    %c0_19 = arith.constant 0 : index
    %c0_20 = arith.constant 0 : index
    %29 = vector.load %arg9[%c0_19, %c0_20] : memref<1x384xi32, #tpu.memory_space<vmem>>, vector<1x384xi32>
    %30 = vector.broadcast %29 : vector<1x384xi32> to vector<256x384xi32>
    %31 = arith.cmpi eq, %28, %30 : vector<256x384xi32>
    %32 = arith.extui %31 : vector<256x384xi1> to vector<256x384xi32>
    %33 = arith.sitofp %32 : vector<256x384xi32> to vector<256x384xf32>
    %c0_21 = arith.constant 0 : index
    %c0_22 = arith.constant 0 : index
    %34 = vector.load %arg10[%c0_21, %c0_22] : memref<1x384xi32, #tpu.memory_space<vmem>>, vector<1x384xi32>
    %35 = vector.broadcast %34 : vector<1x384xi32> to vector<256x384xi32>
    %36 = arith.cmpi eq, %28, %35 : vector<256x384xi32>
    %37 = arith.extui %36 : vector<256x384xi1> to vector<256x384xi32>
    %38 = arith.sitofp %37 : vector<256x384xi32> to vector<256x384xf32>
    %cst_23 = arith.constant dense<0.000000e+00> : vector<128x384xf32>
    %39 = tpu.matmul %27, %33, %cst_23 {dimension_numbers = #tpu.dot_dimension_numbers<[1], [0], [0], [1], [0, 0, 1, 1], [], []>} : vector<128x256xf32>, vector<256x384xf32>, vector<128x384xf32> -> vector<128x384xf32>
    %cst_24 = arith.constant dense<0.000000e+00> : vector<128x384xf32>
    %40 = tpu.matmul %27, %38, %cst_24 {dimension_numbers = #tpu.dot_dimension_numbers<[1], [0], [0], [1], [0, 0, 1, 1], [], []>} : vector<128x256xf32>, vector<256x384xf32>, vector<128x384xf32> -> vector<128x384xf32>
    %41 = arith.mulf %39, %40 : vector<128x384xf32>
    %cst_25 = arith.constant dense<0.000000e+00> : vector<384xf32>
    %42 = vector.multi_reduction <add>, %41, %cst_25 [0] : vector<128x384xf32> to vector<384xf32>
    %43 = vector.shape_cast %42 : vector<384xf32> to vector<1x384xf32>
    %c0_26 = arith.constant 0 : index
    %c0_27 = arith.constant 0 : index
    %44 = vector.load %arg11[%c0_26, %c0_27] : memref<1x384xf32, #tpu.memory_space<vmem>>, vector<1x384xf32>
    tpu.vector_store %arg11[%c0_26, %c0_27], %43 {strides = array<i32>} : memref<1x384xf32, #tpu.memory_space<vmem>>, vector<1x384xf32>,
    return
  }
  func.func @transform_0(%arg0: i32) -> (i32, i32) {
    %c0_i32 = arith.constant 0 : i32
    %c0_i32_0 = arith.constant 0 : i32
    %c0_i32_1 = arith.constant 0 : i32
    return %c0_i32, %c0_i32_0 : i32, i32
  }
  func.func @transform_1(%arg0: i32) -> (i32, i32) {
    %c0_i32 = arith.constant 0 : i32
    %c0_i32_0 = arith.constant 0 : i32
    %c0_i32_1 = arith.constant 0 : i32
    return %c0_i32, %c0_i32_0 : i32, i32
  }
  func.func @transform_2(%arg0: i32) -> (i32, i32) {
    %c0_i32 = arith.constant 0 : i32
    %c0_i32_0 = arith.constant 0 : i32
    %c0_i32_1 = arith.constant 0 : i32
    return %c0_i32, %c0_i32_0 : i32, i32
  }
  func.func @transform_3(%arg0: i32) -> (i32, i32) {
    %c0_i32 = arith.constant 0 : i32
    %c0_i32_0 = arith.constant 0 : i32
    %c0_i32_1 = arith.constant 0 : i32
    return %c0_i32, %c0_i32_0 : i32, i32
  }
  func.func @transform_4(%arg0: i32) -> (i32, i32) {
    %c0_i32 = arith.constant 0 : i32
    %c0_i32_0 = arith.constant 0 : i32
    %c0_i32_1 = arith.constant 0 : i32
    return %c0_i32, %c0_i32_0 : i32, i32
  }
  func.func @transform_5(%arg0: i32) -> (i32, i32) {
    %c0_i32 = arith.constant 0 : i32
    %c0_i32_0 = arith.constant 0 : i32
    %c0_i32_1 = arith.constant 0 : i32
    return %c0_i32, %c0_i32_0 : i32, i32
  }
  func.func @transform_6(%arg0: i32) -> (i32, i32) {
    %c0_i32 = arith.constant 0 : i32
    %c0_i32_0 = arith.constant 0 : i32
    %c0_i32_1 = arith.constant 0 : i32
    return %c0_i32, %c0_i32_0 : i32, i32
  }
  func.func @transform_7(%arg0: i32) -> (i32, i32) {
    %c0_i32 = arith.constant 0 : i32
    %c0_i32_0 = arith.constant 0 : i32
    %c0_i32_1 = arith.constant 0 : i32
    return %c0_i32, %c0_i32_0 : i32, i32
  }
  func.func @transform_8(%arg0: i32) -> (i32, i32) {
    %c0_i32 = arith.constant 0 : i32
    %c0_i32_0 = arith.constant 0 : i32
    %c0_i32_1 = arith.constant 0 : i32
    return %c0_i32, %c0_i32_0 : i32, i32
  }
  func.func @transform_9(%arg0: i32) -> (i32, i32) {
    %c0_i32 = arith.constant 0 : i32
    %c0_i32_0 = arith.constant 0 : i32
    %c0_i32_1 = arith.constant 0 : i32
    return %c0_i32, %c0_i32_0 : i32, i32
  }
  func.func @transform_10(%arg0: i32) -> (i32, i32) {
    %c0_i32 = arith.constant 0 : i32
    %c0_i32_0 = arith.constant 0 : i32
    %c0_i32_1 = arith.constant 0 : i32
    return %c0_i32, %c0_i32_0 : i32, i32
  }
}

</mosaic_0001>

<llo_original>
// kernel: my_gcn_forward.1
$region0: #{my_gcn_forward.1}
  #allocation0 [shape = 'u32[]', space=smem, size = 0x4, offset = 0x4, fixed_abs, tag = 'smem constant byte address 0x4 - core index']
  #allocation1 [shape = 'u32[72,128]{1,0:T(1,128)}', space=vmem, size = 0x9000, scoped, tag = 'internal scratch']
  %s0 = inlined_call_operand.vmem [shape: f32[256,1], index: 0, kind: input, shape index: {}]
  %s1 = inlined_call_operand.vmem [shape: f32[1,128], index: 1, kind: input, shape index: {}]
  %s2 = inlined_call_operand.vmem [shape: f32[1,128], index: 2, kind: input, shape index: {}]
  %s3 = inlined_call_operand.vmem [shape: bf16[256,256], index: 3, kind: input, shape index: {}]
  %s4 = inlined_call_operand.vmem [shape: bf16[128,512], index: 4, kind: input, shape index: {}]
  %s5 = inlined_call_operand.vmem [shape: f32[1,512], index: 5, kind: input, shape index: {}]
  %s6 = inlined_call_operand.hbm [shape: bf16[512,128], index: 6, kind: input, shape index: {}]
  %s7 = inlined_call_operand.vmem [shape: f32[1,128], index: 7, kind: input, shape index: {}]
  %s8 = inlined_call_operand.vmem [shape: s32[1,384], index: 8, kind: input, shape index: {}]
  %s9 = inlined_call_operand.vmem [shape: s32[1,384], index: 9, kind: input, shape index: {}]
  %s10 = inlined_call_operand.vmem [shape: f32[1,384], index: 10, kind: output, shape index: {}]
  %s11 = sld [smem:[#allocation0]]
  $region54: #{my_gcn_forward.1} parent=0
    _
  %s13 = ssub.s32 1, %s11
  %s14 = scalar_select 0, %s13, %s11
  $region1: #{my_gcn_forward.1} parent=0
    #allocation2 [shape = 'u8[131072]{0}', space=vmem, size = 0x20000, scoped, tag = 'input window, operand 6, single buffered']
    #allocation3 [shape = 's32[1]{0}', space=sflag, size = 0x4, scoped, tag = 'scoped memory for my_gcn_forward.1']
    %15 = vsyncpa [#allocation3], 0
    // Predicated region
    $region2: #{my_gcn_forward.1} parent=1 // pred_check
      _
    $region3: #{my_gcn_forward.1} parent=1 // pred_check_branch
      %17 = sbr.rel (0) target = $region5
    $region4: #{my_gcn_forward.1} parent=1 // pred_region
      _
    $region5: #{my_gcn_forward.1} parent=1 // pred_fallthru
      _
    // Predicated region
    $region6: #{my_gcn_forward.1} parent=1 // pred_check
      _
    $region7: #{my_gcn_forward.1} parent=1 // pred_check_branch
      %19 = sbr.rel (0) target = $region9
    $region8: #{my_gcn_forward.1} parent=1 // pred_region
      _
    $region9: #{my_gcn_forward.1} parent=1 // pred_fallthru
      _
    // Predicated region
    $region10: #{my_gcn_forward.1} parent=1 // pred_check
      _
    $region11: #{my_gcn_forward.1} parent=1 // pred_check_branch
      %21 = sbr.rel (0) target = $region13
    $region12: #{my_gcn_forward.1} parent=1 // pred_region
      _
    $region13: #{my_gcn_forward.1} parent=1 // pred_fallthru
      _
    // Predicated region
    $region14: #{my_gcn_forward.1} parent=1 // pred_check
      _
    $region15: #{my_gcn_forward.1} parent=1 // pred_check_branch
      %23 = sbr.rel (0) target = $region17
    $region16: #{my_gcn_forward.1} parent=1 // pred_region
      _
    $region17: #{my_gcn_forward.1} parent=1 // pred_fallthru
      _
    // Predicated region
    $region18: #{my_gcn_forward.1} parent=1 // pred_check
      _
    $region19: #{my_gcn_forward.1} parent=1 // pred_check_branch
      %25 = sbr.rel (0) target = $region21
    $region20: #{my_gcn_forward.1} parent=1 // pred_region
      _
    $region21: #{my_gcn_forward.1} parent=1 // pred_fallthru
      _
    // Predicated region
    $region22: #{my_gcn_forward.1} parent=1 // pred_check
      _
    $region23: #{my_gcn_forward.1} parent=1 // pred_check_branch
      %27 = sbr.rel (0) target = $region25
    $region24: #{my_gcn_forward.1} parent=1 // pred_region
      _
    $region25: #{my_gcn_forward.1} parent=1 // pred_fallthru
      _
    // Predicated region
    $region26: #{my_gcn_forward.1} parent=1 // pred_check
      _
    $region27: #{my_gcn_forward.1} parent=1 // pred_check_branch
      %29 = sbr.rel (0) target = $region29
    $region28: #{my_gcn_forward.1} parent=1 // pred_region
      %31 = vsyncadd [#allocation3], 0
      %s32 = sshll.u32 %s6, 4
      %s33 = int_to_ptr.hbm [resolvable:$true] %s32
      %s34 = sshll.u32 [#allocation2], 4
      %s35 = int_to_ptr.vmem [resolvable:$true] %s34
      %40 = dma.hbm_to_vmem [thread:$0]  %s33, 4096, %s35, [#allocation3], 64, 64, 4
    $region29: #{my_gcn_forward.1} parent=1 // pred_fallthru
      _
    // Predicated region
    $region30: #{my_gcn_forward.1} parent=1 // pred_check
      _
    $region31: #{my_gcn_forward.1} parent=1 // pred_check_branch
      %42 = sbr.rel (0) target = $region33
    $region32: #{my_gcn_forward.1} parent=1 // pred_region
      _
    $region33: #{my_gcn_forward.1} parent=1 // pred_fallthru
      _
    // Predicated region
    $region34: #{my_gcn_forward.1} parent=1 // pred_check
      _
    $region35: #{my_gcn_forward.1} parent=1 // pred_check_branch
      %44 = sbr.rel (0) target = $region37
    $region36: #{my_gcn_forward.1} parent=1 // pred_region
      _
    $region37: #{my_gcn_forward.1} parent=1 // pred_fallthru
      _
    // Predicated region
    $region38: #{my_gcn_forward.1} parent=1 // pred_check
      _
    $region39: #{my_gcn_forward.1} parent=1 // pred_check_branch
      %46 = sbr.rel (0) target = $region41
    $region40: #{my_gcn_forward.1} parent=1 // pred_region
      _
    $region41: #{my_gcn_forward.1} parent=1 // pred_fallthru
      _
    // Predicated region
    $region42: #{my_gcn_forward.1} parent=1 // pred_check
      _
    $region43: #{my_gcn_forward.1} parent=1 // pred_check_branch
      %48 = sbr.rel (0) target = $region45
    $region44: #{my_gcn_forward.1} parent=1 // pred_region
      %50 = dma.done [#allocation3], 4096
    $region45: #{my_gcn_forward.1} parent=1 // pred_fallthru
      _
    %v51 = vld [vmem:[%s0] sm:$0xff]
    %v52 = vld [vmem:[%s0 + $0x8] sm:$0xff]
    %v53 = vld [vmem:[%s0 + $0x10] sm:$0xff]
    %v54 = vld [vmem:[%s0 + $0x18] sm:$0xff]
    %v55 = vld [vmem:[%s0 + $0x20] sm:$0xff]
    %v56 = vld [vmem:[%s0 + $0x28] sm:$0xff]
    %v57 = vld [vmem:[%s0 + $0x30] sm:$0xff]
    %v58 = vld [vmem:[%s0 + $0x38] sm:$0xff]
    %v59 = vld [vmem:[%s0 + $0x40] sm:$0xff]
    %v60 = vld [vmem:[%s0 + $0x48] sm:$0xff]
    %v61 = vld [vmem:[%s0 + $0x50] sm:$0xff]
    %v62 = vld [vmem:[%s0 + $0x58] sm:$0xff]
    %v63 = vld [vmem:[%s0 + $0x60] sm:$0xff]
    %v64 = vld [vmem:[%s0 + $0x68] sm:$0xff]
    %v65 = vld [vmem:[%s0 + $0x70] sm:$0xff]
    %v66 = vld [vmem:[%s0 + $0x78] sm:$0xff]
    %v67 = vld [vmem:[%s0 + $0x80] sm:$0xff]
    %v68 = vld [vmem:[%s0 + $0x88] sm:$0xff]
    %v69 = vld [vmem:[%s0 + $0x90] sm:$0xff]
    %v70 = vld [vmem:[%s0 + $0x98] sm:$0xff]
    %v71 = vld [vmem:[%s0 + $0xa0] sm:$0xff]
    %v72 = vld [vmem:[%s0 + $0xa8] sm:$0xff]
    %v73 = vld [vmem:[%s0 + $0xb0] sm:$0xff]
    %v74 = vld [vmem:[%s0 + $0xb8] sm:$0xff]
    %v75 = vld [vmem:[%s0 + $0xc0] sm:$0xff]
    %v76 = vld [vmem:[%s0 + $0xc8] sm:$0xff]
    %v77 = vld [vmem:[%s0 + $0xd0] sm:$0xff]
    %v78 = vld [vmem:[%s0 + $0xd8] sm:$0xff]
    %v79 = vld [vmem:[%s0 + $0xe0] sm:$0xff]
    %v80 = vld [vmem:[%s0 + $0xe8] sm:$0xff]
    %v81 = vld [vmem:[%s0 + $0xf0] sm:$0xff]
    %v82 = vld [vmem:[%s0 + $0xf8] sm:$0xff]
    %v83 = vld [vmem:[%s1] sm:$0x1]
    %85 = vset.pattern.permute.xlu0 0
    %86 = vperm.xlu0 %85, %v51
    %v87 = vpop.permute.xlu0 %86
    %90 = vset.pattern.permute.xlu0 0
    %91 = vperm.xlu0 %90, %v52
    %v92 = vpop.permute.xlu0 %91
    %95 = vset.pattern.permute.xlu0 0
    %96 = vperm.xlu0 %95, %v53
    %v97 = vpop.permute.xlu0 %96
    %100 = vset.pattern.permute.xlu0 0
    %101 = vperm.xlu0 %100, %v54
    %v102 = vpop.permute.xlu0 %101
    %105 = vset.pattern.permute.xlu0 0
    %106 = vperm.xlu0 %105, %v55
    %v107 = vpop.permute.xlu0 %106
    %110 = vset.pattern.permute.xlu0 0
    %111 = vperm.xlu0 %110, %v56
    %v112 = vpop.permute.xlu0 %111
    %115 = vset.pattern.permute.xlu0 0
    %116 = vperm.xlu0 %115, %v57
    %v117 = vpop.permute.xlu0 %116
    %120 = vset.pattern.permute.xlu0 0
    %121 = vperm.xlu0 %120, %v58
    %v122 = vpop.permute.xlu0 %121
    %125 = vset.pattern.permute.xlu0 0
    %126 = vperm.xlu0 %125, %v59
    %v127 = vpop.permute.xlu0 %126
    %130 = vset.pattern.permute.xlu0 0
    %131 = vperm.xlu0 %130, %v60
    %v132 = vpop.permute.xlu0 %131
    %135 = vset.pattern.permute.xlu0 0
    %136 = vperm.xlu0 %135, %v61
    %v137 = vpop.permute.xlu0 %136
    %140 = vset.pattern.permute.xlu0 0
    %141 = vperm.xlu0 %140, %v62
    %v142 = vpop.permute.xlu0 %141
    %145 = vset.pattern.permute.xlu0 0
    %146 = vperm.xlu0 %145, %v63
    %v147 = vpop.permute.xlu0 %146
    %150 = vset.pattern.permute.xlu0 0
    %151 = vperm.xlu0 %150, %v64
    %v152 = vpop.permute.xlu0 %151
    %155 = vset.pattern.permute.xlu0 0
    %156 = vperm.xlu0 %155, %v65
    %v157 = vpop.permute.xlu0 %156
    %160 = vset.pattern.permute.xlu0 0
    %161 = vperm.xlu0 %160, %v66
    %v162 = vpop.permute.xlu0 %161
    %165 = vset.pattern.permute.xlu0 0
    %166 = vperm.xlu0 %165, %v67
    %v167 = vpop.permute.xlu0 %166
    %170 = vset.pattern.permute.xlu0 0
    %171 = vperm.xlu0 %170, %v68
    %v172 = vpop.permute.xlu0 %171
    %175 = vset.pattern.permute.xlu0 0
    %176 = vperm.xlu0 %175, %v69
    %v177 = vpop.permute.xlu0 %176
    %180 = vset.pattern.permute.xlu0 0
    %181 = vperm.xlu0 %180, %v70
    %v182 = vpop.permute.xlu0 %181
    %185 = vset.pattern.permute.xlu0 0
    %186 = vperm.xlu0 %185, %v71
    %v187 = vpop.permute.xlu0 %186
    %190 = vset.pattern.permute.xlu0 0
    %191 = vperm.xlu0 %190, %v72
    %v192 = vpop.permute.xlu0 %191
    %195 = vset.pattern.permute.xlu0 0
    %196 = vperm.xlu0 %195, %v73
    %v197 = vpop.permute.xlu0 %196
    %200 = vset.pattern.permute.xlu0 0
    %201 = vperm.xlu0 %200, %v74
    %v202 = vpop.permute.xlu0 %201
    %205 = vset.pattern.permute.xlu0 0
    %206 = vperm.xlu0 %205, %v75
    %v207 = vpop.permute.xlu0 %206
    %210 = vset.pattern.permute.xlu0 0
    %211 = vperm.xlu0 %210, %v76
    %v212 = vpop.permute.xlu0 %211
    %215 = vset.pattern.permute.xlu0 0
    %216 = vperm.xlu0 %215, %v77
    %v217 = vpop.permute.xlu0 %216
    %220 = vset.pattern.permute.xlu0 0
    %221 = vperm.xlu0 %220, %v78
    %v222 = vpop.permute.xlu0 %221
    %225 = vset.pattern.permute.xlu0 0
    %226 = vperm.xlu0 %225, %v79
    %v227 = vpop.permute.xlu0 %226
    %230 = vset.pattern.permute.xlu0 0
    %231 = vperm.xlu0 %230, %v80
    %v232 = vpop.permute.xlu0 %231
    %235 = vset.pattern.permute.xlu0 0
    %236 = vperm.xlu0 %235, %v81
    %v237 = vpop.permute.xlu0 %236
    %240 = vset.pattern.permute.xlu0 0
    %241 = vperm.xlu0 %240, %v82
    %v242 = vpop.permute.xlu0 %241
    %v245 = vperm.slane %v83, 0
    %v247 = vmul.f32 %v87, %v245
    %v248 = vmul.f32 %v92, %v245
    %v249 = vmul.f32 %v97, %v245
    %v250 = vmul.f32 %v102, %v245
    %v251 = vmul.f32 %v107, %v245
    %v252 = vmul.f32 %v112, %v245
    %v253 = vmul.f32 %v117, %v245
    %v254 = vmul.f32 %v122, %v245
    %v255 = vmul.f32 %v127, %v245
    %v256 = vmul.f32 %v132, %v245
    %v257 = vmul.f32 %v137, %v245
    %v258 = vmul.f32 %v142, %v245
    %v259 = vmul.f32 %v147, %v245
    %v260 = vmul.f32 %v152, %v245
    %v261 = vmul.f32 %v157, %v245
    %v262 = vmul.f32 %v162, %v245
    %v263 = vmul.f32 %v167, %v245
    %v264 = vmul.f32 %v172, %v245
    %v265 = vmul.f32 %v177, %v245
    %v266 = vmul.f32 %v182, %v245
    %v267 = vmul.f32 %v187, %v245
    %v268 = vmul.f32 %v192, %v245
    %v269 = vmul.f32 %v197, %v245
    %v270 = vmul.f32 %v202, %v245
    %v271 = vmul.f32 %v207, %v245
    %v272 = vmul.f32 %v212, %v245
    %v273 = vmul.f32 %v217, %v245
    %v274 = vmul.f32 %v222, %v245
    %v275 = vmul.f32 %v227, %v245
    %v276 = vmul.f32 %v232, %v245
    %v277 = vmul.f32 %v237, %v245
    %v278 = vmul.f32 %v242, %v245
    %v279 = vld [vmem:[%s2] sm:$0x1]
    %v281 = vperm.slane %v279, 0
    %v283 = vadd.f32 %v247, %v281
    %v284 = vadd.f32 %v248, %v281
    %v285 = vadd.f32 %v249, %v281
    %v286 = vadd.f32 %v250, %v281
    %v287 = vadd.f32 %v251, %v281
    %v288 = vadd.f32 %v252, %v281
    %v289 = vadd.f32 %v253, %v281
    %v290 = vadd.f32 %v254, %v281
    %v291 = vadd.f32 %v255, %v281
    %v292 = vadd.f32 %v256, %v281
    %v293 = vadd.f32 %v257, %v281
    %v294 = vadd.f32 %v258, %v281
    %v295 = vadd.f32 %v259, %v281
    %v296 = vadd.f32 %v260, %v281
    %v297 = vadd.f32 %v261, %v281
    %v298 = vadd.f32 %v262, %v281
    %v299 = vadd.f32 %v263, %v281
    %v300 = vadd.f32 %v264, %v281
    %v301 = vadd.f32 %v265, %v281
    %v302 = vadd.f32 %v266, %v281
    %v303 = vadd.f32 %v267, %v281
    %v304 = vadd.f32 %v268, %v281
    %v305 = vadd.f32 %v269, %v281
    %v306 = vadd.f32 %v270, %v281
    %v307 = vadd.f32 %v271, %v281
    %v308 = vadd.f32 %v272, %v281
    %v309 = vadd.f32 %v273, %v281
    %v310 = vadd.f32 %v274, %v281
    %v311 = vadd.f32 %v275, %v281
    %v312 = vadd.f32 %v276, %v281
    %v313 = vadd.f32 %v277, %v281
    %v314 = vadd.f32 %v278, %v281
    %v315 = vpack.c.bf16 %v284, %v283
    %v316 = vpack.c.bf16 %v286, %v285
    %v317 = vpack.c.bf16 %v288, %v287
    %v318 = vpack.c.bf16 %v290, %v289
    %v319 = vpack.c.bf16 %v292, %v291
    %v320 = vpack.c.bf16 %v294, %v293
    %v321 = vpack.c.bf16 %v296, %v295
    %v322 = vpack.c.bf16 %v298, %v297
    %v323 = vpack.c.bf16 %v300, %v299
    %v324 = vpack.c.bf16 %v302, %v301
    %v325 = vpack.c.bf16 %v304, %v303
    %v326 = vpack.c.bf16 %v306, %v305
    %v327 = vpack.c.bf16 %v308, %v307
    %v328 = vpack.c.bf16 %v310, %v309
    %v329 = vpack.c.bf16 %v312, %v311
    %v330 = vpack.c.bf16 %v314, %v313
    %v331 = vld [vmem:[%s3] sm:$0xff]
    %v332 = vld [vmem:[%s3 + $0x8] sm:$0xff]
    %v333 = vld [vmem:[%s3 + $0x10] sm:$0xff]
    %v334 = vld [vmem:[%s3 + $0x18] sm:$0xff]
    %v335 = vld [vmem:[%s3 + $0x20] sm:$0xff]
    %v336 = vld [vmem:[%s3 + $0x28] sm:$0xff]
    %v337 = vld [vmem:[%s3 + $0x30] sm:$0xff]
    %v338 = vld [vmem:[%s3 + $0x38] sm:$0xff]
    %v339 = vld [vmem:[%s3 + $0x40] sm:$0xff]
    %v340 = vld [vmem:[%s3 + $0x48] sm:$0xff]
    %v341 = vld [vmem:[%s3 + $0x50] sm:$0xff]
    %v342 = vld [vmem:[%s3 + $0x58] sm:$0xff]
    %v343 = vld [vmem:[%s3 + $0x60] sm:$0xff]
    %v344 = vld [vmem:[%s3 + $0x68] sm:$0xff]
    %v345 = vld [vmem:[%s3 + $0x70] sm:$0xff]
    %v346 = vld [vmem:[%s3 + $0x78] sm:$0xff]
    %v347 = vld [vmem:[%s3 + $0x80] sm:$0xff]
    %v348 = vld [vmem:[%s3 + $0x88] sm:$0xff]
    %v349 = vld [vmem:[%s3 + $0x90] sm:$0xff]
    %v350 = vld [vmem:[%s3 + $0x98] sm:$0xff]
    %v351 = vld [vmem:[%s3 + $0xa0] sm:$0xff]
    %v352 = vld [vmem:[%s3 + $0xa8] sm:$0xff]
    %v353 = vld [vmem:[%s3 + $0xb0] sm:$0xff]
    %v354 = vld [vmem:[%s3 + $0xb8] sm:$0xff]
    %v355 = vld [vmem:[%s3 + $0xc0] sm:$0xff]
    %v356 = vld [vmem:[%s3 + $0xc8] sm:$0xff]
    %v357 = vld [vmem:[%s3 + $0xd0] sm:$0xff]
    %v358 = vld [vmem:[%s3 + $0xd8] sm:$0xff]
    %v359 = vld [vmem:[%s3 + $0xe0] sm:$0xff]
    %v360 = vld [vmem:[%s3 + $0xe8] sm:$0xff]
    %v361 = vld [vmem:[%s3 + $0xf0] sm:$0xff]
    %v362 = vld [vmem:[%s3 + $0xf8] sm:$0xff]
    %v395 = vunpack.c.l.b16 %v331
    %v396 = vunpack.c.h.b16 %v331
    %v397 = vunpack.c.l.b16 %v332
    %v398 = vunpack.c.h.b16 %v332
    %v399 = vunpack.c.l.b16 %v333
    %v400 = vunpack.c.h.b16 %v333
    %v401 = vunpack.c.l.b16 %v334
    %v402 = vunpack.c.h.b16 %v334
    %v403 = vunpack.c.l.b16 %v335
    %v404 = vunpack.c.h.b16 %v335
    %v405 = vunpack.c.l.b16 %v336
    %v406 = vunpack.c.h.b16 %v336
    %v407 = vunpack.c.l.b16 %v337
    %v408 = vunpack.c.h.b16 %v337
    %v409 = vunpack.c.l.b16 %v338
    %v410 = vunpack.c.h.b16 %v338
    %v411 = vunpack.c.l.b16 %v339
    %v412 = vunpack.c.h.b16 %v339
    %v413 = vunpack.c.l.b16 %v340
    %v414 = vunpack.c.h.b16 %v340
    %v415 = vunpack.c.l.b16 %v341
    %v416 = vunpack.c.h.b16 %v341
    %v417 = vunpack.c.l.b16 %v342
    %v418 = vunpack.c.h.b16 %v342
    %v419 = vunpack.c.l.b16 %v343
    %v420 = vunpack.c.h.b16 %v343
    %v421 = vunpack.c.l.b16 %v344
    %v422 = vunpack.c.h.b16 %v344
    %v423 = vunpack.c.l.b16 %v345
    %v424 = vunpack.c.h.b16 %v345
    %v425 = vunpack.c.l.b16 %v346
    %v426 = vunpack.c.h.b16 %v346
    %v427 = vunpack.c.l.b16 %v347
    %v428 = vunpack.c.h.b16 %v347
    %v429 = vunpack.c.l.b16 %v348
    %v430 = vunpack.c.h.b16 %v348
    %v431 = vunpack.c.l.b16 %v349
    %v432 = vunpack.c.h.b16 %v349
    %v433 = vunpack.c.l.b16 %v350
    %v434 = vunpack.c.h.b16 %v350
    %v435 = vunpack.c.l.b16 %v351
    %v436 = vunpack.c.h.b16 %v351
    %v437 = vunpack.c.l.b16 %v352
    %v438 = vunpack.c.h.b16 %v352
    %v439 = vunpack.c.l.b16 %v353
    %v440 = vunpack.c.h.b16 %v353
    %v441 = vunpack.c.l.b16 %v354
    %v442 = vunpack.c.h.b16 %v354
    %v443 = vunpack.c.l.b16 %v355
    %v444 = vunpack.c.h.b16 %v355
    %v445 = vunpack.c.l.b16 %v356
    %v446 = vunpack.c.h.b16 %v356
    %v447 = vunpack.c.l.b16 %v357
    %v448 = vunpack.c.h.b16 %v357
    %v449 = vunpack.c.l.b16 %v358
    %v450 = vunpack.c.h.b16 %v358
    %v451 = vunpack.c.l.b16 %v359
    %v452 = vunpack.c.h.b16 %v359
    %v453 = vunpack.c.l.b16 %v360
    %v454 = vunpack.c.h.b16 %v360
    %v455 = vunpack.c.l.b16 %v361
    %v456 = vunpack.c.h.b16 %v361
    %v457 = vunpack.c.l.b16 %v362
    %v458 = vunpack.c.h.b16 %v362
    %v459 = vpack.c.b16 %v397, %v395
    %v460 = vpack.c.b16 %v398, %v396
    %v461 = vpack.c.b16 %v401, %v399
    %v462 = vpack.c.b16 %v402, %v400
    %v463 = vpack.c.b16 %v405, %v403
    %v464 = vpack.c.b16 %v406, %v404
    %v465 = vpack.c.b16 %v409, %v407
    %v466 = vpack.c.b16 %v410, %v408
    %v467 = vpack.c.b16 %v413, %v411
    %v468 = vpack.c.b16 %v414, %v412
    %v469 = vpack.c.b16 %v417, %v415
    %v470 = vpack.c.b16 %v418, %v416
    %v471 = vpack.c.b16 %v421, %v419
    %v472 = vpack.c.b16 %v422, %v420
    %v473 = vpack.c.b16 %v425, %v423
    %v474 = vpack.c.b16 %v426, %v424
    %v475 = vpack.c.b16 %v429, %v427
    %v476 = vpack.c.b16 %v430, %v428
    %v477 = vpack.c.b16 %v433, %v431
    %v478 = vpack.c.b16 %v434, %v432
    %v479 = vpack.c.b16 %v437, %v435
    %v480 = vpack.c.b16 %v438, %v436
    %v481 = vpack.c.b16 %v441, %v439
    %v482 = vpack.c.b16 %v442, %v440
    %v483 = vpack.c.b16 %v445, %v443
    %v484 = vpack.c.b16 %v446, %v444
    %v485 = vpack.c.b16 %v449, %v447
    %v486 = vpack.c.b16 %v450, %v448
    %v487 = vpack.c.b16 %v453, %v451
    %v488 = vpack.c.b16 %v454, %v452
    %v489 = vpack.c.b16 %v457, %v455
    %v490 = vpack.c.b16 %v458, %v456
    %523 = vmatpush.bf16.msra.mxu0 %v322
    %524 = vmatpush.bf16.msra.mxu0 %v321
    %525 = vmatpush.bf16.msra.mxu0 %v320
    %526 = vmatpush.bf16.msra.mxu0 %v319
    %527 = vmatpush.bf16.msra.mxu0 %v318
    %528 = vmatpush.bf16.msra.mxu0 %v317
    %529 = vmatpush.bf16.msra.mxu0 %v316
    %530 = vmatpush.bf16.msra.mxu0 %v315
    %531 = vmatmul.bf16.gmra.mxu0 %v459
    %v532 = vpop.f32.mrf.mxu0
    %v533 = vadd.f32 0.0, %v532
    %v534 = vpop.f32.mrf.mxu0
    %v535 = vadd.f32 0.0, %v534
    %536 = vmatmul.bf16.gmra.mxu0 %v461
    %v537 = vpop.f32.mrf.mxu0
    %v538 = vadd.f32 0.0, %v537
    %v539 = vpop.f32.mrf.mxu0
    %v540 = vadd.f32 0.0, %v539
    %541 = vmatmul.bf16.gmra.mxu0 %v463
    %v542 = vpop.f32.mrf.mxu0
    %v543 = vadd.f32 0.0, %v542
    %v544 = vpop.f32.mrf.mxu0
    %v545 = vadd.f32 0.0, %v544
    %546 = vmatmul.bf16.gmra.mxu0 %v465
    %v547 = vpop.f32.mrf.mxu0
    %v548 = vadd.f32 0.0, %v547
    %v549 = vpop.f32.mrf.mxu0
    %v550 = vadd.f32 0.0, %v549
    %551 = vmatmul.bf16.gmra.mxu0 %v467
    %v552 = vpop.f32.mrf.mxu0
    %v553 = vadd.f32 0.0, %v552
    %v554 = vpop.f32.mrf.mxu0
    %v555 = vadd.f32 0.0, %v554
    %556 = vmatmul.bf16.gmra.mxu0 %v469
    %v557 = vpop.f32.mrf.mxu0
    %v558 = vadd.f32 0.0, %v557
    %v559 = vpop.f32.mrf.mxu0
    %v560 = vadd.f32 0.0, %v559
    %561 = vmatmul.bf16.gmra.mxu0 %v471
    %v562 = vpop.f32.mrf.mxu0
    %v563 = vadd.f32 0.0, %v562
    %v564 = vpop.f32.mrf.mxu0
    %v565 = vadd.f32 0.0, %v564
    %566 = vmatmul.bf16.gmra.mxu0 %v473
    %v567 = vpop.f32.mrf.mxu0
    %v568 = vadd.f32 0.0, %v567
    %v569 = vpop.f32.mrf.mxu0
    %v570 = vadd.f32 0.0, %v569
    %571 = vmatmul.bf16.gmra.mxu0 %v475
    %v572 = vpop.f32.mrf.mxu0
    %v573 = vadd.f32 0.0, %v572
    %v574 = vpop.f32.mrf.mxu0
    %v575 = vadd.f32 0.0, %v574
    %576 = vmatmul.bf16.gmra.mxu0 %v477
    %v577 = vpop.f32.mrf.mxu0
    %v578 = vadd.f32 0.0, %v577
    %v579 = vpop.f32.mrf.mxu0
    %v580 = vadd.f32 0.0, %v579
    %581 = vmatmul.bf16.gmra.mxu0 %v479
    %v582 = vpop.f32.mrf.mxu0
    %v583 = vadd.f32 0.0, %v582
    %v584 = vpop.f32.mrf.mxu0
    %v585 = vadd.f32 0.0, %v584
    %586 = vmatmul.bf16.gmra.mxu0 %v481
    %v587 = vpop.f32.mrf.mxu0
    %v588 = vadd.f32 0.0, %v587
    %v589 = vpop.f32.mrf.mxu0
    %v590 = vadd.f32 0.0, %v589
    %591 = vmatmul.bf16.gmra.mxu0 %v483
    %v592 = vpop.f32.mrf.mxu0
    %v593 = vadd.f32 0.0, %v592
    %v594 = vpop.f32.mrf.mxu0
    %v595 = vadd.f32 0.0, %v594
    %596 = vmatmul.bf16.gmra.mxu0 %v485
    %v597 = vpop.f32.mrf.mxu0
    %v598 = vadd.f32 0.0, %v597
    %v599 = vpop.f32.mrf.mxu0
    %v600 = vadd.f32 0.0, %v599
    %601 = vmatmul.bf16.gmra.mxu0 %v487
    %v602 = vpop.f32.mrf.mxu0
    %v603 = vadd.f32 0.0, %v602
    %v604 = vpop.f32.mrf.mxu0
    %v605 = vadd.f32 0.0, %v604
    %606 = vmatmul.bf16.gmra.mxu0 %v489
    %v607 = vpop.f32.mrf.mxu0
    %v608 = vadd.f32 0.0, %v607
    %v609 = vpop.f32.mrf.mxu0
    %v610 = vadd.f32 0.0, %v609
    %611 = vdwg.mxu0
    %612 = vmatpush.bf16.msra.mxu0 %v330
    %613 = vmatpush.bf16.msra.mxu0 %v329
    %614 = vmatpush.bf16.msra.mxu0 %v328
    %615 = vmatpush.bf16.msra.mxu0 %v327
    %616 = vmatpush.bf16.msra.mxu0 %v326
    %617 = vmatpush.bf16.msra.mxu0 %v325
    %618 = vmatpush.bf16.msra.mxu0 %v324
    %619 = vmatpush.bf16.msra.mxu0 %v323
    %620 = vmatmul.bf16.gmra.mxu0 %v460
    %v621 = vpop.f32.mrf.mxu0
    %v622 = vadd.f32 %v533, %v621
    %v623 = vpop.f32.mrf.mxu0
    %v624 = vadd.f32 %v535, %v623
    %625 = vmatmul.bf16.gmra.mxu0 %v462
    %v626 = vpop.f32.mrf.mxu0
    %v627 = vadd.f32 %v538, %v626
    %v628 = vpop.f32.mrf.mxu0
    %v629 = vadd.f32 %v540, %v628
    %630 = vmatmul.bf16.gmra.mxu0 %v464
    %v631 = vpop.f32.mrf.mxu0
    %v632 = vadd.f32 %v543, %v631
    %v633 = vpop.f32.mrf.mxu0
    %v634 = vadd.f32 %v545, %v633
    %635 = vmatmul.bf16.gmra.mxu0 %v466
    %v636 = vpop.f32.mrf.mxu0
    %v637 = vadd.f32 %v548, %v636
    %v638 = vpop.f32.mrf.mxu0
    %v639 = vadd.f32 %v550, %v638
    %640 = vmatmul.bf16.gmra.mxu0 %v468
    %v641 = vpop.f32.mrf.mxu0
    %v642 = vadd.f32 %v553, %v641
    %v643 = vpop.f32.mrf.mxu0
    %v644 = vadd.f32 %v555, %v643
    %645 = vmatmul.bf16.gmra.mxu0 %v470
    %v646 = vpop.f32.mrf.mxu0
    %v647 = vadd.f32 %v558, %v646
    %v648 = vpop.f32.mrf.mxu0
    %v649 = vadd.f32 %v560, %v648
    %650 = vmatmul.bf16.gmra.mxu0 %v472
    %v651 = vpop.f32.mrf.mxu0
    %v652 = vadd.f32 %v563, %v651
    %v653 = vpop.f32.mrf.mxu0
    %v654 = vadd.f32 %v565, %v653
    %655 = vmatmul.bf16.gmra.mxu0 %v474
    %v656 = vpop.f32.mrf.mxu0
    %v657 = vadd.f32 %v568, %v656
    %v658 = vpop.f32.mrf.mxu0
    %v659 = vadd.f32 %v570, %v658
    %660 = vmatmul.bf16.gmra.mxu0 %v476
    %v661 = vpop.f32.mrf.mxu0
    %v662 = vadd.f32 %v573, %v661
    %v663 = vpop.f32.mrf.mxu0
    %v664 = vadd.f32 %v575, %v663
    %665 = vmatmul.bf16.gmra.mxu0 %v478
    %v666 = vpop.f32.mrf.mxu0
    %v667 = vadd.f32 %v578, %v666
    %v668 = vpop.f32.mrf.mxu0
    %v669 = vadd.f32 %v580, %v668
    %670 = vmatmul.bf16.gmra.mxu0 %v480
    %v671 = vpop.f32.mrf.mxu0
    %v672 = vadd.f32 %v583, %v671
    %v673 = vpop.f32.mrf.mxu0
    %v674 = vadd.f32 %v585, %v673
    %675 = vmatmul.bf16.gmra.mxu0 %v482
    %v676 = vpop.f32.mrf.mxu0
    %v677 = vadd.f32 %v588, %v676
    %v678 = vpop.f32.mrf.mxu0
    %v679 = vadd.f32 %v590, %v678
    %680 = vmatmul.bf16.gmra.mxu0 %v484
    %v681 = vpop.f32.mrf.mxu0
    %v682 = vadd.f32 %v593, %v681
    %v683 = vpop.f32.mrf.mxu0
    %v684 = vadd.f32 %v595, %v683
    %685 = vmatmul.bf16.gmra.mxu0 %v486
    %v686 = vpop.f32.mrf.mxu0
    %v687 = vadd.f32 %v598, %v686
    %v688 = vpop.f32.mrf.mxu0
    %v689 = vadd.f32 %v600, %v688
    %690 = vmatmul.bf16.gmra.mxu0 %v488
    %v691 = vpop.f32.mrf.mxu0
    %v692 = vadd.f32 %v603, %v691
    %v693 = vpop.f32.mrf.mxu0
    %v694 = vadd.f32 %v605, %v693
    %695 = vmatmul.bf16.gmra.mxu0 %v490
    %v696 = vpop.f32.mrf.mxu0
    %v697 = vadd.f32 %v608, %v696
    %v698 = vpop.f32.mrf.mxu0
    %v699 = vadd.f32 %v610, %v698
    %700 = vdwg.mxu0
    %v701 = vpack.c.bf16 %v624, %v622
    %v702 = vpack.c.bf16 %v629, %v627
    %v703 = vpack.c.bf16 %v634, %v632
    %v704 = vpack.c.bf16 %v639, %v637
    %v705 = vpack.c.bf16 %v644, %v642
    %v706 = vpack.c.bf16 %v649, %v647
    %v707 = vpack.c.bf16 %v654, %v652
    %v708 = vpack.c.bf16 %v659, %v657
    %v709 = vpack.c.bf16 %v664, %v662
    %v710 = vpack.c.bf16 %v669, %v667
    %v711 = vpack.c.bf16 %v674, %v672
    %v712 = vpack.c.bf16 %v679, %v677
    %v713 = vpack.c.bf16 %v684, %v682
    %v714 = vpack.c.bf16 %v689, %v687
    %v715 = vpack.c.bf16 %v694, %v692
    %v716 = vpack.c.bf16 %v699, %v697
    %v717 = vld [vmem:[%s4] sm:$0xff]
    %v718 = vld [vmem:[%s4 + $0x8] sm:$0xff]
    %v719 = vld [vmem:[%s4 + $0x10] sm:$0xff]
    %v720 = vld [vmem:[%s4 + $0x18] sm:$0xff]
    %v721 = vld [vmem:[%s4 + $0x20] sm:$0xff]
    %v722 = vld [vmem:[%s4 + $0x28] sm:$0xff]
    %v723 = vld [vmem:[%s4 + $0x30] sm:$0xff]
    %v724 = vld [vmem:[%s4 + $0x38] sm:$0xff]
    %v725 = vld [vmem:[%s4 + $0x40] sm:$0xff]
    %v726 = vld [vmem:[%s4 + $0x48] sm:$0xff]
    %v727 = vld [vmem:[%s4 + $0x50] sm:$0xff]
    %v728 = vld [vmem:[%s4 + $0x58] sm:$0xff]
    %v729 = vld [vmem:[%s4 + $0x60] sm:$0xff]
    %v730 = vld [vmem:[%s4 + $0x68] sm:$0xff]
    %v731 = vld [vmem:[%s4 + $0x70] sm:$0xff]
    %v732 = vld [vmem:[%s4 + $0x78] sm:$0xff]
    %v733 = vld [vmem:[%s4 + $0x80] sm:$0xff]
    %v734 = vld [vmem:[%s4 + $0x88] sm:$0xff]
    %v735 = vld [vmem:[%s4 + $0x90] sm:$0xff]
    %v736 = vld [vmem:[%s4 + $0x98] sm:$0xff]
    %v737 = vld [vmem:[%s4 + $0xa0] sm:$0xff]
    %v738 = vld [vmem:[%s4 + $0xa8] sm:$0xff]
    %v739 = vld [vmem:[%s4 + $0xb0] sm:$0xff]
    %v740 = vld [vmem:[%s4 + $0xb8] sm:$0xff]
    %v741 = vld [vmem:[%s4 + $0xc0] sm:$0xff]
    %v742 = vld [vmem:[%s4 + $0xc8] sm:$0xff]
    %v743 = vld [vmem:[%s4 + $0xd0] sm:$0xff]
    %v744 = vld [vmem:[%s4 + $0xd8] sm:$0xff]
    %v745 = vld [vmem:[%s4 + $0xe0] sm:$0xff]
    %v746 = vld [vmem:[%s4 + $0xe8] sm:$0xff]
    %v747 = vld [vmem:[%s4 + $0xf0] sm:$0xff]
    %v748 = vld [vmem:[%s4 + $0xf8] sm:$0xff]
    %v749 = vld [vmem:[%s5] sm:$0xf]
    %v751 = vperm.slane %v749, 0
    %v752 = vperm.slane %v749, 1
    %v753 = vperm.slane %v749, 2
    %v754 = vperm.slane %v749, 3
    %v791 = vunpack.c.l.b16 %v717
    %v792 = vunpack.c.h.b16 %v717
    %v793 = vunpack.c.l.b16 %v718
    %v794 = vunpack.c.h.b16 %v718
    %v795 = vunpack.c.l.b16 %v719
    %v796 = vunpack.c.h.b16 %v719
    %v797 = vunpack.c.l.b16 %v720
    %v798 = vunpack.c.h.b16 %v720
    %v799 = vunpack.c.l.b16 %v721
    %v800 = vunpack.c.h.b16 %v721
    %v801 = vunpack.c.l.b16 %v722
    %v802 = vunpack.c.h.b16 %v722
    %v803 = vunpack.c.l.b16 %v723
    %v804 = vunpack.c.h.b16 %v723
    %v805 = vunpack.c.l.b16 %v724
    %v806 = vunpack.c.h.b16 %v724
    %v807 = vunpack.c.l.b16 %v725
    %v808 = vunpack.c.h.b16 %v725
    %v809 = vunpack.c.l.b16 %v726
    %v810 = vunpack.c.h.b16 %v726
    %v811 = vunpack.c.l.b16 %v727
    %v812 = vunpack.c.h.b16 %v727
    %v813 = vunpack.c.l.b16 %v728
    %v814 = vunpack.c.h.b16 %v728
    %v815 = vunpack.c.l.b16 %v729
    %v816 = vunpack.c.h.b16 %v729
    %v817 = vunpack.c.l.b16 %v730
    %v818 = vunpack.c.h.b16 %v730
    %v819 = vunpack.c.l.b16 %v731
    %v820 = vunpack.c.h.b16 %v731
    %v821 = vunpack.c.l.b16 %v732
    %v822 = vunpack.c.h.b16 %v732
    %v823 = vunpack.c.l.b16 %v733
    %v824 = vunpack.c.h.b16 %v733
    %v825 = vunpack.c.l.b16 %v734
    %v826 = vunpack.c.h.b16 %v734
    %v827 = vunpack.c.l.b16 %v735
    %v828 = vunpack.c.h.b16 %v735
    %v829 = vunpack.c.l.b16 %v736
    %v830 = vunpack.c.h.b16 %v736
    %v831 = vunpack.c.l.b16 %v737
    %v832 = vunpack.c.h.b16 %v737
    %v833 = vunpack.c.l.b16 %v738
    %v834 = vunpack.c.h.b16 %v738
    %v835 = vunpack.c.l.b16 %v739
    %v836 = vunpack.c.h.b16 %v739
    %v837 = vunpack.c.l.b16 %v740
    %v838 = vunpack.c.h.b16 %v740
    %v839 = vunpack.c.l.b16 %v741
    %v840 = vunpack.c.h.b16 %v741
    %v841 = vunpack.c.l.b16 %v742
    %v842 = vunpack.c.h.b16 %v742
    %v843 = vunpack.c.l.b16 %v743
    %v844 = vunpack.c.h.b16 %v743
    %v845 = vunpack.c.l.b16 %v744
    %v846 = vunpack.c.h.b16 %v744
    %v847 = vunpack.c.l.b16 %v745
    %v848 = vunpack.c.h.b16 %v745
    %v849 = vunpack.c.l.b16 %v746
    %v850 = vunpack.c.h.b16 %v746
    %v851 = vunpack.c.l.b16 %v747
    %v852 = vunpack.c.h.b16 %v747
    %v853 = vunpack.c.l.b16 %v748
    %v854 = vunpack.c.h.b16 %v748
    %v855 = vpack.c.b16 %v795, %v791
    %v856 = vpack.c.b16 %v796, %v792
    %v857 = vpack.c.b16 %v797, %v793
    %v858 = vpack.c.b16 %v798, %v794
    %v859 = vpack.c.b16 %v803, %v799
    %v860 = vpack.c.b16 %v804, %v800
    %v861 = vpack.c.b16 %v805, %v801
    %v862 = vpack.c.b16 %v806, %v802
    %v863 = vpack.c.b16 %v811, %v807
    %v864 = vpack.c.b16 %v812, %v808
    %v865 = vpack.c.b16 %v813, %v809
    %v866 = vpack.c.b16 %v814, %v810
    %v867 = vpack.c.b16 %v819, %v815
    %v868 = vpack.c.b16 %v820, %v816
    %v869 = vpack.c.b16 %v821, %v817
    %v870 = vpack.c.b16 %v822, %v818
    %v871 = vpack.c.b16 %v827, %v823
    %v872 = vpack.c.b16 %v828, %v824
    %v873 = vpack.c.b16 %v829, %v825
    %v874 = vpack.c.b16 %v830, %v826
    %v875 = vpack.c.b16 %v835, %v831
    %v876 = vpack.c.b16 %v836, %v832
    %v877 = vpack.c.b16 %v837, %v833
    %v878 = vpack.c.b16 %v838, %v834
    %v879 = vpack.c.b16 %v843, %v839
    %v880 = vpack.c.b16 %v844, %v840
    %v881 = vpack.c.b16 %v845, %v841
    %v882 = vpack.c.b16 %v846, %v842
    %v883 = vpack.c.b16 %v851, %v847
    %v884 = vpack.c.b16 %v852, %v848
    %v885 = vpack.c.b16 %v853, %v849
    %v886 = vpack.c.b16 %v854, %v850
    %919 = vmatpush.bf16.msra.mxu0 %v883
    %920 = vmatpush.bf16.msra.mxu0 %v879
    %921 = vmatpush.bf16.msra.mxu0 %v875
    %922 = vmatpush.bf16.msra.mxu0 %v871
    %923 = vmatpush.bf16.msra.mxu0 %v867
    %924 = vmatpush.bf16.msra.mxu0 %v863
    %925 = vmatpush.bf16.msra.mxu0 %v859
    %926 = vmatpush.bf16.msra.mxu0 %v855
    %927 = vmatmul.bf16.gmra.mxu0 %v701
    %v928 = vpop.f32.mrf.mxu0
    %v929 = vadd.f32 %v751, %v928
    %v930 = vpop.f32.mrf.mxu0
    %v931 = vadd.f32 %v751, %v930
    %932 = vmatmul.bf16.gmra.mxu0 %v702
    %v933 = vpop.f32.mrf.mxu0
    %v934 = vadd.f32 %v751, %v933
    %v935 = vpop.f32.mrf.mxu0
    %v936 = vadd.f32 %v751, %v935
    %937 = vmatmul.bf16.gmra.mxu0 %v703
    %v938 = vpop.f32.mrf.mxu0
    %v939 = vadd.f32 %v751, %v938
    %v940 = vpop.f32.mrf.mxu0
    %v941 = vadd.f32 %v751, %v940
    %942 = vmatmul.bf16.gmra.mxu0 %v704
    %v943 = vpop.f32.mrf.mxu0
    %v944 = vadd.f32 %v751, %v943
    %v945 = vpop.f32.mrf.mxu0
    %v946 = vadd.f32 %v751, %v945
    %947 = vmatmul.bf16.gmra.mxu0 %v705
    %v948 = vpop.f32.mrf.mxu0
    %v949 = vadd.f32 %v751, %v948
    %v950 = vpop.f32.mrf.mxu0
    %v951 = vadd.f32 %v751, %v950
    %952 = vmatmul.bf16.gmra.mxu0 %v706
    %v953 = vpop.f32.mrf.mxu0
    %v954 = vadd.f32 %v751, %v953
    %v955 = vpop.f32.mrf.mxu0
    %v956 = vadd.f32 %v751, %v955
    %957 = vmatmul.bf16.gmra.mxu0 %v707
    %v958 = vpop.f32.mrf.mxu0
    %v959 = vadd.f32 %v751, %v958
    %v960 = vpop.f32.mrf.mxu0
    %v961 = vadd.f32 %v751, %v960
    %962 = vmatmul.bf16.gmra.mxu0 %v708
    %v963 = vpop.f32.mrf.mxu0
    %v964 = vadd.f32 %v751, %v963
    %v965 = vpop.f32.mrf.mxu0
    %v966 = vadd.f32 %v751, %v965
    %967 = vmatmul.bf16.gmra.mxu0 %v709
    %v968 = vpop.f32.mrf.mxu0
    %v969 = vadd.f32 %v751, %v968
    %v970 = vpop.f32.mrf.mxu0
    %v971 = vadd.f32 %v751, %v970
    %972 = vmatmul.bf16.gmra.mxu0 %v710
    %v973 = vpop.f32.mrf.mxu0
    %v974 = vadd.f32 %v751, %v973
    %v975 = vpop.f32.mrf.mxu0
    %v976 = vadd.f32 %v751, %v975
    %977 = vmatmul.bf16.gmra.mxu0 %v711
    %v978 = vpop.f32.mrf.mxu0
    %v979 = vadd.f32 %v751, %v978
    %v980 = vpop.f32.mrf.mxu0
    %v981 = vadd.f32 %v751, %v980
    %982 = vmatmul.bf16.gmra.mxu0 %v712
    %v983 = vpop.f32.mrf.mxu0
    %v984 = vadd.f32 %v751, %v983
    %v985 = vpop.f32.mrf.mxu0
    %v986 = vadd.f32 %v751, %v985
    %987 = vmatmul.bf16.gmra.mxu0 %v713
    %v988 = vpop.f32.mrf.mxu0
    %v989 = vadd.f32 %v751, %v988
    %v990 = vpop.f32.mrf.mxu0
    %v991 = vadd.f32 %v751, %v990
    %992 = vmatmul.bf16.gmra.mxu0 %v714
    %v993 = vpop.f32.mrf.mxu0
    %v994 = vadd.f32 %v751, %v993
    %v995 = vpop.f32.mrf.mxu0
    %v996 = vadd.f32 %v751, %v995
    %997 = vmatmul.bf16.gmra.mxu0 %v715
    %v998 = vpop.f32.mrf.mxu0
    %v999 = vadd.f32 %v751, %v998
    %v1000 = vpop.f32.mrf.mxu0
    %v1001 = vadd.f32 %v751, %v1000
    %1002 = vmatmul.bf16.gmra.mxu0 %v716
    %v1003 = vpop.f32.mrf.mxu0
    %v1004 = vadd.f32 %v751, %v1003
    %v1005 = vpop.f32.mrf.mxu0
    %v1006 = vadd.f32 %v751, %v1005
    %1007 = vdwg.mxu0
    %1008 = vmatpush.bf16.msra.mxu0 %v884
    %1009 = vmatpush.bf16.msra.mxu0 %v880
    %1010 = vmatpush.bf16.msra.mxu0 %v876
    %1011 = vmatpush.bf16.msra.mxu0 %v872
    %1012 = vmatpush.bf16.msra.mxu0 %v868
    %1013 = vmatpush.bf16.msra.mxu0 %v864
    %1014 = vmatpush.bf16.msra.mxu0 %v860
    %1015 = vmatpush.bf16.msra.mxu0 %v856
    %1016 = vmatmul.bf16.gmra.mxu0 %v701
    %v1017 = vpop.f32.mrf.mxu0
    %v1018 = vadd.f32 %v752, %v1017
    %v1019 = vpop.f32.mrf.mxu0
    %v1020 = vadd.f32 %v752, %v1019
    %1021 = vmatmul.bf16.gmra.mxu0 %v702
    %v1022 = vpop.f32.mrf.mxu0
    %v1023 = vadd.f32 %v752, %v1022
    %v1024 = vpop.f32.mrf.mxu0
    %v1025 = vadd.f32 %v752, %v1024
    %1026 = vmatmul.bf16.gmra.mxu0 %v703
    %v1027 = vpop.f32.mrf.mxu0
    %v1028 = vadd.f32 %v752, %v1027
    %v1029 = vpop.f32.mrf.mxu0
    %v1030 = vadd.f32 %v752, %v1029
    %1031 = vmatmul.bf16.gmra.mxu0 %v704
    %v1032 = vpop.f32.mrf.mxu0
    %v1033 = vadd.f32 %v752, %v1032
    %v1034 = vpop.f32.mrf.mxu0
    %v1035 = vadd.f32 %v752, %v1034
    %1036 = vmatmul.bf16.gmra.mxu0 %v705
    %v1037 = vpop.f32.mrf.mxu0
    %v1038 = vadd.f32 %v752, %v1037
    %v1039 = vpop.f32.mrf.mxu0
    %v1040 = vadd.f32 %v752, %v1039
    %1041 = vmatmul.bf16.gmra.mxu0 %v706
    %v1042 = vpop.f32.mrf.mxu0
    %v1043 = vadd.f32 %v752, %v1042
    %v1044 = vpop.f32.mrf.mxu0
    %v1045 = vadd.f32 %v752, %v1044
    %1046 = vmatmul.bf16.gmra.mxu0 %v707
    %v1047 = vpop.f32.mrf.mxu0
    %v1048 = vadd.f32 %v752, %v1047
    %v1049 = vpop.f32.mrf.mxu0
    %v1050 = vadd.f32 %v752, %v1049
    %1051 = vmatmul.bf16.gmra.mxu0 %v708
    %v1052 = vpop.f32.mrf.mxu0
    %v1053 = vadd.f32 %v752, %v1052
    %v1054 = vpop.f32.mrf.mxu0
    %v1055 = vadd.f32 %v752, %v1054
    %1056 = vmatmul.bf16.gmra.mxu0 %v709
    %v1057 = vpop.f32.mrf.mxu0
    %v1058 = vadd.f32 %v752, %v1057
    %v1059 = vpop.f32.mrf.mxu0
    %v1060 = vadd.f32 %v752, %v1059
    %1061 = vmatmul.bf16.gmra.mxu0 %v710
    %v1062 = vpop.f32.mrf.mxu0
    %v1063 = vadd.f32 %v752, %v1062
    %v1064 = vpop.f32.mrf.mxu0
    %v1065 = vadd.f32 %v752, %v1064
    %1066 = vmatmul.bf16.gmra.mxu0 %v711
    %v1067 = vpop.f32.mrf.mxu0
    %v1068 = vadd.f32 %v752, %v1067
    %v1069 = vpop.f32.mrf.mxu0
    %v1070 = vadd.f32 %v752, %v1069
    %1071 = vmatmul.bf16.gmra.mxu0 %v712
    %v1072 = vpop.f32.mrf.mxu0
    %v1073 = vadd.f32 %v752, %v1072
    %v1074 = vpop.f32.mrf.mxu0
    %v1075 = vadd.f32 %v752, %v1074
    %1076 = vmatmul.bf16.gmra.mxu0 %v713
    %v1077 = vpop.f32.mrf.mxu0
    %v1078 = vadd.f32 %v752, %v1077
    %v1079 = vpop.f32.mrf.mxu0
    %v1080 = vadd.f32 %v752, %v1079
    %1081 = vmatmul.bf16.gmra.mxu0 %v714
    %v1082 = vpop.f32.mrf.mxu0
    %v1083 = vadd.f32 %v752, %v1082
    %v1084 = vpop.f32.mrf.mxu0
    %v1085 = vadd.f32 %v752, %v1084
    %1086 = vmatmul.bf16.gmra.mxu0 %v715
    %v1087 = vpop.f32.mrf.mxu0
    %v1088 = vadd.f32 %v752, %v1087
    %v1089 = vpop.f32.mrf.mxu0
    %v1090 = vadd.f32 %v752, %v1089
    %1091 = vmatmul.bf16.gmra.mxu0 %v716
    %v1092 = vpop.f32.mrf.mxu0
    %v1093 = vadd.f32 %v752, %v1092
    %v1094 = vpop.f32.mrf.mxu0
    %v1095 = vadd.f32 %v752, %v1094
    %1096 = vdwg.mxu0
    %1097 = vmatpush.bf16.msra.mxu0 %v885
    %1098 = vmatpush.bf16.msra.mxu0 %v881
    %1099 = vmatpush.bf16.msra.mxu0 %v877
    %1100 = vmatpush.bf16.msra.mxu0 %v873
    %1101 = vmatpush.bf16.msra.mxu0 %v869
    %1102 = vmatpush.bf16.msra.mxu0 %v865
    %1103 = vmatpush.bf16.msra.mxu0 %v861
    %1104 = vmatpush.bf16.msra.mxu0 %v857
    %1105 = vmatmul.bf16.gmra.mxu0 %v701
    %v1106 = vpop.f32.mrf.mxu0
    %v1107 = vadd.f32 %v753, %v1106
    %v1108 = vpop.f32.mrf.mxu0
    %v1109 = vadd.f32 %v753, %v1108
    %1110 = vmatmul.bf16.gmra.mxu0 %v702
    %v1111 = vpop.f32.mrf.mxu0
    %v1112 = vadd.f32 %v753, %v1111
    %v1113 = vpop.f32.mrf.mxu0
    %v1114 = vadd.f32 %v753, %v1113
    %1115 = vmatmul.bf16.gmra.mxu0 %v703
    %v1116 = vpop.f32.mrf.mxu0
    %v1117 = vadd.f32 %v753, %v1116
    %v1118 = vpop.f32.mrf.mxu0
    %v1119 = vadd.f32 %v753, %v1118
    %1120 = vmatmul.bf16.gmra.mxu0 %v704
    %v1121 = vpop.f32.mrf.mxu0
    %v1122 = vadd.f32 %v753, %v1121
    %v1123 = vpop.f32.mrf.mxu0
    %v1124 = vadd.f32 %v753, %v1123
    %1125 = vmatmul.bf16.gmra.mxu0 %v705
    %v1126 = vpop.f32.mrf.mxu0
    %v1127 = vadd.f32 %v753, %v1126
    %v1128 = vpop.f32.mrf.mxu0
    %v1129 = vadd.f32 %v753, %v1128
    %1130 = vmatmul.bf16.gmra.mxu0 %v706
    %v1131 = vpop.f32.mrf.mxu0
    %v1132 = vadd.f32 %v753, %v1131
    %v1133 = vpop.f32.mrf.mxu0
    %v1134 = vadd.f32 %v753, %v1133
    %1135 = vmatmul.bf16.gmra.mxu0 %v707
    %v1136 = vpop.f32.mrf.mxu0
    %v1137 = vadd.f32 %v753, %v1136
    %v1138 = vpop.f32.mrf.mxu0
    %v1139 = vadd.f32 %v753, %v1138
    %1140 = vmatmul.bf16.gmra.mxu0 %v708
    %v1141 = vpop.f32.mrf.mxu0
    %v1142 = vadd.f32 %v753, %v1141
    %v1143 = vpop.f32.mrf.mxu0
    %v1144 = vadd.f32 %v753, %v1143
    %1145 = vmatmul.bf16.gmra.mxu0 %v709
    %v1146 = vpop.f32.mrf.mxu0
    %v1147 = vadd.f32 %v753, %v1146
    %v1148 = vpop.f32.mrf.mxu0
    %v1149 = vadd.f32 %v753, %v1148
    %1150 = vmatmul.bf16.gmra.mxu0 %v710
    %v1151 = vpop.f32.mrf.mxu0
    %v1152 = vadd.f32 %v753, %v1151
    %v1153 = vpop.f32.mrf.mxu0
    %v1154 = vadd.f32 %v753, %v1153
    %1155 = vmatmul.bf16.gmra.mxu0 %v711
    %v1156 = vpop.f32.mrf.mxu0
    %v1157 = vadd.f32 %v753, %v1156
    %v1158 = vpop.f32.mrf.mxu0
    %v1159 = vadd.f32 %v753, %v1158
    %1160 = vmatmul.bf16.gmra.mxu0 %v712
    %v1161 = vpop.f32.mrf.mxu0
    %v1162 = vadd.f32 %v753, %v1161
    %v1163 = vpop.f32.mrf.mxu0
    %v1164 = vadd.f32 %v753, %v1163
    %1165 = vmatmul.bf16.gmra.mxu0 %v713
    %v1166 = vpop.f32.mrf.mxu0
    %v1167 = vadd.f32 %v753, %v1166
    %v1168 = vpop.f32.mrf.mxu0
    %v1169 = vadd.f32 %v753, %v1168
    %1170 = vmatmul.bf16.gmra.mxu0 %v714
    %v1171 = vpop.f32.mrf.mxu0
    %v1172 = vadd.f32 %v753, %v1171
    %v1173 = vpop.f32.mrf.mxu0
    %v1174 = vadd.f32 %v753, %v1173
    %1175 = vmatmul.bf16.gmra.mxu0 %v715
    %v1176 = vpop.f32.mrf.mxu0
    %v1177 = vadd.f32 %v753, %v1176
    %v1178 = vpop.f32.mrf.mxu0
    %v1179 = vadd.f32 %v753, %v1178
    %1180 = vmatmul.bf16.gmra.mxu0 %v716
    %v1181 = vpop.f32.mrf.mxu0
    %v1182 = vadd.f32 %v753, %v1181
    %v1183 = vpop.f32.mrf.mxu0
    %v1184 = vadd.f32 %v753, %v1183
    %1185 = vdwg.mxu0
    %1186 = vmatpush.bf16.msra.mxu0 %v886
    %1187 = vmatpush.bf16.msra.mxu0 %v882
    %1188 = vmatpush.bf16.msra.mxu0 %v878
    %1189 = vmatpush.bf16.msra.mxu0 %v874
    %1190 = vmatpush.bf16.msra.mxu0 %v870
    %1191 = vmatpush.bf16.msra.mxu0 %v866
    %1192 = vmatpush.bf16.msra.mxu0 %v862
    %1193 = vmatpush.bf16.msra.mxu0 %v858
    %1194 = vmatmul.bf16.gmra.mxu0 %v701
    %v1195 = vpop.f32.mrf.mxu0
    %v1196 = vadd.f32 %v754, %v1195
    %v1197 = vpop.f32.mrf.mxu0
    %v1198 = vadd.f32 %v754, %v1197
    %1199 = vmatmul.bf16.gmra.mxu0 %v702
    %v1200 = vpop.f32.mrf.mxu0
    %v1201 = vadd.f32 %v754, %v1200
    %v1202 = vpop.f32.mrf.mxu0
    %v1203 = vadd.f32 %v754, %v1202
    %1204 = vmatmul.bf16.gmra.mxu0 %v703
    %v1205 = vpop.f32.mrf.mxu0
    %v1206 = vadd.f32 %v754, %v1205
    %v1207 = vpop.f32.mrf.mxu0
    %v1208 = vadd.f32 %v754, %v1207
    %1209 = vmatmul.bf16.gmra.mxu0 %v704
    %v1210 = vpop.f32.mrf.mxu0
    %v1211 = vadd.f32 %v754, %v1210
    %v1212 = vpop.f32.mrf.mxu0
    %v1213 = vadd.f32 %v754, %v1212
    %1214 = vmatmul.bf16.gmra.mxu0 %v705
    %v1215 = vpop.f32.mrf.mxu0
    %v1216 = vadd.f32 %v754, %v1215
    %v1217 = vpop.f32.mrf.mxu0
    %v1218 = vadd.f32 %v754, %v1217
    %1219 = vmatmul.bf16.gmra.mxu0 %v706
    %v1220 = vpop.f32.mrf.mxu0
    %v1221 = vadd.f32 %v754, %v1220
    %v1222 = vpop.f32.mrf.mxu0
    %v1223 = vadd.f32 %v754, %v1222
    %1224 = vmatmul.bf16.gmra.mxu0 %v707
    %v1225 = vpop.f32.mrf.mxu0
    %v1226 = vadd.f32 %v754, %v1225
    %v1227 = vpop.f32.mrf.mxu0
    %v1228 = vadd.f32 %v754, %v1227
    %1229 = vmatmul.bf16.gmra.mxu0 %v708
    %v1230 = vpop.f32.mrf.mxu0
    %v1231 = vadd.f32 %v754, %v1230
    %v1232 = vpop.f32.mrf.mxu0
    %v1233 = vadd.f32 %v754, %v1232
    %1234 = vmatmul.bf16.gmra.mxu0 %v709
    %v1235 = vpop.f32.mrf.mxu0
    %v1236 = vadd.f32 %v754, %v1235
    %v1237 = vpop.f32.mrf.mxu0
    %v1238 = vadd.f32 %v754, %v1237
    %1239 = vmatmul.bf16.gmra.mxu0 %v710
    %v1240 = vpop.f32.mrf.mxu0
    %v1241 = vadd.f32 %v754, %v1240
    %v1242 = vpop.f32.mrf.mxu0
    %v1243 = vadd.f32 %v754, %v1242
    %1244 = vmatmul.bf16.gmra.mxu0 %v711
    %v1245 = vpop.f32.mrf.mxu0
    %v1246 = vadd.f32 %v754, %v1245
    %v1247 = vpop.f32.mrf.mxu0
    %v1248 = vadd.f32 %v754, %v1247
    %1249 = vmatmul.bf16.gmra.mxu0 %v712
    %v1250 = vpop.f32.mrf.mxu0
    %v1251 = vadd.f32 %v754, %v1250
    %v1252 = vpop.f32.mrf.mxu0
    %v1253 = vadd.f32 %v754, %v1252
    %1254 = vmatmul.bf16.gmra.mxu0 %v713
    %v1255 = vpop.f32.mrf.mxu0
    %v1256 = vadd.f32 %v754, %v1255
    %v1257 = vpop.f32.mrf.mxu0
    %v1258 = vadd.f32 %v754, %v1257
    %1259 = vmatmul.bf16.gmra.mxu0 %v714
    %v1260 = vpop.f32.mrf.mxu0
    %v1261 = vadd.f32 %v754, %v1260
    %v1262 = vpop.f32.mrf.mxu0
    %v1263 = vadd.f32 %v754, %v1262
    %1264 = vmatmul.bf16.gmra.mxu0 %v715
    %v1265 = vpop.f32.mrf.mxu0
    %v1266 = vadd.f32 %v754, %v1265
    %v1267 = vpop.f32.mrf.mxu0
    %v1268 = vadd.f32 %v754, %v1267
    %1269 = vmatmul.bf16.gmra.mxu0 %v716
    %v1270 = vpop.f32.mrf.mxu0
    %v1271 = vadd.f32 %v754, %v1270
    %v1272 = vpop.f32.mrf.mxu0
    %v1273 = vadd.f32 %v754, %v1272
    %1274 = vdwg.mxu0
    %v1275 = vmax.f32 %v929, 0.0
    %v1276 = vmax.f32 %v1018, 0.0
    %v1277 = vmax.f32 %v1107, 0.0
    %v1278 = vmax.f32 %v1196, 0.0
    %v1279 = vmax.f32 %v931, 0.0
    %v1280 = vmax.f32 %v1020, 0.0
    %v1281 = vmax.f32 %v1109, 0.0
    %v1282 = vmax.f32 %v1198, 0.0
    %v1283 = vmax.f32 %v934, 0.0
    %v1284 = vmax.f32 %v1023, 0.0
    %v1285 = vmax.f32 %v1112, 0.0
    %v1286 = vmax.f32 %v1201, 0.0
    %v1287 = vmax.f32 %v936, 0.0
    %v1288 = vmax.f32 %v1025, 0.0
    %v1289 = vmax.f32 %v1114, 0.0
    %v1290 = vmax.f32 %v1203, 0.0
    %v1291 = vmax.f32 %v939, 0.0
    %v1292 = vmax.f32 %v1028, 0.0
    %v1293 = vmax.f32 %v1117, 0.0
    %v1294 = vmax.f32 %v1206, 0.0
    %v1295 = vmax.f32 %v941, 0.0
    %v1296 = vmax.f32 %v1030, 0.0
    %v1297 = vmax.f32 %v1119, 0.0
    %v1298 = vmax.f32 %v1208, 0.0
    %v1299 = vmax.f32 %v944, 0.0
    %v1300 = vmax.f32 %v1033, 0.0
    %v1301 = vmax.f32 %v1122, 0.0
    %v1302 = vmax.f32 %v1211, 0.0
    %v1303 = vmax.f32 %v946, 0.0
    %v1304 = vmax.f32 %v1035, 0.0
    %v1305 = vmax.f32 %v1124, 0.0
    %v1306 = vmax.f32 %v1213, 0.0
    %v1307 = vmax.f32 %v949, 0.0
    %v1308 = vmax.f32 %v1038, 0.0
    %v1309 = vmax.f32 %v1127, 0.0
    %v1310 = vmax.f32 %v1216, 0.0
    %v1311 = vmax.f32 %v951, 0.0
    %v1312 = vmax.f32 %v1040, 0.0
    %v1313 = vmax.f32 %v1129, 0.0
    %v1314 = vmax.f32 %v1218, 0.0
    %v1315 = vmax.f32 %v954, 0.0
    %v1316 = vmax.f32 %v1043, 0.0
    %v1317 = vmax.f32 %v1132, 0.0
    %v1318 = vmax.f32 %v1221, 0.0
    %v1319 = vmax.f32 %v956, 0.0
    %v1320 = vmax.f32 %v1045, 0.0
    %v1321 = vmax.f32 %v1134, 0.0
    %v1322 = vmax.f32 %v1223, 0.0
    %v1323 = vmax.f32 %v959, 0.0
    %v1324 = vmax.f32 %v1048, 0.0
    %v1325 = vmax.f32 %v1137, 0.0
    %v1326 = vmax.f32 %v1226, 0.0
    %v1327 = vmax.f32 %v961, 0.0
    %v1328 = vmax.f32 %v1050, 0.0
    %v1329 = vmax.f32 %v1139, 0.0
    %v1330 = vmax.f32 %v1228, 0.0
    %v1331 = vmax.f32 %v964, 0.0
    %v1332 = vmax.f32 %v1053, 0.0
    %v1333 = vmax.f32 %v1142, 0.0
    %v1334 = vmax.f32 %v1231, 0.0
    %v1335 = vmax.f32 %v966, 0.0
    %v1336 = vmax.f32 %v1055, 0.0
    %v1337 = vmax.f32 %v1144, 0.0
    %v1338 = vmax.f32 %v1233, 0.0
    %v1339 = vmax.f32 %v969, 0.0
    %v1340 = vmax.f32 %v1058, 0.0
    %v1341 = vmax.f32 %v1147, 0.0
    %v1342 = vmax.f32 %v1236, 0.0
    %v1343 = vmax.f32 %v971, 0.0
    %v1344 = vmax.f32 %v1060, 0.0
    %v1345 = vmax.f32 %v1149, 0.0
    %v1346 = vmax.f32 %v1238, 0.0
    %v1347 = vmax.f32 %v974, 0.0
    %v1348 = vmax.f32 %v1063, 0.0
    %v1349 = vmax.f32 %v1152, 0.0
    %v1350 = vmax.f32 %v1241, 0.0
    %v1351 = vmax.f32 %v976, 0.0
    %v1352 = vmax.f32 %v1065, 0.0
    %v1353 = vmax.f32 %v1154, 0.0
    %v1354 = vmax.f32 %v1243, 0.0
    %v1355 = vmax.f32 %v979, 0.0
    %v1356 = vmax.f32 %v1068, 0.0
    %v1357 = vmax.f32 %v1157, 0.0
    %v1358 = vmax.f32 %v1246, 0.0
    %v1359 = vmax.f32 %v981, 0.0
    %v1360 = vmax.f32 %v1070, 0.0
    %v1361 = vmax.f32 %v1159, 0.0
    %v1362 = vmax.f32 %v1248, 0.0
    %v1363 = vmax.f32 %v984, 0.0
    %v1364 = vmax.f32 %v1073, 0.0
    %v1365 = vmax.f32 %v1162, 0.0
    %v1366 = vmax.f32 %v1251, 0.0
    %v1367 = vmax.f32 %v986, 0.0
    %v1368 = vmax.f32 %v1075, 0.0
    %v1369 = vmax.f32 %v1164, 0.0
    %v1370 = vmax.f32 %v1253, 0.0
    %v1371 = vmax.f32 %v989, 0.0
    %v1372 = vmax.f32 %v1078, 0.0
    %v1373 = vmax.f32 %v1167, 0.0
    %v1374 = vmax.f32 %v1256, 0.0
    %v1375 = vmax.f32 %v991, 0.0
    %v1376 = vmax.f32 %v1080, 0.0
    %v1377 = vmax.f32 %v1169, 0.0
    %v1378 = vmax.f32 %v1258, 0.0
    %v1379 = vmax.f32 %v994, 0.0
    %v1380 = vmax.f32 %v1083, 0.0
    %v1381 = vmax.f32 %v1172, 0.0
    %v1382 = vmax.f32 %v1261, 0.0
    %v1383 = vmax.f32 %v996, 0.0
    %v1384 = vmax.f32 %v1085, 0.0
    %v1385 = vmax.f32 %v1174, 0.0
    %v1386 = vmax.f32 %v1263, 0.0
    %v1387 = vmax.f32 %v999, 0.0
    %v1388 = vmax.f32 %v1088, 0.0
    %v1389 = vmax.f32 %v1177, 0.0
    %v1390 = vmax.f32 %v1266, 0.0
    %v1391 = vmax.f32 %v1001, 0.0
    %v1392 = vmax.f32 %v1090, 0.0
    %v1393 = vmax.f32 %v1179, 0.0
    %v1394 = vmax.f32 %v1268, 0.0
    %v1395 = vmax.f32 %v1004, 0.0
    %v1396 = vmax.f32 %v1093, 0.0
    %v1397 = vmax.f32 %v1182, 0.0
    %v1398 = vmax.f32 %v1271, 0.0
    %v1399 = vmax.f32 %v1006, 0.0
    %v1400 = vmax.f32 %v1095, 0.0
    %v1401 = vmax.f32 %v1184, 0.0
    %v1402 = vmax.f32 %v1273, 0.0
    %v1403 = vpack.c.bf16 %v1279, %v1275
    %v1404 = vpack.c.bf16 %v1280, %v1276
    %v1405 = vpack.c.bf16 %v1281, %v1277
    %v1406 = vpack.c.bf16 %v1282, %v1278
    %v1407 = vpack.c.bf16 %v1287, %v1283
    %v1408 = vpack.c.bf16 %v1288, %v1284
    %v1409 = vpack.c.bf16 %v1289, %v1285
    %v1410 = vpack.c.bf16 %v1290, %v1286
    %v1411 = vpack.c.bf16 %v1295, %v1291
    %v1412 = vpack.c.bf16 %v1296, %v1292
    %v1413 = vpack.c.bf16 %v1297, %v1293
    %v1414 = vpack.c.bf16 %v1298, %v1294
    %v1415 = vpack.c.bf16 %v1303, %v1299
    %v1416 = vpack.c.bf16 %v1304, %v1300
    %v1417 = vpack.c.bf16 %v1305, %v1301
    %v1418 = vpack.c.bf16 %v1306, %v1302
    %v1419 = vpack.c.bf16 %v1311, %v1307
    %v1420 = vpack.c.bf16 %v1312, %v1308
    %v1421 = vpack.c.bf16 %v1313, %v1309
    %v1422 = vpack.c.bf16 %v1314, %v1310
    %v1423 = vpack.c.bf16 %v1319, %v1315
    %v1424 = vpack.c.bf16 %v1320, %v1316
    %v1425 = vpack.c.bf16 %v1321, %v1317
    %v1426 = vpack.c.bf16 %v1322, %v1318
    %v1427 = vpack.c.bf16 %v1327, %v1323
    %v1428 = vpack.c.bf16 %v1328, %v1324
    %v1429 = vpack.c.bf16 %v1329, %v1325
    %v1430 = vpack.c.bf16 %v1330, %v1326
    %v1431 = vpack.c.bf16 %v1335, %v1331
    %v1432 = vpack.c.bf16 %v1336, %v1332
    %v1433 = vpack.c.bf16 %v1337, %v1333
    %v1434 = vpack.c.bf16 %v1338, %v1334
    %v1435 = vpack.c.bf16 %v1343, %v1339
    %v1436 = vpack.c.bf16 %v1344, %v1340
    %v1437 = vpack.c.bf16 %v1345, %v1341
    %v1438 = vpack.c.bf16 %v1346, %v1342
    %v1439 = vpack.c.bf16 %v1351, %v1347
    %v1440 = vpack.c.bf16 %v1352, %v1348
    %v1441 = vpack.c.bf16 %v1353, %v1349
    %v1442 = vpack.c.bf16 %v1354, %v1350
    %v1443 = vpack.c.bf16 %v1359, %v1355
    %v1444 = vpack.c.bf16 %v1360, %v1356
    %v1445 = vpack.c.bf16 %v1361, %v1357
    %v1446 = vpack.c.bf16 %v1362, %v1358
    %v1447 = vpack.c.bf16 %v1367, %v1363
    %v1448 = vpack.c.bf16 %v1368, %v1364
    %v1449 = vpack.c.bf16 %v1369, %v1365
    %v1450 = vpack.c.bf16 %v1370, %v1366
    %v1451 = vpack.c.bf16 %v1375, %v1371
    %v1452 = vpack.c.bf16 %v1376, %v1372
    %v1453 = vpack.c.bf16 %v1377, %v1373
    %v1454 = vpack.c.bf16 %v1378, %v1374
    %v1455 = vpack.c.bf16 %v1383, %v1379
    %v1456 = vpack.c.bf16 %v1384, %v1380
    %v1457 = vpack.c.bf16 %v1385, %v1381
    %v1458 = vpack.c.bf16 %v1386, %v1382
    %v1459 = vpack.c.bf16 %v1391, %v1387
    %v1460 = vpack.c.bf16 %v1392, %v1388
    %v1461 = vpack.c.bf16 %v1393, %v1389
    %v1462 = vpack.c.bf16 %v1394, %v1390
    %v1463 = vpack.c.bf16 %v1399, %v1395
    %v1464 = vpack.c.bf16 %v1400, %v1396
    %v1465 = vpack.c.bf16 %v1401, %v1397
    %v1466 = vpack.c.bf16 %v1402, %v1398
    %v1467 = vld [vmem:[#allocation2] sm:$0xf]
    %v1468 = vld [vmem:[#allocation2 + $0x4] sm:$0xf]
    %v1469 = vld [vmem:[#allocation2 + $0x8] sm:$0xf]
    %v1470 = vld [vmem:[#allocation2 + $0xc] sm:$0xf]
    %v1471 = vld [vmem:[#allocation2 + $0x10] sm:$0xf]
    %v1472 = vld [vmem:[#allocation2 + $0x14] sm:$0xf]
    %v1473 = vld [vmem:[#allocation2 + $0x18] sm:$0xf]
    %v1474 = vld [vmem:[#allocation2 + $0x1c] sm:$0xf]
    %v1475 = vld [vmem:[#allocation2 + $0x20] sm:$0xf]
    %v1476 = vld [vmem:[#allocation2 + $0x24] sm:$0xf]
    %v1477 = vld [vmem:[#allocation2 + $0x28] sm:$0xf]
    %v1478 = vld [vmem:[#allocation2 + $0x2c] sm:$0xf]
    %v1479 = vld [vmem:[#allocation2 + $0x30] sm:$0xf]
    %v1480 = vld [vmem:[#allocation2 + $0x34] sm:$0xf]
    %v1481 = vld [vmem:[#allocation2 + $0x38] sm:$0xf]
    %v1482 = vld [vmem:[#allocation2 + $0x3c] sm:$0xf]
    %v1483 = vld [vmem:[#allocation2 + $0x40] sm:$0xf]
    %v1484 = vld [vmem:[#allocation2 + $0x44] sm:$0xf]
    %v1485 = vld [vmem:[#allocation2 + $0x48] sm:$0xf]
    %v1486 = vld [vmem:[#allocation2 + $0x4c] sm:$0xf]
    %v1487 = vld [vmem:[#allocation2 + $0x50] sm:$0xf]
    %v1488 = vld [vmem:[#allocation2 + $0x54] sm:$0xf]
    %v1489 = vld [vmem:[#allocation2 + $0x58] sm:$0xf]
    %v1490 = vld [vmem:[#allocation2 + $0x5c] sm:$0xf]
    %v1491 = vld [vmem:[#allocation2 + $0x60] sm:$0xf]
    %v1492 = vld [vmem:[#allocation2 + $0x64] sm:$0xf]
    %v1493 = vld [vmem:[#allocation2 + $0x68] sm:$0xf]
    %v1494 = vld [vmem:[#allocation2 + $0x6c] sm:$0xf]
    %v1495 = vld [vmem:[#allocation2 + $0x70] sm:$0xf]
    %v1496 = vld [vmem:[#allocation2 + $0x74] sm:$0xf]
    %v1497 = vld [vmem:[#allocation2 + $0x78] sm:$0xf]
    %v1498 = vld [vmem:[#allocation2 + $0x7c] sm:$0xf]
    %v1499 = vld [vmem:[#allocation2 + $0x80] sm:$0xf]
    %v1500 = vld [vmem:[#allocation2 + $0x84] sm:$0xf]
    %v1501 = vld [vmem:[#allocation2 + $0x88] sm:$0xf]
    %v1502 = vld [vmem:[#allocation2 + $0x8c] sm:$0xf]
    %v1503 = vld [vmem:[#allocation2 + $0x90] sm:$0xf]
    %v1504 = vld [vmem:[#allocation2 + $0x94] sm:$0xf]
    %v1505 = vld [vmem:[#allocation2 + $0x98] sm:$0xf]
    %v1506 = vld [vmem:[#allocation2 + $0x9c] sm:$0xf]
    %v1507 = vld [vmem:[#allocation2 + $0xa0] sm:$0xf]
    %v1508 = vld [vmem:[#allocation2 + $0xa4] sm:$0xf]
    %v1509 = vld [vmem:[#allocation2 + $0xa8] sm:$0xf]
    %v1510 = vld [vmem:[#allocation2 + $0xac] sm:$0xf]
    %v1511 = vld [vmem:[#allocation2 + $0xb0] sm:$0xf]
    %v1512 = vld [vmem:[#allocation2 + $0xb4] sm:$0xf]
    %v1513 = vld [vmem:[#allocation2 + $0xb8] sm:$0xf]
    %v1514 = vld [vmem:[#allocation2 + $0xbc] sm:$0xf]
    %v1515 = vld [vmem:[#allocation2 + $0xc0] sm:$0xf]
    %v1516 = vld [vmem:[#allocation2 + $0xc4] sm:$0xf]
    %v1517 = vld [vmem:[#allocation2 + $0xc8] sm:$0xf]
    %v1518 = vld [vmem:[#allocation2 + $0xcc] sm:$0xf]
    %v1519 = vld [vmem:[#allocation2 + $0xd0] sm:$0xf]
    %v1520 = vld [vmem:[#allocation2 + $0xd4] sm:$0xf]
    %v1521 = vld [vmem:[#allocation2 + $0xd8] sm:$0xf]
    %v1522 = vld [vmem:[#allocation2 + $0xdc] sm:$0xf]
    %v1523 = vld [vmem:[#allocation2 + $0xe0] sm:$0xf]
    %v1524 = vld [vmem:[#allocation2 + $0xe4] sm:$0xf]
    %v1525 = vld [vmem:[#allocation2 + $0xe8] sm:$0xf]
    %v1526 = vld [vmem:[#allocation2 + $0xec] sm:$0xf]
    %v1527 = vld [vmem:[#allocation2 + $0xf0] sm:$0xf]
    %v1528 = vld [vmem:[#allocation2 + $0xf4] sm:$0xf]
    %v1529 = vld [vmem:[#allocation2 + $0xf8] sm:$0xf]
    %v1530 = vld [vmem:[#allocation2 + $0xfc] sm:$0xf]
    %v1595 = vunpack.c.l.b16 %v1467
    %v1596 = vunpack.c.l.b16 %v1468
    %v1597 = vunpack.c.l.b16 %v1469
    %v1598 = vunpack.c.l.b16 %v1470
    %v1599 = vunpack.c.l.b16 %v1471
    %v1600 = vunpack.c.l.b16 %v1472
    %v1601 = vunpack.c.l.b16 %v1473
    %v1602 = vunpack.c.l.b16 %v1474
    %v1603 = vunpack.c.l.b16 %v1475
    %v1604 = vunpack.c.l.b16 %v1476
    %v1605 = vunpack.c.l.b16 %v1477
    %v1606 = vunpack.c.l.b16 %v1478
    %v1607 = vunpack.c.l.b16 %v1479
    %v1608 = vunpack.c.l.b16 %v1480
    %v1609 = vunpack.c.l.b16 %v1481
    %v1610 = vunpack.c.l.b16 %v1482
    %v1611 = vunpack.c.l.b16 %v1483
    %v1612 = vunpack.c.l.b16 %v1484
    %v1613 = vunpack.c.l.b16 %v1485
    %v1614 = vunpack.c.l.b16 %v1486
    %v1615 = vunpack.c.l.b16 %v1487
    %v1616 = vunpack.c.l.b16 %v1488
    %v1617 = vunpack.c.l.b16 %v1489
    %v1618 = vunpack.c.l.b16 %v1490
    %v1619 = vunpack.c.l.b16 %v1491
    %v1620 = vunpack.c.l.b16 %v1492
    %v1621 = vunpack.c.l.b16 %v1493
    %v1622 = vunpack.c.l.b16 %v1494
    %v1623 = vunpack.c.l.b16 %v1495
    %v1624 = vunpack.c.l.b16 %v1496
    %v1625 = vunpack.c.l.b16 %v1497
    %v1626 = vunpack.c.l.b16 %v1498
    %v1627 = vunpack.c.l.b16 %v1499
    %v1628 = vunpack.c.l.b16 %v1500
    %v1629 = vunpack.c.l.b16 %v1501
    %v1630 = vunpack.c.l.b16 %v1502
    %v1631 = vunpack.c.l.b16 %v1503
    %v1632 = vunpack.c.l.b16 %v1504
    %v1633 = vunpack.c.l.b16 %v1505
    %v1634 = vunpack.c.l.b16 %v1506
    %v1635 = vunpack.c.l.b16 %v1507
    %v1636 = vunpack.c.l.b16 %v1508
    %v1637 = vunpack.c.l.b16 %v1509
    %v1638 = vunpack.c.l.b16 %v1510
    %v1639 = vunpack.c.l.b16 %v1511
    %v1640 = vunpack.c.l.b16 %v1512
    %v1641 = vunpack.c.l.b16 %v1513
    %v1642 = vunpack.c.l.b16 %v1514
    %v1643 = vunpack.c.l.b16 %v1515
    %v1644 = vunpack.c.l.b16 %v1516
    %v1645 = vunpack.c.l.b16 %v1517
    %v1646 = vunpack.c.l.b16 %v1518
    %v1647 = vunpack.c.l.b16 %v1519
    %v1648 = vunpack.c.l.b16 %v1520
    %v1649 = vunpack.c.l.b16 %v1521
    %v1650 = vunpack.c.l.b16 %v1522
    %v1651 = vunpack.c.l.b16 %v1523
    %v1652 = vunpack.c.l.b16 %v1524
    %v1653 = vunpack.c.l.b16 %v1525
    %v1654 = vunpack.c.l.b16 %v1526
    %v1655 = vunpack.c.l.b16 %v1527
    %v1656 = vunpack.c.l.b16 %v1528
    %v1657 = vunpack.c.l.b16 %v1529
    %v1658 = vunpack.c.l.b16 %v1530
    %v1659 = vpack.c.b16 %v1596, %v1595
    %v1660 = vpack.c.b16 %v1598, %v1597
    %v1661 = vpack.c.b16 %v1600, %v1599
    %v1662 = vpack.c.b16 %v1602, %v1601
    %v1663 = vpack.c.b16 %v1604, %v1603
    %v1664 = vpack.c.b16 %v1606, %v1605
    %v1665 = vpack.c.b16 %v1608, %v1607
    %v1666 = vpack.c.b16 %v1610, %v1609
    %v1667 = vpack.c.b16 %v1612, %v1611
    %v1668 = vpack.c.b16 %v1614, %v1613
    %v1669 = vpack.c.b16 %v1616, %v1615
    %v1670 = vpack.c.b16 %v1618, %v1617
    %v1671 = vpack.c.b16 %v1620, %v1619
    %v1672 = vpack.c.b16 %v1622, %v1621
    %v1673 = vpack.c.b16 %v1624, %v1623
    %v1674 = vpack.c.b16 %v1626, %v1625
    %v1675 = vpack.c.b16 %v1628, %v1627
    %v1676 = vpack.c.b16 %v1630, %v1629
    %v1677 = vpack.c.b16 %v1632, %v1631
    %v1678 = vpack.c.b16 %v1634, %v1633
    %v1679 = vpack.c.b16 %v1636, %v1635
    %v1680 = vpack.c.b16 %v1638, %v1637
    %v1681 = vpack.c.b16 %v1640, %v1639
    %v1682 = vpack.c.b16 %v1642, %v1641
    %v1683 = vpack.c.b16 %v1644, %v1643
    %v1684 = vpack.c.b16 %v1646, %v1645
    %v1685 = vpack.c.b16 %v1648, %v1647
    %v1686 = vpack.c.b16 %v1650, %v1649
    %v1687 = vpack.c.b16 %v1652, %v1651
    %v1688 = vpack.c.b16 %v1654, %v1653
    %v1689 = vpack.c.b16 %v1656, %v1655
    %v1690 = vpack.c.b16 %v1658, %v1657
    %1723 = vmatpush.bf16.msra.mxu0 %v1666
    %1724 = vmatpush.bf16.msra.mxu0 %v1665
    %1725 = vmatpush.bf16.msra.mxu0 %v1664
    %1726 = vmatpush.bf16.msra.mxu0 %v1663
    %1727 = vmatpush.bf16.msra.mxu0 %v1662
    %1728 = vmatpush.bf16.msra.mxu0 %v1661
    %1729 = vmatpush.bf16.msra.mxu0 %v1660
    %1730 = vmatpush.bf16.msra.mxu0 %v1659
    %1731 = vmatmul.bf16.gmra.mxu0 %v1403
    %v1732 = vpop.f32.mrf.mxu0
    %v1733 = vadd.f32 0.0, %v1732
    %v1734 = vpop.f32.mrf.mxu0
    %v1735 = vadd.f32 0.0, %v1734
    %1736 = vmatmul.bf16.gmra.mxu0 %v1407
    %v1737 = vpop.f32.mrf.mxu0
    %v1738 = vadd.f32 0.0, %v1737
    %v1739 = vpop.f32.mrf.mxu0
    %v1740 = vadd.f32 0.0, %v1739
    %1741 = vmatmul.bf16.gmra.mxu0 %v1411
    %v1742 = vpop.f32.mrf.mxu0
    %v1743 = vadd.f32 0.0, %v1742
    %v1744 = vpop.f32.mrf.mxu0
    %v1745 = vadd.f32 0.0, %v1744
    %1746 = vmatmul.bf16.gmra.mxu0 %v1415
    %v1747 = vpop.f32.mrf.mxu0
    %v1748 = vadd.f32 0.0, %v1747
    %v1749 = vpop.f32.mrf.mxu0
    %v1750 = vadd.f32 0.0, %v1749
    %1751 = vmatmul.bf16.gmra.mxu0 %v1419
    %v1752 = vpop.f32.mrf.mxu0
    %v1753 = vadd.f32 0.0, %v1752
    %v1754 = vpop.f32.mrf.mxu0
    %v1755 = vadd.f32 0.0, %v1754
    %1756 = vmatmul.bf16.gmra.mxu0 %v1423
    %v1757 = vpop.f32.mrf.mxu0
    %v1758 = vadd.f32 0.0, %v1757
    %v1759 = vpop.f32.mrf.mxu0
    %v1760 = vadd.f32 0.0, %v1759
    %1761 = vmatmul.bf16.gmra.mxu0 %v1427
    %v1762 = vpop.f32.mrf.mxu0
    %v1763 = vadd.f32 0.0, %v1762
    %v1764 = vpop.f32.mrf.mxu0
    %v1765 = vadd.f32 0.0, %v1764
    %1766 = vmatmul.bf16.gmra.mxu0 %v1431
    %v1767 = vpop.f32.mrf.mxu0
    %v1768 = vadd.f32 0.0, %v1767
    %v1769 = vpop.f32.mrf.mxu0
    %v1770 = vadd.f32 0.0, %v1769
    %1771 = vmatmul.bf16.gmra.mxu0 %v1435
    %v1772 = vpop.f32.mrf.mxu0
    %v1773 = vadd.f32 0.0, %v1772
    %v1774 = vpop.f32.mrf.mxu0
    %v1775 = vadd.f32 0.0, %v1774
    %1776 = vmatmul.bf16.gmra.mxu0 %v1439
    %v1777 = vpop.f32.mrf.mxu0
    %v1778 = vadd.f32 0.0, %v1777
    %v1779 = vpop.f32.mrf.mxu0
    %v1780 = vadd.f32 0.0, %v1779
    %1781 = vmatmul.bf16.gmra.mxu0 %v1443
    %v1782 = vpop.f32.mrf.mxu0
    %v1783 = vadd.f32 0.0, %v1782
    %v1784 = vpop.f32.mrf.mxu0
    %v1785 = vadd.f32 0.0, %v1784
    %1786 = vmatmul.bf16.gmra.mxu0 %v1447
    %v1787 = vpop.f32.mrf.mxu0
    %v1788 = vadd.f32 0.0, %v1787
    %v1789 = vpop.f32.mrf.mxu0
    %v1790 = vadd.f32 0.0, %v1789
    %1791 = vmatmul.bf16.gmra.mxu0 %v1451
    %v1792 = vpop.f32.mrf.mxu0
    %v1793 = vadd.f32 0.0, %v1792
    %v1794 = vpop.f32.mrf.mxu0
    %v1795 = vadd.f32 0.0, %v1794
    %1796 = vmatmul.bf16.gmra.mxu0 %v1455
    %v1797 = vpop.f32.mrf.mxu0
    %v1798 = vadd.f32 0.0, %v1797
    %v1799 = vpop.f32.mrf.mxu0
    %v1800 = vadd.f32 0.0, %v1799
    %1801 = vmatmul.bf16.gmra.mxu0 %v1459
    %v1802 = vpop.f32.mrf.mxu0
    %v1803 = vadd.f32 0.0, %v1802
    %v1804 = vpop.f32.mrf.mxu0
    %v1805 = vadd.f32 0.0, %v1804
    %1806 = vmatmul.bf16.gmra.mxu0 %v1463
    %v1807 = vpop.f32.mrf.mxu0
    %v1808 = vadd.f32 0.0, %v1807
    %v1809 = vpop.f32.mrf.mxu0
    %v1810 = vadd.f32 0.0, %v1809
    %1811 = vdwg.mxu0
    %1812 = vmatpush.bf16.msra.mxu0 %v1674
    %1813 = vmatpush.bf16.msra.mxu0 %v1673
    %1814 = vmatpush.bf16.msra.mxu0 %v1672
    %1815 = vmatpush.bf16.msra.mxu0 %v1671
    %1816 = vmatpush.bf16.msra.mxu0 %v1670
    %1817 = vmatpush.bf16.msra.mxu0 %v1669
    %1818 = vmatpush.bf16.msra.mxu0 %v1668
    %1819 = vmatpush.bf16.msra.mxu0 %v1667
    %1820 = vmatmul.bf16.gmra.mxu0 %v1404
    %v1821 = vpop.f32.mrf.mxu0
    %v1822 = vadd.f32 %v1733, %v1821
    %v1823 = vpop.f32.mrf.mxu0
    %v1824 = vadd.f32 %v1735, %v1823
    %1825 = vmatmul.bf16.gmra.mxu0 %v1408
    %v1826 = vpop.f32.mrf.mxu0
    %v1827 = vadd.f32 %v1738, %v1826
    %v1828 = vpop.f32.mrf.mxu0
    %v1829 = vadd.f32 %v1740, %v1828
    %1830 = vmatmul.bf16.gmra.mxu0 %v1412
    %v1831 = vpop.f32.mrf.mxu0
    %v1832 = vadd.f32 %v1743, %v1831
    %v1833 = vpop.f32.mrf.mxu0
    %v1834 = vadd.f32 %v1745, %v1833
    %1835 = vmatmul.bf16.gmra.mxu0 %v1416
    %v1836 = vpop.f32.mrf.mxu0
    %v1837 = vadd.f32 %v1748, %v1836
    %v1838 = vpop.f32.mrf.mxu0
    %v1839 = vadd.f32 %v1750, %v1838
    %1840 = vmatmul.bf16.gmra.mxu0 %v1420
    %v1841 = vpop.f32.mrf.mxu0
    %v1842 = vadd.f32 %v1753, %v1841
    %v1843 = vpop.f32.mrf.mxu0
    %v1844 = vadd.f32 %v1755, %v1843
    %1845 = vmatmul.bf16.gmra.mxu0 %v1424
    %v1846 = vpop.f32.mrf.mxu0
    %v1847 = vadd.f32 %v1758, %v1846
    %v1848 = vpop.f32.mrf.mxu0
    %v1849 = vadd.f32 %v1760, %v1848
    %1850 = vmatmul.bf16.gmra.mxu0 %v1428
    %v1851 = vpop.f32.mrf.mxu0
    %v1852 = vadd.f32 %v1763, %v1851
    %v1853 = vpop.f32.mrf.mxu0
    %v1854 = vadd.f32 %v1765, %v1853
    %1855 = vmatmul.bf16.gmra.mxu0 %v1432
    %v1856 = vpop.f32.mrf.mxu0
    %v1857 = vadd.f32 %v1768, %v1856
    %v1858 = vpop.f32.mrf.mxu0
    %v1859 = vadd.f32 %v1770, %v1858
    %1860 = vmatmul.bf16.gmra.mxu0 %v1436
    %v1861 = vpop.f32.mrf.mxu0
    %v1862 = vadd.f32 %v1773, %v1861
    %v1863 = vpop.f32.mrf.mxu0
    %v1864 = vadd.f32 %v1775, %v1863
    %1865 = vmatmul.bf16.gmra.mxu0 %v1440
    %v1866 = vpop.f32.mrf.mxu0
    %v1867 = vadd.f32 %v1778, %v1866
    %v1868 = vpop.f32.mrf.mxu0
    %v1869 = vadd.f32 %v1780, %v1868
    %1870 = vmatmul.bf16.gmra.mxu0 %v1444
    %v1871 = vpop.f32.mrf.mxu0
    %v1872 = vadd.f32 %v1783, %v1871
    %v1873 = vpop.f32.mrf.mxu0
    %v1874 = vadd.f32 %v1785, %v1873
    %1875 = vmatmul.bf16.gmra.mxu0 %v1448
    %v1876 = vpop.f32.mrf.mxu0
    %v1877 = vadd.f32 %v1788, %v1876
    %v1878 = vpop.f32.mrf.mxu0
    %v1879 = vadd.f32 %v1790, %v1878
    %1880 = vmatmul.bf16.gmra.mxu0 %v1452
    %v1881 = vpop.f32.mrf.mxu0
    %v1882 = vadd.f32 %v1793, %v1881
    %v1883 = vpop.f32.mrf.mxu0
    %v1884 = vadd.f32 %v1795, %v1883
    %1885 = vmatmul.bf16.gmra.mxu0 %v1456
    %v1886 = vpop.f32.mrf.mxu0
    %v1887 = vadd.f32 %v1798, %v1886
    %v1888 = vpop.f32.mrf.mxu0
    %v1889 = vadd.f32 %v1800, %v1888
    %1890 = vmatmul.bf16.gmra.mxu0 %v1460
    %v1891 = vpop.f32.mrf.mxu0
    %v1892 = vadd.f32 %v1803, %v1891
    %v1893 = vpop.f32.mrf.mxu0
    %v1894 = vadd.f32 %v1805, %v1893
    %1895 = vmatmul.bf16.gmra.mxu0 %v1464
    %v1896 = vpop.f32.mrf.mxu0
    %v1897 = vadd.f32 %v1808, %v1896
    %v1898 = vpop.f32.mrf.mxu0
    %v1899 = vadd.f32 %v1810, %v1898
    %1900 = vdwg.mxu0
    %1901 = vmatpush.bf16.msra.mxu0 %v1682
    %1902 = vmatpush.bf16.msra.mxu0 %v1681
    %1903 = vmatpush.bf16.msra.mxu0 %v1680
    %1904 = vmatpush.bf16.msra.mxu0 %v1679
    %1905 = vmatpush.bf16.msra.mxu0 %v1678
    %1906 = vmatpush.bf16.msra.mxu0 %v1677
    %1907 = vmatpush.bf16.msra.mxu0 %v1676
    %1908 = vmatpush.bf16.msra.mxu0 %v1675
    %1909 = vmatmul.bf16.gmra.mxu0 %v1405
    %v1910 = vpop.f32.mrf.mxu0
    %v1911 = vadd.f32 %v1822, %v1910
    %v1912 = vpop.f32.mrf.mxu0
    %v1913 = vadd.f32 %v1824, %v1912
    %1914 = vmatmul.bf16.gmra.mxu0 %v1409
    %v1915 = vpop.f32.mrf.mxu0
    %v1916 = vadd.f32 %v1827, %v1915
    %v1917 = vpop.f32.mrf.mxu0
    %v1918 = vadd.f32 %v1829, %v1917
    %1919 = vmatmul.bf16.gmra.mxu0 %v1413
    %v1920 = vpop.f32.mrf.mxu0
    %v1921 = vadd.f32 %v1832, %v1920
    %v1922 = vpop.f32.mrf.mxu0
    %v1923 = vadd.f32 %v1834, %v1922
    %1924 = vmatmul.bf16.gmra.mxu0 %v1417
    %v1925 = vpop.f32.mrf.mxu0
    %v1926 = vadd.f32 %v1837, %v1925
    %v1927 = vpop.f32.mrf.mxu0
    %v1928 = vadd.f32 %v1839, %v1927
    %1929 = vmatmul.bf16.gmra.mxu0 %v1421
    %v1930 = vpop.f32.mrf.mxu0
    %v1931 = vadd.f32 %v1842, %v1930
    %v1932 = vpop.f32.mrf.mxu0
    %v1933 = vadd.f32 %v1844, %v1932
    %1934 = vmatmul.bf16.gmra.mxu0 %v1425
    %v1935 = vpop.f32.mrf.mxu0
    %v1936 = vadd.f32 %v1847, %v1935
    %v1937 = vpop.f32.mrf.mxu0
    %v1938 = vadd.f32 %v1849, %v1937
    %1939 = vmatmul.bf16.gmra.mxu0 %v1429
    %v1940 = vpop.f32.mrf.mxu0
    %v1941 = vadd.f32 %v1852, %v1940
    %v1942 = vpop.f32.mrf.mxu0
    %v1943 = vadd.f32 %v1854, %v1942
    %1944 = vmatmul.bf16.gmra.mxu0 %v1433
    %v1945 = vpop.f32.mrf.mxu0
    %v1946 = vadd.f32 %v1857, %v1945
    %v1947 = vpop.f32.mrf.mxu0
    %v1948 = vadd.f32 %v1859, %v1947
    %1949 = vmatmul.bf16.gmra.mxu0 %v1437
    %v1950 = vpop.f32.mrf.mxu0
    %v1951 = vadd.f32 %v1862, %v1950
    %v1952 = vpop.f32.mrf.mxu0
    %v1953 = vadd.f32 %v1864, %v1952
    %1954 = vmatmul.bf16.gmra.mxu0 %v1441
    %v1955 = vpop.f32.mrf.mxu0
    %v1956 = vadd.f32 %v1867, %v1955
    %v1957 = vpop.f32.mrf.mxu0
    %v1958 = vadd.f32 %v1869, %v1957
    %1959 = vmatmul.bf16.gmra.mxu0 %v1445
    %v1960 = vpop.f32.mrf.mxu0
    %v1961 = vadd.f32 %v1872, %v1960
    %v1962 = vpop.f32.mrf.mxu0
    %v1963 = vadd.f32 %v1874, %v1962
    %1964 = vmatmul.bf16.gmra.mxu0 %v1449
    %v1965 = vpop.f32.mrf.mxu0
    %v1966 = vadd.f32 %v1877, %v1965
    %v1967 = vpop.f32.mrf.mxu0
    %v1968 = vadd.f32 %v1879, %v1967
    %1969 = vmatmul.bf16.gmra.mxu0 %v1453
    %v1970 = vpop.f32.mrf.mxu0
    %v1971 = vadd.f32 %v1882, %v1970
    %v1972 = vpop.f32.mrf.mxu0
    %v1973 = vadd.f32 %v1884, %v1972
    %1974 = vmatmul.bf16.gmra.mxu0 %v1457
    %v1975 = vpop.f32.mrf.mxu0
    %v1976 = vadd.f32 %v1887, %v1975
    %v1977 = vpop.f32.mrf.mxu0
    %v1978 = vadd.f32 %v1889, %v1977
    %1979 = vmatmul.bf16.gmra.mxu0 %v1461
    %v1980 = vpop.f32.mrf.mxu0
    %v1981 = vadd.f32 %v1892, %v1980
    %v1982 = vpop.f32.mrf.mxu0
    %v1983 = vadd.f32 %v1894, %v1982
    %1984 = vmatmul.bf16.gmra.mxu0 %v1465
    %v1985 = vpop.f32.mrf.mxu0
    %v1986 = vadd.f32 %v1897, %v1985
    %v1987 = vpop.f32.mrf.mxu0
    %v1988 = vadd.f32 %v1899, %v1987
    %1989 = vdwg.mxu0
    %1990 = vmatpush.bf16.msra.mxu0 %v1690
    %1991 = vmatpush.bf16.msra.mxu0 %v1689
    %1992 = vmatpush.bf16.msra.mxu0 %v1688
    %1993 = vmatpush.bf16.msra.mxu0 %v1687
    %1994 = vmatpush.bf16.msra.mxu0 %v1686
    %1995 = vmatpush.bf16.msra.mxu0 %v1685
    %1996 = vmatpush.bf16.msra.mxu0 %v1684
    %1997 = vmatpush.bf16.msra.mxu0 %v1683
    %1998 = vmatmul.bf16.gmra.mxu0 %v1406
    %v1999 = vpop.f32.mrf.mxu0
    %v2000 = vadd.f32 %v1911, %v1999
    %v2001 = vpop.f32.mrf.mxu0
    %v2002 = vadd.f32 %v1913, %v2001
    %2003 = vmatmul.bf16.gmra.mxu0 %v1410
    %v2004 = vpop.f32.mrf.mxu0
    %v2005 = vadd.f32 %v1916, %v2004
    %v2006 = vpop.f32.mrf.mxu0
    %v2007 = vadd.f32 %v1918, %v2006
    %2008 = vmatmul.bf16.gmra.mxu0 %v1414
    %v2009 = vpop.f32.mrf.mxu0
    %v2010 = vadd.f32 %v1921, %v2009
    %v2011 = vpop.f32.mrf.mxu0
    %v2012 = vadd.f32 %v1923, %v2011
    %2013 = vmatmul.bf16.gmra.mxu0 %v1418
    %v2014 = vpop.f32.mrf.mxu0
    %v2015 = vadd.f32 %v1926, %v2014
    %v2016 = vpop.f32.mrf.mxu0
    %v2017 = vadd.f32 %v1928, %v2016
    %2018 = vmatmul.bf16.gmra.mxu0 %v1422
    %v2019 = vpop.f32.mrf.mxu0
    %v2020 = vadd.f32 %v1931, %v2019
    %v2021 = vpop.f32.mrf.mxu0
    %v2022 = vadd.f32 %v1933, %v2021
    %2023 = vmatmul.bf16.gmra.mxu0 %v1426
    %v2024 = vpop.f32.mrf.mxu0
    %v2025 = vadd.f32 %v1936, %v2024
    %v2026 = vpop.f32.mrf.mxu0
    %v2027 = vadd.f32 %v1938, %v2026
    %2028 = vmatmul.bf16.gmra.mxu0 %v1430
    %v2029 = vpop.f32.mrf.mxu0
    %v2030 = vadd.f32 %v1941, %v2029
    %v2031 = vpop.f32.mrf.mxu0
    %v2032 = vadd.f32 %v1943, %v2031
    %2033 = vmatmul.bf16.gmra.mxu0 %v1434
    %v2034 = vpop.f32.mrf.mxu0
    %v2035 = vadd.f32 %v1946, %v2034
    %v2036 = vpop.f32.mrf.mxu0
    %v2037 = vadd.f32 %v1948, %v2036
    %2038 = vmatmul.bf16.gmra.mxu0 %v1438
    %v2039 = vpop.f32.mrf.mxu0
    %v2040 = vadd.f32 %v1951, %v2039
    %v2041 = vpop.f32.mrf.mxu0
    %v2042 = vadd.f32 %v1953, %v2041
    %2043 = vmatmul.bf16.gmra.mxu0 %v1442
    %v2044 = vpop.f32.mrf.mxu0
    %v2045 = vadd.f32 %v1956, %v2044
    %v2046 = vpop.f32.mrf.mxu0
    %v2047 = vadd.f32 %v1958, %v2046
    %2048 = vmatmul.bf16.gmra.mxu0 %v1446
    %v2049 = vpop.f32.mrf.mxu0
    %v2050 = vadd.f32 %v1961, %v2049
    %v2051 = vpop.f32.mrf.mxu0
    %v2052 = vadd.f32 %v1963, %v2051
    %2053 = vmatmul.bf16.gmra.mxu0 %v1450
    %v2054 = vpop.f32.mrf.mxu0
    %v2055 = vadd.f32 %v1966, %v2054
    %v2056 = vpop.f32.mrf.mxu0
    %v2057 = vadd.f32 %v1968, %v2056
    %2058 = vmatmul.bf16.gmra.mxu0 %v1454
    %v2059 = vpop.f32.mrf.mxu0
    %v2060 = vadd.f32 %v1971, %v2059
    %v2061 = vpop.f32.mrf.mxu0
    %v2062 = vadd.f32 %v1973, %v2061
    %2063 = vmatmul.bf16.gmra.mxu0 %v1458
    %v2064 = vpop.f32.mrf.mxu0
    %v2065 = vadd.f32 %v1976, %v2064
    %v2066 = vpop.f32.mrf.mxu0
    %v2067 = vadd.f32 %v1978, %v2066
    %2068 = vmatmul.bf16.gmra.mxu0 %v1462
    %v2069 = vpop.f32.mrf.mxu0
    %v2070 = vadd.f32 %v1981, %v2069
    %v2071 = vpop.f32.mrf.mxu0
    %v2072 = vadd.f32 %v1983, %v2071
    %2073 = vmatmul.bf16.gmra.mxu0 %v1466
    %v2074 = vpop.f32.mrf.mxu0
    %v2075 = vadd.f32 %v1986, %v2074
    %v2076 = vpop.f32.mrf.mxu0
    %v2077 = vadd.f32 %v1988, %v2076
    %2078 = vdwg.mxu0
    %v2079 = vpack.c.bf16 %v2002, %v2000
    %v2080 = vpack.c.bf16 %v2007, %v2005
    %v2081 = vpack.c.bf16 %v2012, %v2010
    %v2082 = vpack.c.bf16 %v2017, %v2015
    %v2083 = vpack.c.bf16 %v2022, %v2020
    %v2084 = vpack.c.bf16 %v2027, %v2025
    %v2085 = vpack.c.bf16 %v2032, %v2030
    %v2086 = vpack.c.bf16 %v2037, %v2035
    %v2087 = vpack.c.bf16 %v2042, %v2040
    %v2088 = vpack.c.bf16 %v2047, %v2045
    %v2089 = vpack.c.bf16 %v2052, %v2050
    %v2090 = vpack.c.bf16 %v2057, %v2055
    %v2091 = vpack.c.bf16 %v2062, %v2060
    %v2092 = vpack.c.bf16 %v2067, %v2065
    %v2093 = vpack.c.bf16 %v2072, %v2070
    %v2094 = vpack.c.bf16 %v2077, %v2075
    %v2095 = vld [vmem:[%s7] sm:$0x1]
    %v2097 = vperm.slane %v2095, 0
    %2099 = vmatpush.bf16.msra.mxu0 %v2086
    %2100 = vmatpush.bf16.msra.mxu0 %v2085
    %2101 = vmatpush.bf16.msra.mxu0 %v2084
    %2102 = vmatpush.bf16.msra.mxu0 %v2083
    %2103 = vmatpush.bf16.msra.mxu0 %v2082
    %2104 = vmatpush.bf16.msra.mxu0 %v2081
    %2105 = vmatpush.bf16.msra.mxu0 %v2080
    %2106 = vmatpush.bf16.msra.mxu0 %v2079
    %2107 = vmatmul.bf16.gmra.mxu0 %v459
    %v2108 = vpop.f32.mrf.mxu0
    %v2109 = vadd.f32 %v2097, %v2108
    %v2110 = vpop.f32.mrf.mxu0
    %v2111 = vadd.f32 %v2097, %v2110
    %2112 = vmatmul.bf16.gmra.mxu0 %v461
    %v2113 = vpop.f32.mrf.mxu0
    %v2114 = vadd.f32 %v2097, %v2113
    %v2115 = vpop.f32.mrf.mxu0
    %v2116 = vadd.f32 %v2097, %v2115
    %2117 = vmatmul.bf16.gmra.mxu0 %v463
    %v2118 = vpop.f32.mrf.mxu0
    %v2119 = vadd.f32 %v2097, %v2118
    %v2120 = vpop.f32.mrf.mxu0
    %v2121 = vadd.f32 %v2097, %v2120
    %2122 = vmatmul.bf16.gmra.mxu0 %v465
    %v2123 = vpop.f32.mrf.mxu0
    %v2124 = vadd.f32 %v2097, %v2123
    %v2125 = vpop.f32.mrf.mxu0
    %v2126 = vadd.f32 %v2097, %v2125
    %2127 = vmatmul.bf16.gmra.mxu0 %v467
    %v2128 = vpop.f32.mrf.mxu0
    %v2129 = vadd.f32 %v2097, %v2128
    %v2130 = vpop.f32.mrf.mxu0
    %v2131 = vadd.f32 %v2097, %v2130
    %2132 = vmatmul.bf16.gmra.mxu0 %v469
    %v2133 = vpop.f32.mrf.mxu0
    %v2134 = vadd.f32 %v2097, %v2133
    %v2135 = vpop.f32.mrf.mxu0
    %v2136 = vadd.f32 %v2097, %v2135
    %2137 = vmatmul.bf16.gmra.mxu0 %v471
    %v2138 = vpop.f32.mrf.mxu0
    %v2139 = vadd.f32 %v2097, %v2138
    %v2140 = vpop.f32.mrf.mxu0
    %v2141 = vadd.f32 %v2097, %v2140
    %2142 = vmatmul.bf16.gmra.mxu0 %v473
    %v2143 = vpop.f32.mrf.mxu0
    %v2144 = vadd.f32 %v2097, %v2143
    %v2145 = vpop.f32.mrf.mxu0
    %v2146 = vadd.f32 %v2097, %v2145
    %2147 = vmatmul.bf16.gmra.mxu0 %v475
    %v2148 = vpop.f32.mrf.mxu0
    %v2149 = vadd.f32 %v2097, %v2148
    %v2150 = vpop.f32.mrf.mxu0
    %v2151 = vadd.f32 %v2097, %v2150
    %2152 = vmatmul.bf16.gmra.mxu0 %v477
    %v2153 = vpop.f32.mrf.mxu0
    %v2154 = vadd.f32 %v2097, %v2153
    %v2155 = vpop.f32.mrf.mxu0
    %v2156 = vadd.f32 %v2097, %v2155
    %2157 = vmatmul.bf16.gmra.mxu0 %v479
    %v2158 = vpop.f32.mrf.mxu0
    %v2159 = vadd.f32 %v2097, %v2158
    %v2160 = vpop.f32.mrf.mxu0
    %v2161 = vadd.f32 %v2097, %v2160
    %2162 = vmatmul.bf16.gmra.mxu0 %v481
    %v2163 = vpop.f32.mrf.mxu0
    %v2164 = vadd.f32 %v2097, %v2163
    %v2165 = vpop.f32.mrf.mxu0
    %v2166 = vadd.f32 %v2097, %v2165
    %2167 = vmatmul.bf16.gmra.mxu0 %v483
    %v2168 = vpop.f32.mrf.mxu0
    %v2169 = vadd.f32 %v2097, %v2168
    %v2170 = vpop.f32.mrf.mxu0
    %v2171 = vadd.f32 %v2097, %v2170
    %2172 = vmatmul.bf16.gmra.mxu0 %v485
    %v2173 = vpop.f32.mrf.mxu0
    %v2174 = vadd.f32 %v2097, %v2173
    %v2175 = vpop.f32.mrf.mxu0
    %v2176 = vadd.f32 %v2097, %v2175
    %2177 = vmatmul.bf16.gmra.mxu0 %v487
    %v2178 = vpop.f32.mrf.mxu0
    %v2179 = vadd.f32 %v2097, %v2178
    %v2180 = vpop.f32.mrf.mxu0
    %v2181 = vadd.f32 %v2097, %v2180
    %2182 = vmatmul.bf16.gmra.mxu0 %v489
    %v2183 = vpop.f32.mrf.mxu0
    %v2184 = vadd.f32 %v2097, %v2183
    %v2185 = vpop.f32.mrf.mxu0
    %v2186 = vadd.f32 %v2097, %v2185
    %2187 = vdwg.mxu0
    %2188 = vmatpush.bf16.msra.mxu0 %v2094
    %2189 = vmatpush.bf16.msra.mxu0 %v2093
    %2190 = vmatpush.bf16.msra.mxu0 %v2092
    %2191 = vmatpush.bf16.msra.mxu0 %v2091
    %2192 = vmatpush.bf16.msra.mxu0 %v2090
    %2193 = vmatpush.bf16.msra.mxu0 %v2089
    %2194 = vmatpush.bf16.msra.mxu0 %v2088
    %2195 = vmatpush.bf16.msra.mxu0 %v2087
    %2196 = vmatmul.bf16.gmra.mxu0 %v460
    %v2197 = vpop.f32.mrf.mxu0
    %v2198 = vadd.f32 %v2109, %v2197
    %v2199 = vpop.f32.mrf.mxu0
    %v2200 = vadd.f32 %v2111, %v2199
    %2201 = vmatmul.bf16.gmra.mxu0 %v462
    %v2202 = vpop.f32.mrf.mxu0
    %v2203 = vadd.f32 %v2114, %v2202
    %v2204 = vpop.f32.mrf.mxu0
    %v2205 = vadd.f32 %v2116, %v2204
    %2206 = vmatmul.bf16.gmra.mxu0 %v464
    %v2207 = vpop.f32.mrf.mxu0
    %v2208 = vadd.f32 %v2119, %v2207
    %v2209 = vpop.f32.mrf.mxu0
    %v2210 = vadd.f32 %v2121, %v2209
    %2211 = vmatmul.bf16.gmra.mxu0 %v466
    %v2212 = vpop.f32.mrf.mxu0
    %v2213 = vadd.f32 %v2124, %v2212
    %v2214 = vpop.f32.mrf.mxu0
    %v2215 = vadd.f32 %v2126, %v2214
    %2216 = vmatmul.bf16.gmra.mxu0 %v468
    %v2217 = vpop.f32.mrf.mxu0
    %v2218 = vadd.f32 %v2129, %v2217
    %v2219 = vpop.f32.mrf.mxu0
    %v2220 = vadd.f32 %v2131, %v2219
    %2221 = vmatmul.bf16.gmra.mxu0 %v470
    %v2222 = vpop.f32.mrf.mxu0
    %v2223 = vadd.f32 %v2134, %v2222
    %v2224 = vpop.f32.mrf.mxu0
    %v2225 = vadd.f32 %v2136, %v2224
    %2226 = vmatmul.bf16.gmra.mxu0 %v472
    %v2227 = vpop.f32.mrf.mxu0
    %v2228 = vadd.f32 %v2139, %v2227
    %v2229 = vpop.f32.mrf.mxu0
    %v2230 = vadd.f32 %v2141, %v2229
    %2231 = vmatmul.bf16.gmra.mxu0 %v474
    %v2232 = vpop.f32.mrf.mxu0
    %v2233 = vadd.f32 %v2144, %v2232
    %v2234 = vpop.f32.mrf.mxu0
    %v2235 = vadd.f32 %v2146, %v2234
    %2236 = vmatmul.bf16.gmra.mxu0 %v476
    %v2237 = vpop.f32.mrf.mxu0
    %v2238 = vadd.f32 %v2149, %v2237
    %v2239 = vpop.f32.mrf.mxu0
    %v2240 = vadd.f32 %v2151, %v2239
    %2241 = vmatmul.bf16.gmra.mxu0 %v478
    %v2242 = vpop.f32.mrf.mxu0
    %v2243 = vadd.f32 %v2154, %v2242
    %v2244 = vpop.f32.mrf.mxu0
    %v2245 = vadd.f32 %v2156, %v2244
    %2246 = vmatmul.bf16.gmra.mxu0 %v480
    %v2247 = vpop.f32.mrf.mxu0
    %v2248 = vadd.f32 %v2159, %v2247
    %v2249 = vpop.f32.mrf.mxu0
    %v2250 = vadd.f32 %v2161, %v2249
    %2251 = vmatmul.bf16.gmra.mxu0 %v482
    %v2252 = vpop.f32.mrf.mxu0
    %v2253 = vadd.f32 %v2164, %v2252
    %v2254 = vpop.f32.mrf.mxu0
    %v2255 = vadd.f32 %v2166, %v2254
    %2256 = vmatmul.bf16.gmra.mxu0 %v484
    %v2257 = vpop.f32.mrf.mxu0
    %v2258 = vadd.f32 %v2169, %v2257
    %v2259 = vpop.f32.mrf.mxu0
    %v2260 = vadd.f32 %v2171, %v2259
    %2261 = vmatmul.bf16.gmra.mxu0 %v486
    %v2262 = vpop.f32.mrf.mxu0
    %v2263 = vadd.f32 %v2174, %v2262
    %v2264 = vpop.f32.mrf.mxu0
    %v2265 = vadd.f32 %v2176, %v2264
    %2266 = vmatmul.bf16.gmra.mxu0 %v488
    %v2267 = vpop.f32.mrf.mxu0
    %v2268 = vadd.f32 %v2179, %v2267
    %v2269 = vpop.f32.mrf.mxu0
    %v2270 = vadd.f32 %v2181, %v2269
    %2271 = vmatmul.bf16.gmra.mxu0 %v490
    %v2272 = vpop.f32.mrf.mxu0
    %v2273 = vadd.f32 %v2184, %v2272
    %v2274 = vpop.f32.mrf.mxu0
    %v2275 = vadd.f32 %v2186, %v2274
    %2276 = vdwg.mxu0
    %2277 = vxpose.xlu0.b32.start [1/16] %v2198, 128
    %2278 = vxpose.xlu0.b32.cont [2/16] %v2200, 128
    %2279 = vxpose.xlu0.b32.cont [3/16] %v2203, 128
    %2280 = vxpose.xlu0.b32.cont [4/16] %v2205, 128
    %2281 = vxpose.xlu0.b32.cont [5/16] %v2208, 128
    %2282 = vxpose.xlu0.b32.cont [6/16] %v2210, 128
    %2283 = vxpose.xlu0.b32.cont [7/16] %v2213, 128
    %2284 = vxpose.xlu0.b32.cont [8/16] %v2215, 128
    %2285 = vxpose.xlu0.b32.cont [9/16] %v2218, 128
    %2286 = vxpose.xlu0.b32.cont [10/16] %v2220, 128
    %2287 = vxpose.xlu0.b32.cont [11/16] %v2223, 128
    %2288 = vxpose.xlu0.b32.cont [12/16] %v2225, 128
    %2289 = vxpose.xlu0.b32.cont [13/16] %v2228, 128
    %2290 = vxpose.xlu0.b32.cont [14/16] %v2230, 128
    %2291 = vxpose.xlu0.b32.cont [15/16] %v2233, 128
    %2292 = vxpose.xlu0.b32.end [16/16] %v2235, 128
    %v2293 = vpop.trf.xlu0
    %v2294 = vpop.trf.xlu0
    %v2295 = vpop.trf.xlu0
    %v2296 = vpop.trf.xlu0
    %v2297 = vpop.trf.xlu0
    %v2298 = vpop.trf.xlu0
    %v2299 = vpop.trf.xlu0
    %v2300 = vpop.trf.xlu0
    %v2301 = vpop.trf.xlu0
    %v2302 = vpop.trf.xlu0
    %v2303 = vpop.trf.xlu0
    %v2304 = vpop.trf.xlu0
    %v2305 = vpop.trf.xlu0
    %v2306 = vpop.trf.xlu0
    %v2307 = vpop.trf.xlu0
    %v2308 = vpop.trf.xlu0
    %2309 = vxpose.xlu0.b32.start [1/16] %v2238, 128
    %2310 = vxpose.xlu0.b32.cont [2/16] %v2240, 128
    %2311 = vxpose.xlu0.b32.cont [3/16] %v2243, 128
    %2312 = vxpose.xlu0.b32.cont [4/16] %v2245, 128
    %2313 = vxpose.xlu0.b32.cont [5/16] %v2248, 128
    %2314 = vxpose.xlu0.b32.cont [6/16] %v2250, 128
    %2315 = vxpose.xlu0.b32.cont [7/16] %v2253, 128
    %2316 = vxpose.xlu0.b32.cont [8/16] %v2255, 128
    %2317 = vxpose.xlu0.b32.cont [9/16] %v2258, 128
    %2318 = vxpose.xlu0.b32.cont [10/16] %v2260, 128
    %2319 = vxpose.xlu0.b32.cont [11/16] %v2263, 128
    %2320 = vxpose.xlu0.b32.cont [12/16] %v2265, 128
    %2321 = vxpose.xlu0.b32.cont [13/16] %v2268, 128
    %2322 = vxpose.xlu0.b32.cont [14/16] %v2270, 128
    %2323 = vxpose.xlu0.b32.cont [15/16] %v2273, 128
    %2324 = vxpose.xlu0.b32.end [16/16] %v2275, 128
    %v2325 = vpop.trf.xlu0
    %v2326 = vpop.trf.xlu0
    %v2327 = vpop.trf.xlu0
    %v2328 = vpop.trf.xlu0
    %v2329 = vpop.trf.xlu0
    %v2330 = vpop.trf.xlu0
    %v2331 = vpop.trf.xlu0
    %v2332 = vpop.trf.xlu0
    %v2333 = vpop.trf.xlu0
    %v2334 = vpop.trf.xlu0
    %v2335 = vpop.trf.xlu0
    %v2336 = vpop.trf.xlu0
    %v2337 = vpop.trf.xlu0
    %v2338 = vpop.trf.xlu0
    %v2339 = vpop.trf.xlu0
    %v2340 = vpop.trf.xlu0
    %v2341 = vlaneseq
    %v2342 = vshrl.u32 %v2341, 7
    %v2343 = vadd.s32 %v2342, 8
    %v2344 = vadd.s32 %v2342, 16
    %v2345 = vadd.s32 %v2342, 24
    %v2346 = vadd.s32 %v2342, 32
    %v2347 = vadd.s32 %v2342, 40
    %v2348 = vadd.s32 %v2342, 48
    %v2349 = vadd.s32 %v2342, 56
    %v2350 = vadd.s32 %v2342, 64
    %v2351 = vadd.s32 %v2342, 72
    %v2352 = vadd.s32 %v2342, 80
    %v2353 = vadd.s32 %v2342, 88
    %v2354 = vadd.s32 %v2342, 96
    %v2355 = vadd.s32 %v2342, 104
    %v2356 = vadd.s32 %v2342, 112
    %v2357 = vadd.s32 %v2342, 120
    %v2358 = vadd.s32 %v2342, 128
    %v2359 = vadd.s32 %v2342, 136
    %v2360 = vadd.s32 %v2342, 144
    %v2361 = vadd.s32 %v2342, 152
    %v2362 = vadd.s32 %v2342, 160
    %v2363 = vadd.s32 %v2342, 168
    %v2364 = vadd.s32 %v2342, 176
    %v2365 = vadd.s32 %v2342, 184
    %v2366 = vadd.s32 %v2342, 192
    %v2367 = vadd.s32 %v2342, 200
    %v2368 = vadd.s32 %v2342, 208
    %v2369 = vadd.s32 %v2342, 216
    %v2370 = vadd.s32 %v2342, 224
    %v2371 = vadd.s32 %v2342, 232
    %v2372 = vadd.s32 %v2342, 240
    %v2373 = vadd.s32 %v2342, 248
    %v2374 = vld [vmem:[%s8] sm:$0x7]
    %v2375 = vperm.slane %v2374, 0
    %v2376 = vperm.slane %v2374, 1
    %v2377 = vperm.slane %v2374, 2
    %vm2378 = vcmp.eq.s32.totalorder %v2342, %v2375
    %vm2379 = vcmp.eq.s32.totalorder %v2342, %v2376
    %vm2380 = vcmp.eq.s32.totalorder %v2342, %v2377
    %vm2381 = vcmp.eq.s32.totalorder %v2343, %v2375
    %vm2382 = vcmp.eq.s32.totalorder %v2343, %v2376
    %vm2383 = vcmp.eq.s32.totalorder %v2343, %v2377
    %vm2384 = vcmp.eq.s32.totalorder %v2344, %v2375
    %vm2385 = vcmp.eq.s32.totalorder %v2344, %v2376
    %vm2386 = vcmp.eq.s32.totalorder %v2344, %v2377
    %vm2387 = vcmp.eq.s32.totalorder %v2345, %v2375
    %vm2388 = vcmp.eq.s32.totalorder %v2345, %v2376
    %vm2389 = vcmp.eq.s32.totalorder %v2345, %v2377
    %vm2390 = vcmp.eq.s32.totalorder %v2346, %v2375
    %vm2391 = vcmp.eq.s32.totalorder %v2346, %v2376
    %vm2392 = vcmp.eq.s32.totalorder %v2346, %v2377
    %vm2393 = vcmp.eq.s32.totalorder %v2347, %v2375
    %vm2394 = vcmp.eq.s32.totalorder %v2347, %v2376
    %vm2395 = vcmp.eq.s32.totalorder %v2347, %v2377
    %vm2396 = vcmp.eq.s32.totalorder %v2348, %v2375
    %vm2397 = vcmp.eq.s32.totalorder %v2348, %v2376
    %vm2398 = vcmp.eq.s32.totalorder %v2348, %v2377
    %vm2399 = vcmp.eq.s32.totalorder %v2349, %v2375
    %vm2400 = vcmp.eq.s32.totalorder %v2349, %v2376
    %vm2401 = vcmp.eq.s32.totalorder %v2349, %v2377
    %vm2402 = vcmp.eq.s32.totalorder %v2350, %v2375
    %vm2403 = vcmp.eq.s32.totalorder %v2350, %v2376
    %vm2404 = vcmp.eq.s32.totalorder %v2350, %v2377
    %vm2405 = vcmp.eq.s32.totalorder %v2351, %v2375
    %vm2406 = vcmp.eq.s32.totalorder %v2351, %v2376
    %vm2407 = vcmp.eq.s32.totalorder %v2351, %v2377
    %vm2408 = vcmp.eq.s32.totalorder %v2352, %v2375
    %vm2409 = vcmp.eq.s32.totalorder %v2352, %v2376
    %vm2410 = vcmp.eq.s32.totalorder %v2352, %v2377
    %vm2411 = vcmp.eq.s32.totalorder %v2353, %v2375
    %vm2412 = vcmp.eq.s32.totalorder %v2353, %v2376
    %vm2413 = vcmp.eq.s32.totalorder %v2353, %v2377
    %vm2414 = vcmp.eq.s32.totalorder %v2354, %v2375
    %vm2415 = vcmp.eq.s32.totalorder %v2354, %v2376
    %vm2416 = vcmp.eq.s32.totalorder %v2354, %v2377
    %vm2417 = vcmp.eq.s32.totalorder %v2355, %v2375
    %vm2418 = vcmp.eq.s32.totalorder %v2355, %v2376
    %vm2419 = vcmp.eq.s32.totalorder %v2355, %v2377
    %vm2420 = vcmp.eq.s32.totalorder %v2356, %v2375
    %vm2421 = vcmp.eq.s32.totalorder %v2356, %v2376
    %vm2422 = vcmp.eq.s32.totalorder %v2356, %v2377
    %vm2423 = vcmp.eq.s32.totalorder %v2357, %v2375
    %vm2424 = vcmp.eq.s32.totalorder %v2357, %v2376
    %vm2425 = vcmp.eq.s32.totalorder %v2357, %v2377
    %vm2426 = vcmp.eq.s32.totalorder %v2358, %v2375
    %vm2427 = vcmp.eq.s32.totalorder %v2358, %v2376
    %vm2428 = vcmp.eq.s32.totalorder %v2358, %v2377
    %vm2429 = vcmp.eq.s32.totalorder %v2359, %v2375
    %vm2430 = vcmp.eq.s32.totalorder %v2359, %v2376
    %vm2431 = vcmp.eq.s32.totalorder %v2359, %v2377
    %vm2432 = vcmp.eq.s32.totalorder %v2360, %v2375
    %vm2433 = vcmp.eq.s32.totalorder %v2360, %v2376
    %vm2434 = vcmp.eq.s32.totalorder %v2360, %v2377
    %vm2435 = vcmp.eq.s32.totalorder %v2361, %v2375
    %vm2436 = vcmp.eq.s32.totalorder %v2361, %v2376
    %vm2437 = vcmp.eq.s32.totalorder %v2361, %v2377
    %vm2438 = vcmp.eq.s32.totalorder %v2362, %v2375
    %vm2439 = vcmp.eq.s32.totalorder %v2362, %v2376
    %vm2440 = vcmp.eq.s32.totalorder %v2362, %v2377
    %vm2441 = vcmp.eq.s32.totalorder %v2363, %v2375
    %vm2442 = vcmp.eq.s32.totalorder %v2363, %v2376
    %vm2443 = vcmp.eq.s32.totalorder %v2363, %v2377
    %vm2444 = vcmp.eq.s32.totalorder %v2364, %v2375
    %vm2445 = vcmp.eq.s32.totalorder %v2364, %v2376
    %vm2446 = vcmp.eq.s32.totalorder %v2364, %v2377
    %vm2447 = vcmp.eq.s32.totalorder %v2365, %v2375
    %vm2448 = vcmp.eq.s32.totalorder %v2365, %v2376
    %vm2449 = vcmp.eq.s32.totalorder %v2365, %v2377
    %vm2450 = vcmp.eq.s32.totalorder %v2366, %v2375
    %vm2451 = vcmp.eq.s32.totalorder %v2366, %v2376
    %vm2452 = vcmp.eq.s32.totalorder %v2366, %v2377
    %vm2453 = vcmp.eq.s32.totalorder %v2367, %v2375
    %vm2454 = vcmp.eq.s32.totalorder %v2367, %v2376
    %vm2455 = vcmp.eq.s32.totalorder %v2367, %v2377
    %vm2456 = vcmp.eq.s32.totalorder %v2368, %v2375
    %vm2457 = vcmp.eq.s32.totalorder %v2368, %v2376
    %vm2458 = vcmp.eq.s32.totalorder %v2368, %v2377
    %vm2459 = vcmp.eq.s32.totalorder %v2369, %v2375
    %vm2460 = vcmp.eq.s32.totalorder %v2369, %v2376
    %vm2461 = vcmp.eq.s32.totalorder %v2369, %v2377
    %vm2462 = vcmp.eq.s32.totalorder %v2370, %v2375
    %vm2463 = vcmp.eq.s32.totalorder %v2370, %v2376
    %vm2464 = vcmp.eq.s32.totalorder %v2370, %v2377
    %vm2465 = vcmp.eq.s32.totalorder %v2371, %v2375
    %vm2466 = vcmp.eq.s32.totalorder %v2371, %v2376
    %vm2467 = vcmp.eq.s32.totalorder %v2371, %v2377
    %vm2468 = vcmp.eq.s32.totalorder %v2372, %v2375
    %vm2469 = vcmp.eq.s32.totalorder %v2372, %v2376
    %vm2470 = vcmp.eq.s32.totalorder %v2372, %v2377
    %vm2471 = vcmp.eq.s32.totalorder %v2373, %v2375
    %vm2472 = vcmp.eq.s32.totalorder %v2373, %v2376
    %vm2473 = vcmp.eq.s32.totalorder %v2373, %v2377
    %v2474 = vsel %vm2378, 1, 0
    %v2475 = vsel %vm2379, 1, 0
    %v2476 = vsel %vm2380, 1, 0
    %v2477 = vsel %vm2381, 1, 0
    %v2478 = vsel %vm2382, 1, 0
    %v2479 = vsel %vm2383, 1, 0
    %v2480 = vsel %vm2384, 1, 0
    %v2481 = vsel %vm2385, 1, 0
    %v2482 = vsel %vm2386, 1, 0
    %v2483 = vsel %vm2387, 1, 0
    %v2484 = vsel %vm2388, 1, 0
    %v2485 = vsel %vm2389, 1, 0
    %v2486 = vsel %vm2390, 1, 0
    %v2487 = vsel %vm2391, 1, 0
    %v2488 = vsel %vm2392, 1, 0
    %v2489 = vsel %vm2393, 1, 0
    %v2490 = vsel %vm2394, 1, 0
    %v2491 = vsel %vm2395, 1, 0
    %v2492 = vsel %vm2396, 1, 0
    %v2493 = vsel %vm2397, 1, 0
    %v2494 = vsel %vm2398, 1, 0
    %v2495 = vsel %vm2399, 1, 0
    %v2496 = vsel %vm2400, 1, 0
    %v2497 = vsel %vm2401, 1, 0
    %v2498 = vsel %vm2402, 1, 0
    %v2499 = vsel %vm2403, 1, 0
    %v2500 = vsel %vm2404, 1, 0
    %v2501 = vsel %vm2405, 1, 0
    %v2502 = vsel %vm2406, 1, 0
    %v2503 = vsel %vm2407, 1, 0
    %v2504 = vsel %vm2408, 1, 0
    %v2505 = vsel %vm2409, 1, 0
    %v2506 = vsel %vm2410, 1, 0
    %v2507 = vsel %vm2411, 1, 0
    %v2508 = vsel %vm2412, 1, 0
    %v2509 = vsel %vm2413, 1, 0
    %v2510 = vsel %vm2414, 1, 0
    %v2511 = vsel %vm2415, 1, 0
    %v2512 = vsel %vm2416, 1, 0
    %v2513 = vsel %vm2417, 1, 0
    %v2514 = vsel %vm2418, 1, 0
    %v2515 = vsel %vm2419, 1, 0
    %v2516 = vsel %vm2420, 1, 0
    %v2517 = vsel %vm2421, 1, 0
    %v2518 = vsel %vm2422, 1, 0
    %v2519 = vsel %vm2423, 1, 0
    %v2520 = vsel %vm2424, 1, 0
    %v2521 = vsel %vm2425, 1, 0
    %v2522 = vsel %vm2426, 1, 0
    %v2523 = vsel %vm2427, 1, 0
    %v2524 = vsel %vm2428, 1, 0
    %v2525 = vsel %vm2429, 1, 0
    %v2526 = vsel %vm2430, 1, 0
    %v2527 = vsel %vm2431, 1, 0
    %v2528 = vsel %vm2432, 1, 0
    %v2529 = vsel %vm2433, 1, 0
    %v2530 = vsel %vm2434, 1, 0
    %v2531 = vsel %vm2435, 1, 0
    %v2532 = vsel %vm2436, 1, 0
    %v2533 = vsel %vm2437, 1, 0
    %v2534 = vsel %vm2438, 1, 0
    %v2535 = vsel %vm2439, 1, 0
    %v2536 = vsel %vm2440, 1, 0
    %v2537 = vsel %vm2441, 1, 0
    %v2538 = vsel %vm2442, 1, 0
    %v2539 = vsel %vm2443, 1, 0
    %v2540 = vsel %vm2444, 1, 0
    %v2541 = vsel %vm2445, 1, 0
    %v2542 = vsel %vm2446, 1, 0
    %v2543 = vsel %vm2447, 1, 0
    %v2544 = vsel %vm2448, 1, 0
    %v2545 = vsel %vm2449, 1, 0
    %v2546 = vsel %vm2450, 1, 0
    %v2547 = vsel %vm2451, 1, 0
    %v2548 = vsel %vm2452, 1, 0
    %v2549 = vsel %vm2453, 1, 0
    %v2550 = vsel %vm2454, 1, 0
    %v2551 = vsel %vm2455, 1, 0
    %v2552 = vsel %vm2456, 1, 0
    %v2553 = vsel %vm2457, 1, 0
    %v2554 = vsel %vm2458, 1, 0
    %v2555 = vsel %vm2459, 1, 0
    %v2556 = vsel %vm2460, 1, 0
    %v2557 = vsel %vm2461, 1, 0
    %v2558 = vsel %vm2462, 1, 0
    %v2559 = vsel %vm2463, 1, 0
    %v2560 = vsel %vm2464, 1, 0
    %v2561 = vsel %vm2465, 1, 0
    %v2562 = vsel %vm2466, 1, 0
    %v2563 = vsel %vm2467, 1, 0
    %v2564 = vsel %vm2468, 1, 0
    %v2565 = vsel %vm2469, 1, 0
    %v2566 = vsel %vm2470, 1, 0
    %v2567 = vsel %vm2471, 1, 0
    %v2568 = vsel %vm2472, 1, 0
    %v2569 = vsel %vm2473, 1, 0
    %v2570 = vcvt.s32.f32 %v2474
    %v2571 = vcvt.s32.f32 %v2475
    %v2572 = vcvt.s32.f32 %v2476
    %v2573 = vcvt.s32.f32 %v2477
    %v2574 = vcvt.s32.f32 %v2478
    %v2575 = vcvt.s32.f32 %v2479
    %v2576 = vcvt.s32.f32 %v2480
    %v2577 = vcvt.s32.f32 %v2481
    %v2578 = vcvt.s32.f32 %v2482
    %v2579 = vcvt.s32.f32 %v2483
    %v2580 = vcvt.s32.f32 %v2484
    %v2581 = vcvt.s32.f32 %v2485
    %v2582 = vcvt.s32.f32 %v2486
    %v2583 = vcvt.s32.f32 %v2487
    %v2584 = vcvt.s32.f32 %v2488
    %v2585 = vcvt.s32.f32 %v2489
    %v2586 = vcvt.s32.f32 %v2490
    %v2587 = vcvt.s32.f32 %v2491
    %v2588 = vcvt.s32.f32 %v2492
    %v2589 = vcvt.s32.f32 %v2493
    %v2590 = vcvt.s32.f32 %v2494
    %v2591 = vcvt.s32.f32 %v2495
    %v2592 = vcvt.s32.f32 %v2496
    %v2593 = vcvt.s32.f32 %v2497
    %v2594 = vcvt.s32.f32 %v2498
    %v2595 = vcvt.s32.f32 %v2499
    %v2596 = vcvt.s32.f32 %v2500
    %v2597 = vcvt.s32.f32 %v2501
    %v2598 = vcvt.s32.f32 %v2502
    %v2599 = vcvt.s32.f32 %v2503
    %v2600 = vcvt.s32.f32 %v2504
    %v2601 = vcvt.s32.f32 %v2505
    %v2602 = vcvt.s32.f32 %v2506
    %v2603 = vcvt.s32.f32 %v2507
    %v2604 = vcvt.s32.f32 %v2508
    %v2605 = vcvt.s32.f32 %v2509
    %v2606 = vcvt.s32.f32 %v2510
    %v2607 = vcvt.s32.f32 %v2511
    %v2608 = vcvt.s32.f32 %v2512
    %v2609 = vcvt.s32.f32 %v2513
    %v2610 = vcvt.s32.f32 %v2514
    %v2611 = vcvt.s32.f32 %v2515
    %v2612 = vcvt.s32.f32 %v2516
    %v2613 = vcvt.s32.f32 %v2517
    %v2614 = vcvt.s32.f32 %v2518
    %v2615 = vcvt.s32.f32 %v2519
    %v2616 = vcvt.s32.f32 %v2520
    %v2617 = vcvt.s32.f32 %v2521
    %v2618 = vcvt.s32.f32 %v2522
    %v2619 = vcvt.s32.f32 %v2523
    %v2620 = vcvt.s32.f32 %v2524
    %v2621 = vcvt.s32.f32 %v2525
    %v2622 = vcvt.s32.f32 %v2526
    %v2623 = vcvt.s32.f32 %v2527
    %v2624 = vcvt.s32.f32 %v2528
    %v2625 = vcvt.s32.f32 %v2529
    %v2626 = vcvt.s32.f32 %v2530
    %v2627 = vcvt.s32.f32 %v2531
    %v2628 = vcvt.s32.f32 %v2532
    %v2629 = vcvt.s32.f32 %v2533
    %v2630 = vcvt.s32.f32 %v2534
    %v2631 = vcvt.s32.f32 %v2535
    %v2632 = vcvt.s32.f32 %v2536
    %v2633 = vcvt.s32.f32 %v2537
    %v2634 = vcvt.s32.f32 %v2538
    %v2635 = vcvt.s32.f32 %v2539
    %v2636 = vcvt.s32.f32 %v2540
    %v2637 = vcvt.s32.f32 %v2541
    %v2638 = vcvt.s32.f32 %v2542
    %v2639 = vcvt.s32.f32 %v2543
    %v2640 = vcvt.s32.f32 %v2544
    %v2641 = vcvt.s32.f32 %v2545
    %v2642 = vcvt.s32.f32 %v2546
    %v2643 = vcvt.s32.f32 %v2547
    %v2644 = vcvt.s32.f32 %v2548
    %v2645 = vcvt.s32.f32 %v2549
    %v2646 = vcvt.s32.f32 %v2550
    %v2647 = vcvt.s32.f32 %v2551
    %v2648 = vcvt.s32.f32 %v2552
    %v2649 = vcvt.s32.f32 %v2553
    %v2650 = vcvt.s32.f32 %v2554
    %v2651 = vcvt.s32.f32 %v2555
    %v2652 = vcvt.s32.f32 %v2556
    %v2653 = vcvt.s32.f32 %v2557
    %v2654 = vcvt.s32.f32 %v2558
    %v2655 = vcvt.s32.f32 %v2559
    %v2656 = vcvt.s32.f32 %v2560
    %v2657 = vcvt.s32.f32 %v2561
    %v2658 = vcvt.s32.f32 %v2562
    %v2659 = vcvt.s32.f32 %v2563
    %v2660 = vcvt.s32.f32 %v2564
    %v2661 = vcvt.s32.f32 %v2565
    %v2662 = vcvt.s32.f32 %v2566
    %v2663 = vcvt.s32.f32 %v2567
    %v2664 = vcvt.s32.f32 %v2568
    %v2665 = vcvt.s32.f32 %v2569
    %v2666 = vld [vmem:[%s9] sm:$0x7]
    %v2667 = vperm.slane %v2666, 0
    %v2668 = vperm.slane %v2666, 1
    %v2669 = vperm.slane %v2666, 2
    %vm2670 = vcmp.eq.s32.totalorder %v2342, %v2667
    %vm2671 = vcmp.eq.s32.totalorder %v2342, %v2668
    %vm2672 = vcmp.eq.s32.totalorder %v2342, %v2669
    %vm2673 = vcmp.eq.s32.totalorder %v2343, %v2667
    %vm2674 = vcmp.eq.s32.totalorder %v2343, %v2668
    %vm2675 = vcmp.eq.s32.totalorder %v2343, %v2669
    %vm2676 = vcmp.eq.s32.totalorder %v2344, %v2667
    %vm2677 = vcmp.eq.s32.totalorder %v2344, %v2668
    %vm2678 = vcmp.eq.s32.totalorder %v2344, %v2669
    %vm2679 = vcmp.eq.s32.totalorder %v2345, %v2667
    %vm2680 = vcmp.eq.s32.totalorder %v2345, %v2668
    %vm2681 = vcmp.eq.s32.totalorder %v2345, %v2669
    %vm2682 = vcmp.eq.s32.totalorder %v2346, %v2667
    %vm2683 = vcmp.eq.s32.totalorder %v2346, %v2668
    %vm2684 = vcmp.eq.s32.totalorder %v2346, %v2669
    %vm2685 = vcmp.eq.s32.totalorder %v2347, %v2667
    %vm2686 = vcmp.eq.s32.totalorder %v2347, %v2668
    %vm2687 = vcmp.eq.s32.totalorder %v2347, %v2669
    %vm2688 = vcmp.eq.s32.totalorder %v2348, %v2667
    %vm2689 = vcmp.eq.s32.totalorder %v2348, %v2668
    %vm2690 = vcmp.eq.s32.totalorder %v2348, %v2669
    %vm2691 = vcmp.eq.s32.totalorder %v2349, %v2667
    %vm2692 = vcmp.eq.s32.totalorder %v2349, %v2668
    %vm2693 = vcmp.eq.s32.totalorder %v2349, %v2669
    %vm2694 = vcmp.eq.s32.totalorder %v2350, %v2667
    %vm2695 = vcmp.eq.s32.totalorder %v2350, %v2668
    %vm2696 = vcmp.eq.s32.totalorder %v2350, %v2669
    %vm2697 = vcmp.eq.s32.totalorder %v2351, %v2667
    %vm2698 = vcmp.eq.s32.totalorder %v2351, %v2668
    %vm2699 = vcmp.eq.s32.totalorder %v2351, %v2669
    %vm2700 = vcmp.eq.s32.totalorder %v2352, %v2667
    %vm2701 = vcmp.eq.s32.totalorder %v2352, %v2668
    %vm2702 = vcmp.eq.s32.totalorder %v2352, %v2669
    %vm2703 = vcmp.eq.s32.totalorder %v2353, %v2667
    %vm2704 = vcmp.eq.s32.totalorder %v2353, %v2668
    %vm2705 = vcmp.eq.s32.totalorder %v2353, %v2669
    %vm2706 = vcmp.eq.s32.totalorder %v2354, %v2667
    %vm2707 = vcmp.eq.s32.totalorder %v2354, %v2668
    %vm2708 = vcmp.eq.s32.totalorder %v2354, %v2669
    %vm2709 = vcmp.eq.s32.totalorder %v2355, %v2667
    %vm2710 = vcmp.eq.s32.totalorder %v2355, %v2668
    %vm2711 = vcmp.eq.s32.totalorder %v2355, %v2669
    %vm2712 = vcmp.eq.s32.totalorder %v2356, %v2667
    %vm2713 = vcmp.eq.s32.totalorder %v2356, %v2668
    %vm2714 = vcmp.eq.s32.totalorder %v2356, %v2669
    %vm2715 = vcmp.eq.s32.totalorder %v2357, %v2667
    %vm2716 = vcmp.eq.s32.totalorder %v2357, %v2668
    %vm2717 = vcmp.eq.s32.totalorder %v2357, %v2669
    %vm2718 = vcmp.eq.s32.totalorder %v2358, %v2667
    %vm2719 = vcmp.eq.s32.totalorder %v2358, %v2668
    %vm2720 = vcmp.eq.s32.totalorder %v2358, %v2669
    %vm2721 = vcmp.eq.s32.totalorder %v2359, %v2667
    %vm2722 = vcmp.eq.s32.totalorder %v2359, %v2668
    %vm2723 = vcmp.eq.s32.totalorder %v2359, %v2669
    %vm2724 = vcmp.eq.s32.totalorder %v2360, %v2667
    %vm2725 = vcmp.eq.s32.totalorder %v2360, %v2668
    %vm2726 = vcmp.eq.s32.totalorder %v2360, %v2669
    %vm2727 = vcmp.eq.s32.totalorder %v2361, %v2667
    %vm2728 = vcmp.eq.s32.totalorder %v2361, %v2668
    %vm2729 = vcmp.eq.s32.totalorder %v2361, %v2669
    %vm2730 = vcmp.eq.s32.totalorder %v2362, %v2667
    %vm2731 = vcmp.eq.s32.totalorder %v2362, %v2668
    %vm2732 = vcmp.eq.s32.totalorder %v2362, %v2669
    %vm2733 = vcmp.eq.s32.totalorder %v2363, %v2667
    %vm2734 = vcmp.eq.s32.totalorder %v2363, %v2668
    %vm2735 = vcmp.eq.s32.totalorder %v2363, %v2669
    %vm2736 = vcmp.eq.s32.totalorder %v2364, %v2667
    %vm2737 = vcmp.eq.s32.totalorder %v2364, %v2668
    %vm2738 = vcmp.eq.s32.totalorder %v2364, %v2669
    %vm2739 = vcmp.eq.s32.totalorder %v2365, %v2667
    %vm2740 = vcmp.eq.s32.totalorder %v2365, %v2668
    %vm2741 = vcmp.eq.s32.totalorder %v2365, %v2669
    %vm2742 = vcmp.eq.s32.totalorder %v2366, %v2667
    %vm2743 = vcmp.eq.s32.totalorder %v2366, %v2668
    %vm2744 = vcmp.eq.s32.totalorder %v2366, %v2669
    %vm2745 = vcmp.eq.s32.totalorder %v2367, %v2667
    %vm2746 = vcmp.eq.s32.totalorder %v2367, %v2668
    %vm2747 = vcmp.eq.s32.totalorder %v2367, %v2669
    %vm2748 = vcmp.eq.s32.totalorder %v2368, %v2667
    %vm2749 = vcmp.eq.s32.totalorder %v2368, %v2668
    %vm2750 = vcmp.eq.s32.totalorder %v2368, %v2669
    %vm2751 = vcmp.eq.s32.totalorder %v2369, %v2667
    %vm2752 = vcmp.eq.s32.totalorder %v2369, %v2668
    %vm2753 = vcmp.eq.s32.totalorder %v2369, %v2669
    %vm2754 = vcmp.eq.s32.totalorder %v2370, %v2667
    %vm2755 = vcmp.eq.s32.totalorder %v2370, %v2668
    %vm2756 = vcmp.eq.s32.totalorder %v2370, %v2669
    %vm2757 = vcmp.eq.s32.totalorder %v2371, %v2667
    %vm2758 = vcmp.eq.s32.totalorder %v2371, %v2668
    %vm2759 = vcmp.eq.s32.totalorder %v2371, %v2669
    %vm2760 = vcmp.eq.s32.totalorder %v2372, %v2667
    %vm2761 = vcmp.eq.s32.totalorder %v2372, %v2668
    %vm2762 = vcmp.eq.s32.totalorder %v2372, %v2669
    %vm2763 = vcmp.eq.s32.totalorder %v2373, %v2667
    %vm2764 = vcmp.eq.s32.totalorder %v2373, %v2668
    %vm2765 = vcmp.eq.s32.totalorder %v2373, %v2669
    %v2766 = vsel %vm2670, 1, 0
    %v2767 = vsel %vm2671, 1, 0
    %v2768 = vsel %vm2672, 1, 0
    %v2769 = vsel %vm2673, 1, 0
    %v2770 = vsel %vm2674, 1, 0
    %v2771 = vsel %vm2675, 1, 0
    %v2772 = vsel %vm2676, 1, 0
    %v2773 = vsel %vm2677, 1, 0
    %v2774 = vsel %vm2678, 1, 0
    %v2775 = vsel %vm2679, 1, 0
    %v2776 = vsel %vm2680, 1, 0
    %v2777 = vsel %vm2681, 1, 0
    %v2778 = vsel %vm2682, 1, 0
    %v2779 = vsel %vm2683, 1, 0
    %v2780 = vsel %vm2684, 1, 0
    %v2781 = vsel %vm2685, 1, 0
    %v2782 = vsel %vm2686, 1, 0
    %v2783 = vsel %vm2687, 1, 0
    %v2784 = vsel %vm2688, 1, 0
    %v2785 = vsel %vm2689, 1, 0
    %v2786 = vsel %vm2690, 1, 0
    %v2787 = vsel %vm2691, 1, 0
    %v2788 = vsel %vm2692, 1, 0
    %v2789 = vsel %vm2693, 1, 0
    %v2790 = vsel %vm2694, 1, 0
    %v2791 = vsel %vm2695, 1, 0
    %v2792 = vsel %vm2696, 1, 0
    %v2793 = vsel %vm2697, 1, 0
    %v2794 = vsel %vm2698, 1, 0
    %v2795 = vsel %vm2699, 1, 0
    %v2796 = vsel %vm2700, 1, 0
    %v2797 = vsel %vm2701, 1, 0
    %v2798 = vsel %vm2702, 1, 0
    %v2799 = vsel %vm2703, 1, 0
    %v2800 = vsel %vm2704, 1, 0
    %v2801 = vsel %vm2705, 1, 0
    %v2802 = vsel %vm2706, 1, 0
    %v2803 = vsel %vm2707, 1, 0
    %v2804 = vsel %vm2708, 1, 0
    %v2805 = vsel %vm2709, 1, 0
    %v2806 = vsel %vm2710, 1, 0
    %v2807 = vsel %vm2711, 1, 0
    %v2808 = vsel %vm2712, 1, 0
    %v2809 = vsel %vm2713, 1, 0
    %v2810 = vsel %vm2714, 1, 0
    %v2811 = vsel %vm2715, 1, 0
    %v2812 = vsel %vm2716, 1, 0
    %v2813 = vsel %vm2717, 1, 0
    %v2814 = vsel %vm2718, 1, 0
    %v2815 = vsel %vm2719, 1, 0
    %v2816 = vsel %vm2720, 1, 0
    %v2817 = vsel %vm2721, 1, 0
    %v2818 = vsel %vm2722, 1, 0
    %v2819 = vsel %vm2723, 1, 0
    %v2820 = vsel %vm2724, 1, 0
    %v2821 = vsel %vm2725, 1, 0
    %v2822 = vsel %vm2726, 1, 0
    %v2823 = vsel %vm2727, 1, 0
    %v2824 = vsel %vm2728, 1, 0
    %v2825 = vsel %vm2729, 1, 0
    %v2826 = vsel %vm2730, 1, 0
    %v2827 = vsel %vm2731, 1, 0
    %v2828 = vsel %vm2732, 1, 0
    %v2829 = vsel %vm2733, 1, 0
    %v2830 = vsel %vm2734, 1, 0
    %v2831 = vsel %vm2735, 1, 0
    %v2832 = vsel %vm2736, 1, 0
    %v2833 = vsel %vm2737, 1, 0
    %v2834 = vsel %vm2738, 1, 0
    %v2835 = vsel %vm2739, 1, 0
    %v2836 = vsel %vm2740, 1, 0
    %v2837 = vsel %vm2741, 1, 0
    %v2838 = vsel %vm2742, 1, 0
    %v2839 = vsel %vm2743, 1, 0
    %v2840 = vsel %vm2744, 1, 0
    %v2841 = vsel %vm2745, 1, 0
    %v2842 = vsel %vm2746, 1, 0
    %v2843 = vsel %vm2747, 1, 0
    %v2844 = vsel %vm2748, 1, 0
    %v2845 = vsel %vm2749, 1, 0
    %v2846 = vsel %vm2750, 1, 0
    %v2847 = vsel %vm2751, 1, 0
    %v2848 = vsel %vm2752, 1, 0
    %v2849 = vsel %vm2753, 1, 0
    %v2850 = vsel %vm2754, 1, 0
    %v2851 = vsel %vm2755, 1, 0
    %v2852 = vsel %vm2756, 1, 0
    %v2853 = vsel %vm2757, 1, 0
    %v2854 = vsel %vm2758, 1, 0
    %v2855 = vsel %vm2759, 1, 0
    %v2856 = vsel %vm2760, 1, 0
    %v2857 = vsel %vm2761, 1, 0
    %v2858 = vsel %vm2762, 1, 0
    %v2859 = vsel %vm2763, 1, 0
    %v2860 = vsel %vm2764, 1, 0
    %v2861 = vsel %vm2765, 1, 0
    %v2862 = vcvt.s32.f32 %v2766
    %v2863 = vcvt.s32.f32 %v2767
    %v2864 = vcvt.s32.f32 %v2768
    %v2865 = vcvt.s32.f32 %v2769
    %v2866 = vcvt.s32.f32 %v2770
    %v2867 = vcvt.s32.f32 %v2771
    %v2868 = vcvt.s32.f32 %v2772
    %v2869 = vcvt.s32.f32 %v2773
    %v2870 = vcvt.s32.f32 %v2774
    %v2871 = vcvt.s32.f32 %v2775
    %v2872 = vcvt.s32.f32 %v2776
    %v2873 = vcvt.s32.f32 %v2777
    %v2874 = vcvt.s32.f32 %v2778
    %v2875 = vcvt.s32.f32 %v2779
    %v2876 = vcvt.s32.f32 %v2780
    %v2877 = vcvt.s32.f32 %v2781
    %v2878 = vcvt.s32.f32 %v2782
    %v2879 = vcvt.s32.f32 %v2783
    %v2880 = vcvt.s32.f32 %v2784
    %v2881 = vcvt.s32.f32 %v2785
    %v2882 = vcvt.s32.f32 %v2786
    %v2883 = vcvt.s32.f32 %v2787
    %v2884 = vcvt.s32.f32 %v2788
    %v2885 = vcvt.s32.f32 %v2789
    %v2886 = vcvt.s32.f32 %v2790
    %v2887 = vcvt.s32.f32 %v2791
    %v2888 = vcvt.s32.f32 %v2792
    %v2889 = vcvt.s32.f32 %v2793
    %v2890 = vcvt.s32.f32 %v2794
    %v2891 = vcvt.s32.f32 %v2795
    %v2892 = vcvt.s32.f32 %v2796
    %v2893 = vcvt.s32.f32 %v2797
    %v2894 = vcvt.s32.f32 %v2798
    %v2895 = vcvt.s32.f32 %v2799
    %v2896 = vcvt.s32.f32 %v2800
    %v2897 = vcvt.s32.f32 %v2801
    %v2898 = vcvt.s32.f32 %v2802
    %v2899 = vcvt.s32.f32 %v2803
    %v2900 = vcvt.s32.f32 %v2804
    %v2901 = vcvt.s32.f32 %v2805
    %v2902 = vcvt.s32.f32 %v2806
    %v2903 = vcvt.s32.f32 %v2807
    %v2904 = vcvt.s32.f32 %v2808
    %v2905 = vcvt.s32.f32 %v2809
    %v2906 = vcvt.s32.f32 %v2810
    %v2907 = vcvt.s32.f32 %v2811
    %v2908 = vcvt.s32.f32 %v2812
    %v2909 = vcvt.s32.f32 %v2813
    %v2910 = vcvt.s32.f32 %v2814
    %v2911 = vcvt.s32.f32 %v2815
    %v2912 = vcvt.s32.f32 %v2816
    %v2913 = vcvt.s32.f32 %v2817
    %v2914 = vcvt.s32.f32 %v2818
    %v2915 = vcvt.s32.f32 %v2819
    %v2916 = vcvt.s32.f32 %v2820
    %v2917 = vcvt.s32.f32 %v2821
    %v2918 = vcvt.s32.f32 %v2822
    %v2919 = vcvt.s32.f32 %v2823
    %v2920 = vcvt.s32.f32 %v2824
    %v2921 = vcvt.s32.f32 %v2825
    %v2922 = vcvt.s32.f32 %v2826
    %v2923 = vcvt.s32.f32 %v2827
    %v2924 = vcvt.s32.f32 %v2828
    %v2925 = vcvt.s32.f32 %v2829
    %v2926 = vcvt.s32.f32 %v2830
    %v2927 = vcvt.s32.f32 %v2831
    %v2928 = vcvt.s32.f32 %v2832
    %v2929 = vcvt.s32.f32 %v2833
    %v2930 = vcvt.s32.f32 %v2834
    %v2931 = vcvt.s32.f32 %v2835
    %v2932 = vcvt.s32.f32 %v2836
    %v2933 = vcvt.s32.f32 %v2837
    %v2934 = vcvt.s32.f32 %v2838
    %v2935 = vcvt.s32.f32 %v2839
    %v2936 = vcvt.s32.f32 %v2840
    %v2937 = vcvt.s32.f32 %v2841
    %v2938 = vcvt.s32.f32 %v2842
    %v2939 = vcvt.s32.f32 %v2843
    %v2940 = vcvt.s32.f32 %v2844
    %v2941 = vcvt.s32.f32 %v2845
    %v2942 = vcvt.s32.f32 %v2846
    %v2943 = vcvt.s32.f32 %v2847
    %v2944 = vcvt.s32.f32 %v2848
    %v2945 = vcvt.s32.f32 %v2849
    %v2946 = vcvt.s32.f32 %v2850
    %v2947 = vcvt.s32.f32 %v2851
    %v2948 = vcvt.s32.f32 %v2852
    %v2949 = vcvt.s32.f32 %v2853
    %v2950 = vcvt.s32.f32 %v2854
    %v2951 = vcvt.s32.f32 %v2855
    %v2952 = vcvt.s32.f32 %v2856
    %v2953 = vcvt.s32.f32 %v2857
    %v2954 = vcvt.s32.f32 %v2858
    %v2955 = vcvt.s32.f32 %v2859
    %v2956 = vcvt.s32.f32 %v2860
    %v2957 = vcvt.s32.f32 %v2861
    %2958 = vmatpush.msra.mxu0 %v2615
    %2959 = vmatpush.msra.mxu0 %v2612
    %2960 = vmatpush.msra.mxu0 %v2609
    %2961 = vmatpush.msra.mxu0 %v2606
    %2962 = vmatpush.msra.mxu0 %v2603
    %2963 = vmatpush.msra.mxu0 %v2600
    %2964 = vmatpush.msra.mxu0 %v2597
    %2965 = vmatpush.msra.mxu0 %v2594
    %2966 = vmatpush.msra.mxu0 %v2591
    %2967 = vmatpush.msra.mxu0 %v2588
    %2968 = vmatpush.msra.mxu0 %v2585
    %2969 = vmatpush.msra.mxu0 %v2582
    %2970 = vmatpush.msra.mxu0 %v2579
    %2971 = vmatpush.msra.mxu0 %v2576
    %2972 = vmatpush.msra.mxu0 %v2573
    %2973 = vmatpush.msra.mxu0 %v2570
    %2974 = vmatmul.f32.gmra.mxu0 %v2293
    %v2975 = vpop.f32.mrf.mxu0
    %v2976 = vadd.f32 0.0, %v2975
    %2977 = vmatmul.f32.gmra.mxu0 %v2294
    %v2978 = vpop.f32.mrf.mxu0
    %v2979 = vadd.f32 0.0, %v2978
    %2980 = vmatmul.f32.gmra.mxu0 %v2295
    %v2981 = vpop.f32.mrf.mxu0
    %v2982 = vadd.f32 0.0, %v2981
    %2983 = vmatmul.f32.gmra.mxu0 %v2296
    %v2984 = vpop.f32.mrf.mxu0
    %v2985 = vadd.f32 0.0, %v2984
    %2986 = vmatmul.f32.gmra.mxu0 %v2297
    %v2987 = vpop.f32.mrf.mxu0
    %v2988 = vadd.f32 0.0, %v2987
    %2989 = vmatmul.f32.gmra.mxu0 %v2298
    %v2990 = vpop.f32.mrf.mxu0
    %v2991 = vadd.f32 0.0, %v2990
    %2992 = vmatmul.f32.gmra.mxu0 %v2299
    %v2993 = vpop.f32.mrf.mxu0
    %v2994 = vadd.f32 0.0, %v2993
    %2995 = vmatmul.f32.gmra.mxu0 %v2300
    %v2996 = vpop.f32.mrf.mxu0
    %v2997 = vadd.f32 0.0, %v2996
    %2998 = vmatmul.f32.gmra.mxu0 %v2301
    %v2999 = vpop.f32.mrf.mxu0
    %v3000 = vadd.f32 0.0, %v2999
    %3001 = vmatmul.f32.gmra.mxu0 %v2302
    %v3002 = vpop.f32.mrf.mxu0
    %v3003 = vadd.f32 0.0, %v3002
    %3004 = vmatmul.f32.gmra.mxu0 %v2303
    %v3005 = vpop.f32.mrf.mxu0
    %v3006 = vadd.f32 0.0, %v3005
    %3007 = vmatmul.f32.gmra.mxu0 %v2304
    %v3008 = vpop.f32.mrf.mxu0
    %v3009 = vadd.f32 0.0, %v3008
    %3010 = vmatmul.f32.gmra.mxu0 %v2305
    %v3011 = vpop.f32.mrf.mxu0
    %v3012 = vadd.f32 0.0, %v3011
    %3013 = vmatmul.f32.gmra.mxu0 %v2306
    %v3014 = vpop.f32.mrf.mxu0
    %v3015 = vadd.f32 0.0, %v3014
    %3016 = vmatmul.f32.gmra.mxu0 %v2307
    %v3017 = vpop.f32.mrf.mxu0
    %v3018 = vadd.f32 0.0, %v3017
    %3019 = vmatmul.f32.gmra.mxu0 %v2308
    %v3020 = vpop.f32.mrf.mxu0
    %v3021 = vadd.f32 0.0, %v3020
    %3022 = vdwg.mxu0
    %3023 = vmatpush.msra.mxu0 %v2663
    %3024 = vmatpush.msra.mxu0 %v2660
    %3025 = vmatpush.msra.mxu0 %v2657
    %3026 = vmatpush.msra.mxu0 %v2654
    %3027 = vmatpush.msra.mxu0 %v2651
    %3028 = vmatpush.msra.mxu0 %v2648
    %3029 = vmatpush.msra.mxu0 %v2645
    %3030 = vmatpush.msra.mxu0 %v2642
    %3031 = vmatpush.msra.mxu0 %v2639
    %3032 = vmatpush.msra.mxu0 %v2636
    %3033 = vmatpush.msra.mxu0 %v2633
    %3034 = vmatpush.msra.mxu0 %v2630
    %3035 = vmatpush.msra.mxu0 %v2627
    %3036 = vmatpush.msra.mxu0 %v2624
    %3037 = vmatpush.msra.mxu0 %v2621
    %3038 = vmatpush.msra.mxu0 %v2618
    %3039 = vmatmul.f32.gmra.mxu0 %v2325
    %v3040 = vpop.f32.mrf.mxu0
    %v3041 = vadd.f32 %v2976, %v3040
    %3042 = vmatmul.f32.gmra.mxu0 %v2326
    %v3043 = vpop.f32.mrf.mxu0
    %v3044 = vadd.f32 %v2979, %v3043
    %3045 = vmatmul.f32.gmra.mxu0 %v2327
    %v3046 = vpop.f32.mrf.mxu0
    %v3047 = vadd.f32 %v2982, %v3046
    %3048 = vmatmul.f32.gmra.mxu0 %v2328
    %v3049 = vpop.f32.mrf.mxu0
    %v3050 = vadd.f32 %v2985, %v3049
    %3051 = vmatmul.f32.gmra.mxu0 %v2329
    %v3052 = vpop.f32.mrf.mxu0
    %v3053 = vadd.f32 %v2988, %v3052
    %3054 = vmatmul.f32.gmra.mxu0 %v2330
    %v3055 = vpop.f32.mrf.mxu0
    %v3056 = vadd.f32 %v2991, %v3055
    %3057 = vmatmul.f32.gmra.mxu0 %v2331
    %v3058 = vpop.f32.mrf.mxu0
    %v3059 = vadd.f32 %v2994, %v3058
    %3060 = vmatmul.f32.gmra.mxu0 %v2332
    %v3061 = vpop.f32.mrf.mxu0
    %v3062 = vadd.f32 %v2997, %v3061
    %3063 = vmatmul.f32.gmra.mxu0 %v2333
    %v3064 = vpop.f32.mrf.mxu0
    %v3065 = vadd.f32 %v3000, %v3064
    %3066 = vmatmul.f32.gmra.mxu0 %v2334
    %v3067 = vpop.f32.mrf.mxu0
    %v3068 = vadd.f32 %v3003, %v3067
    %3069 = vmatmul.f32.gmra.mxu0 %v2335
    %v3070 = vpop.f32.mrf.mxu0
    %v3071 = vadd.f32 %v3006, %v3070
    %3072 = vmatmul.f32.gmra.mxu0 %v2336
    %v3073 = vpop.f32.mrf.mxu0
    %v3074 = vadd.f32 %v3009, %v3073
    %3075 = vmatmul.f32.gmra.mxu0 %v2337
    %v3076 = vpop.f32.mrf.mxu0
    %v3077 = vadd.f32 %v3012, %v3076
    %3078 = vmatmul.f32.gmra.mxu0 %v2338
    %v3079 = vpop.f32.mrf.mxu0
    %v3080 = vadd.f32 %v3015, %v3079
    %3081 = vmatmul.f32.gmra.mxu0 %v2339
    %v3082 = vpop.f32.mrf.mxu0
    %v3083 = vadd.f32 %v3018, %v3082
    %3084 = vmatmul.f32.gmra.mxu0 %v2340
    %v3085 = vpop.f32.mrf.mxu0
    %v3086 = vadd.f32 %v3021, %v3085
    %3087 = vdwg.mxu0
    %3088 = vmatpush.msra.mxu0 %v2616
    %3089 = vmatpush.msra.mxu0 %v2613
    %3090 = vmatpush.msra.mxu0 %v2610
    %3091 = vmatpush.msra.mxu0 %v2607
    %3092 = vmatpush.msra.mxu0 %v2604
    %3093 = vmatpush.msra.mxu0 %v2601
    %3094 = vmatpush.msra.mxu0 %v2598
    %3095 = vmatpush.msra.mxu0 %v2595
    %3096 = vmatpush.msra.mxu0 %v2592
    %3097 = vmatpush.msra.mxu0 %v2589
    %3098 = vmatpush.msra.mxu0 %v2586
    %3099 = vmatpush.msra.mxu0 %v2583
    %3100 = vmatpush.msra.mxu0 %v2580
    %3101 = vmatpush.msra.mxu0 %v2577
    %3102 = vmatpush.msra.mxu0 %v2574
    %3103 = vmatpush.msra.mxu0 %v2571
    %3104 = vmatmul.f32.gmra.mxu0 %v2293
    %v3105 = vpop.f32.mrf.mxu0
    %v3106 = vadd.f32 0.0, %v3105
    %3107 = vmatmul.f32.gmra.mxu0 %v2294
    %v3108 = vpop.f32.mrf.mxu0
    %v3109 = vadd.f32 0.0, %v3108
    %3110 = vmatmul.f32.gmra.mxu0 %v2295
    %v3111 = vpop.f32.mrf.mxu0
    %v3112 = vadd.f32 0.0, %v3111
    %3113 = vmatmul.f32.gmra.mxu0 %v2296
    %v3114 = vpop.f32.mrf.mxu0
    %v3115 = vadd.f32 0.0, %v3114
    %3116 = vmatmul.f32.gmra.mxu0 %v2297
    %v3117 = vpop.f32.mrf.mxu0
    %v3118 = vadd.f32 0.0, %v3117
    %3119 = vmatmul.f32.gmra.mxu0 %v2298
    %v3120 = vpop.f32.mrf.mxu0
    %v3121 = vadd.f32 0.0, %v3120
    %3122 = vmatmul.f32.gmra.mxu0 %v2299
    %v3123 = vpop.f32.mrf.mxu0
    %v3124 = vadd.f32 0.0, %v3123
    %3125 = vmatmul.f32.gmra.mxu0 %v2300
    %v3126 = vpop.f32.mrf.mxu0
    %v3127 = vadd.f32 0.0, %v3126
    %3128 = vmatmul.f32.gmra.mxu0 %v2301
    %v3129 = vpop.f32.mrf.mxu0
    %v3130 = vadd.f32 0.0, %v3129
    %3131 = vmatmul.f32.gmra.mxu0 %v2302
    %v3132 = vpop.f32.mrf.mxu0
    %v3133 = vadd.f32 0.0, %v3132
    %3134 = vmatmul.f32.gmra.mxu0 %v2303
    %v3135 = vpop.f32.mrf.mxu0
    %v3136 = vadd.f32 0.0, %v3135
    %3137 = vmatmul.f32.gmra.mxu0 %v2304
    %v3138 = vpop.f32.mrf.mxu0
    %v3139 = vadd.f32 0.0, %v3138
    %3140 = vmatmul.f32.gmra.mxu0 %v2305
    %v3141 = vpop.f32.mrf.mxu0
    %v3142 = vadd.f32 0.0, %v3141
    %3143 = vmatmul.f32.gmra.mxu0 %v2306
    %v3144 = vpop.f32.mrf.mxu0
    %v3145 = vadd.f32 0.0, %v3144
    %3146 = vmatmul.f32.gmra.mxu0 %v2307
    %v3147 = vpop.f32.mrf.mxu0
    %v3148 = vadd.f32 0.0, %v3147
    %3149 = vmatmul.f32.gmra.mxu0 %v2308
    %v3150 = vpop.f32.mrf.mxu0
    %v3151 = vadd.f32 0.0, %v3150
    %3152 = vdwg.mxu0
    %3153 = vmatpush.msra.mxu0 %v2664
    %3154 = vmatpush.msra.mxu0 %v2661
    %3155 = vmatpush.msra.mxu0 %v2658
    %3156 = vmatpush.msra.mxu0 %v2655
    %3157 = vmatpush.msra.mxu0 %v2652
    %3158 = vmatpush.msra.mxu0 %v2649
    %3159 = vmatpush.msra.mxu0 %v2646
    %3160 = vmatpush.msra.mxu0 %v2643
    %3161 = vmatpush.msra.mxu0 %v2640
    %3162 = vmatpush.msra.mxu0 %v2637
    %3163 = vmatpush.msra.mxu0 %v2634
    %3164 = vmatpush.msra.mxu0 %v2631
    %3165 = vmatpush.msra.mxu0 %v2628
    %3166 = vmatpush.msra.mxu0 %v2625
    %3167 = vmatpush.msra.mxu0 %v2622
    %3168 = vmatpush.msra.mxu0 %v2619
    %3169 = vmatmul.f32.gmra.mxu0 %v2325
    %v3170 = vpop.f32.mrf.mxu0
    %v3171 = vadd.f32 %v3106, %v3170
    %3172 = vmatmul.f32.gmra.mxu0 %v2326
    %v3173 = vpop.f32.mrf.mxu0
    %v3174 = vadd.f32 %v3109, %v3173
    %3175 = vmatmul.f32.gmra.mxu0 %v2327
    %v3176 = vpop.f32.mrf.mxu0
    %v3177 = vadd.f32 %v3112, %v3176
    %3178 = vmatmul.f32.gmra.mxu0 %v2328
    %v3179 = vpop.f32.mrf.mxu0
    %v3180 = vadd.f32 %v3115, %v3179
    %3181 = vmatmul.f32.gmra.mxu0 %v2329
    %v3182 = vpop.f32.mrf.mxu0
    %v3183 = vadd.f32 %v3118, %v3182
    %3184 = vmatmul.f32.gmra.mxu0 %v2330
    %v3185 = vpop.f32.mrf.mxu0
    %v3186 = vadd.f32 %v3121, %v3185
    %3187 = vmatmul.f32.gmra.mxu0 %v2331
    %v3188 = vpop.f32.mrf.mxu0
    %v3189 = vadd.f32 %v3124, %v3188
    %3190 = vmatmul.f32.gmra.mxu0 %v2332
    %v3191 = vpop.f32.mrf.mxu0
    %v3192 = vadd.f32 %v3127, %v3191
    %3193 = vmatmul.f32.gmra.mxu0 %v2333
    %v3194 = vpop.f32.mrf.mxu0
    %v3195 = vadd.f32 %v3130, %v3194
    %3196 = vmatmul.f32.gmra.mxu0 %v2334
    %v3197 = vpop.f32.mrf.mxu0
    %v3198 = vadd.f32 %v3133, %v3197
    %3199 = vmatmul.f32.gmra.mxu0 %v2335
    %v3200 = vpop.f32.mrf.mxu0
    %v3201 = vadd.f32 %v3136, %v3200
    %3202 = vmatmul.f32.gmra.mxu0 %v2336
    %v3203 = vpop.f32.mrf.mxu0
    %v3204 = vadd.f32 %v3139, %v3203
    %3205 = vmatmul.f32.gmra.mxu0 %v2337
    %v3206 = vpop.f32.mrf.mxu0
    %v3207 = vadd.f32 %v3142, %v3206
    %3208 = vmatmul.f32.gmra.mxu0 %v2338
    %v3209 = vpop.f32.mrf.mxu0
    %v3210 = vadd.f32 %v3145, %v3209
    %3211 = vmatmul.f32.gmra.mxu0 %v2339
    %v3212 = vpop.f32.mrf.mxu0
    %v3213 = vadd.f32 %v3148, %v3212
    %3214 = vmatmul.f32.gmra.mxu0 %v2340
    %v3215 = vpop.f32.mrf.mxu0
    %v3216 = vadd.f32 %v3151, %v3215
    %3217 = vdwg.mxu0
    %3218 = vmatpush.msra.mxu0 %v2617
    %3219 = vmatpush.msra.mxu0 %v2614
    %3220 = vmatpush.msra.mxu0 %v2611
    %3221 = vmatpush.msra.mxu0 %v2608
    %3222 = vmatpush.msra.mxu0 %v2605
    %3223 = vmatpush.msra.mxu0 %v2602
    %3224 = vmatpush.msra.mxu0 %v2599
    %3225 = vmatpush.msra.mxu0 %v2596
    %3226 = vmatpush.msra.mxu0 %v2593
    %3227 = vmatpush.msra.mxu0 %v2590
    %3228 = vmatpush.msra.mxu0 %v2587
    %3229 = vmatpush.msra.mxu0 %v2584
    %3230 = vmatpush.msra.mxu0 %v2581
    %3231 = vmatpush.msra.mxu0 %v2578
    %3232 = vmatpush.msra.mxu0 %v2575
    %3233 = vmatpush.msra.mxu0 %v2572
    %3234 = vmatmul.f32.gmra.mxu0 %v2293
    %v3235 = vpop.f32.mrf.mxu0
    %v3236 = vadd.f32 0.0, %v3235
    %3237 = vmatmul.f32.gmra.mxu0 %v2294
    %v3238 = vpop.f32.mrf.mxu0
    %v3239 = vadd.f32 0.0, %v3238
    %3240 = vmatmul.f32.gmra.mxu0 %v2295
    %v3241 = vpop.f32.mrf.mxu0
    %v3242 = vadd.f32 0.0, %v3241
    %3243 = vmatmul.f32.gmra.mxu0 %v2296
    %v3244 = vpop.f32.mrf.mxu0
    %v3245 = vadd.f32 0.0, %v3244
    %3246 = vmatmul.f32.gmra.mxu0 %v2297
    %v3247 = vpop.f32.mrf.mxu0
    %v3248 = vadd.f32 0.0, %v3247
    %3249 = vmatmul.f32.gmra.mxu0 %v2298
    %v3250 = vpop.f32.mrf.mxu0
    %v3251 = vadd.f32 0.0, %v3250
    %3252 = vmatmul.f32.gmra.mxu0 %v2299
    %v3253 = vpop.f32.mrf.mxu0
    %v3254 = vadd.f32 0.0, %v3253
    %3255 = vmatmul.f32.gmra.mxu0 %v2300
    %v3256 = vpop.f32.mrf.mxu0
    %v3257 = vadd.f32 0.0, %v3256
    %3258 = vmatmul.f32.gmra.mxu0 %v2301
    %v3259 = vpop.f32.mrf.mxu0
    %v3260 = vadd.f32 0.0, %v3259
    %3261 = vmatmul.f32.gmra.mxu0 %v2302
    %v3262 = vpop.f32.mrf.mxu0
    %v3263 = vadd.f32 0.0, %v3262
    %3264 = vmatmul.f32.gmra.mxu0 %v2303
    %v3265 = vpop.f32.mrf.mxu0
    %v3266 = vadd.f32 0.0, %v3265
    %3267 = vmatmul.f32.gmra.mxu0 %v2304
    %v3268 = vpop.f32.mrf.mxu0
    %v3269 = vadd.f32 0.0, %v3268
    %3270 = vmatmul.f32.gmra.mxu0 %v2305
    %v3271 = vpop.f32.mrf.mxu0
    %v3272 = vadd.f32 0.0, %v3271
    %3273 = vmatmul.f32.gmra.mxu0 %v2306
    %v3274 = vpop.f32.mrf.mxu0
    %v3275 = vadd.f32 0.0, %v3274
    %3276 = vmatmul.f32.gmra.mxu0 %v2307
    %v3277 = vpop.f32.mrf.mxu0
    %v3278 = vadd.f32 0.0, %v3277
    %3279 = vmatmul.f32.gmra.mxu0 %v2308
    %v3280 = vpop.f32.mrf.mxu0
    %v3281 = vadd.f32 0.0, %v3280
    %3282 = vdwg.mxu0
    %3283 = vmatpush.msra.mxu0 %v2665
    %3284 = vmatpush.msra.mxu0 %v2662
    %3285 = vmatpush.msra.mxu0 %v2659
    %3286 = vmatpush.msra.mxu0 %v2656
    %3287 = vmatpush.msra.mxu0 %v2653
    %3288 = vmatpush.msra.mxu0 %v2650
    %3289 = vmatpush.msra.mxu0 %v2647
    %3290 = vmatpush.msra.mxu0 %v2644
    %3291 = vmatpush.msra.mxu0 %v2641
    %3292 = vmatpush.msra.mxu0 %v2638
    %3293 = vmatpush.msra.mxu0 %v2635
    %3294 = vmatpush.msra.mxu0 %v2632
    %3295 = vmatpush.msra.mxu0 %v2629
    %3296 = vmatpush.msra.mxu0 %v2626
    %3297 = vmatpush.msra.mxu0 %v2623
    %3298 = vmatpush.msra.mxu0 %v2620
    %3299 = vmatmul.f32.gmra.mxu0 %v2325
    %v3300 = vpop.f32.mrf.mxu0
    %v3301 = vadd.f32 %v3236, %v3300
    %3302 = vmatmul.f32.gmra.mxu0 %v2326
    %v3303 = vpop.f32.mrf.mxu0
    %v3304 = vadd.f32 %v3239, %v3303
    %3305 = vmatmul.f32.gmra.mxu0 %v2327
    %v3306 = vpop.f32.mrf.mxu0
    %v3307 = vadd.f32 %v3242, %v3306
    %3308 = vmatmul.f32.gmra.mxu0 %v2328
    %v3309 = vpop.f32.mrf.mxu0
    %v3310 = vadd.f32 %v3245, %v3309
    %3311 = vmatmul.f32.gmra.mxu0 %v2329
    %v3312 = vpop.f32.mrf.mxu0
    %v3313 = vadd.f32 %v3248, %v3312
    %3314 = vmatmul.f32.gmra.mxu0 %v2330
    %v3315 = vpop.f32.mrf.mxu0
    %v3316 = vadd.f32 %v3251, %v3315
    %3317 = vmatmul.f32.gmra.mxu0 %v2331
    %v3318 = vpop.f32.mrf.mxu0
    %v3319 = vadd.f32 %v3254, %v3318
    %3320 = vmatmul.f32.gmra.mxu0 %v2332
    %v3321 = vpop.f32.mrf.mxu0
    %v3322 = vadd.f32 %v3257, %v3321
    %3323 = vmatmul.f32.gmra.mxu0 %v2333
    %v3324 = vpop.f32.mrf.mxu0
    %v3325 = vadd.f32 %v3260, %v3324
    %3326 = vmatmul.f32.gmra.mxu0 %v2334
    %v3327 = vpop.f32.mrf.mxu0
    %v3328 = vadd.f32 %v3263, %v3327
    %3329 = vmatmul.f32.gmra.mxu0 %v2335
    %v3330 = vpop.f32.mrf.mxu0
    %v3331 = vadd.f32 %v3266, %v3330
    %3332 = vmatmul.f32.gmra.mxu0 %v2336
    %v3333 = vpop.f32.mrf.mxu0
    %v3334 = vadd.f32 %v3269, %v3333
    %3335 = vmatmul.f32.gmra.mxu0 %v2337
    %v3336 = vpop.f32.mrf.mxu0
    %v3337 = vadd.f32 %v3272, %v3336
    %3338 = vmatmul.f32.gmra.mxu0 %v2338
    %v3339 = vpop.f32.mrf.mxu0
    %v3340 = vadd.f32 %v3275, %v3339
    %3341 = vmatmul.f32.gmra.mxu0 %v2339
    %v3342 = vpop.f32.mrf.mxu0
    %v3343 = vadd.f32 %v3278, %v3342
    %3344 = vmatmul.f32.gmra.mxu0 %v2340
    %v3345 = vpop.f32.mrf.mxu0
    %v3346 = vadd.f32 %v3281, %v3345
    %3347 = vdwg.mxu0
    %3348 = vmatpush.msra.mxu0 %v2907
    %3349 = vmatpush.msra.mxu0 %v2904
    %3350 = vmatpush.msra.mxu0 %v2901
    %3351 = vmatpush.msra.mxu0 %v2898
    %3352 = vmatpush.msra.mxu0 %v2895
    %3353 = vmatpush.msra.mxu0 %v2892
    %3354 = vmatpush.msra.mxu0 %v2889
    %3355 = vmatpush.msra.mxu0 %v2886
    %3356 = vmatpush.msra.mxu0 %v2883
    %3357 = vmatpush.msra.mxu0 %v2880
    %3358 = vmatpush.msra.mxu0 %v2877
    %3359 = vmatpush.msra.mxu0 %v2874
    %3360 = vmatpush.msra.mxu0 %v2871
    %3361 = vmatpush.msra.mxu0 %v2868
    %3362 = vmatpush.msra.mxu0 %v2865
    %3363 = vmatpush.msra.mxu0 %v2862
    %3364 = vmatmul.f32.gmra.mxu0 %v2293
    %v3365 = vpop.f32.mrf.mxu0
    %v3366 = vadd.f32 0.0, %v3365
    %3367 = vmatmul.f32.gmra.mxu0 %v2294
    %v3368 = vpop.f32.mrf.mxu0
    %v3369 = vadd.f32 0.0, %v3368
    %3370 = vmatmul.f32.gmra.mxu0 %v2295
    %v3371 = vpop.f32.mrf.mxu0
    %v3372 = vadd.f32 0.0, %v3371
    %3373 = vmatmul.f32.gmra.mxu0 %v2296
    %v3374 = vpop.f32.mrf.mxu0
    %v3375 = vadd.f32 0.0, %v3374
    %3376 = vmatmul.f32.gmra.mxu0 %v2297
    %v3377 = vpop.f32.mrf.mxu0
    %v3378 = vadd.f32 0.0, %v3377
    %3379 = vmatmul.f32.gmra.mxu0 %v2298
    %v3380 = vpop.f32.mrf.mxu0
    %v3381 = vadd.f32 0.0, %v3380
    %3382 = vmatmul.f32.gmra.mxu0 %v2299
    %v3383 = vpop.f32.mrf.mxu0
    %v3384 = vadd.f32 0.0, %v3383
    %3385 = vmatmul.f32.gmra.mxu0 %v2300
    %v3386 = vpop.f32.mrf.mxu0
    %v3387 = vadd.f32 0.0, %v3386
    %3388 = vmatmul.f32.gmra.mxu0 %v2301
    %v3389 = vpop.f32.mrf.mxu0
    %v3390 = vadd.f32 0.0, %v3389
    %3391 = vmatmul.f32.gmra.mxu0 %v2302
    %v3392 = vpop.f32.mrf.mxu0
    %v3393 = vadd.f32 0.0, %v3392
    %3394 = vmatmul.f32.gmra.mxu0 %v2303
    %v3395 = vpop.f32.mrf.mxu0
    %v3396 = vadd.f32 0.0, %v3395
    %3397 = vmatmul.f32.gmra.mxu0 %v2304
    %v3398 = vpop.f32.mrf.mxu0
    %v3399 = vadd.f32 0.0, %v3398
    %3400 = vmatmul.f32.gmra.mxu0 %v2305
    %v3401 = vpop.f32.mrf.mxu0
    %v3402 = vadd.f32 0.0, %v3401
    %3403 = vmatmul.f32.gmra.mxu0 %v2306
    %v3404 = vpop.f32.mrf.mxu0
    %v3405 = vadd.f32 0.0, %v3404
    %3406 = vmatmul.f32.gmra.mxu0 %v2307
    %v3407 = vpop.f32.mrf.mxu0
    %v3408 = vadd.f32 0.0, %v3407
    %3409 = vmatmul.f32.gmra.mxu0 %v2308
    %v3410 = vpop.f32.mrf.mxu0
    %v3411 = vadd.f32 0.0, %v3410
    %3412 = vdwg.mxu0
    %3413 = vmatpush.msra.mxu0 %v2955
    %3414 = vmatpush.msra.mxu0 %v2952
    %3415 = vmatpush.msra.mxu0 %v2949
    %3416 = vmatpush.msra.mxu0 %v2946
    %3417 = vmatpush.msra.mxu0 %v2943
    %3418 = vmatpush.msra.mxu0 %v2940
    %3419 = vmatpush.msra.mxu0 %v2937
    %3420 = vmatpush.msra.mxu0 %v2934
    %3421 = vmatpush.msra.mxu0 %v2931
    %3422 = vmatpush.msra.mxu0 %v2928
    %3423 = vmatpush.msra.mxu0 %v2925
    %3424 = vmatpush.msra.mxu0 %v2922
    %3425 = vmatpush.msra.mxu0 %v2919
    %3426 = vmatpush.msra.mxu0 %v2916
    %3427 = vmatpush.msra.mxu0 %v2913
    %3428 = vmatpush.msra.mxu0 %v2910
    %3429 = vmatmul.f32.gmra.mxu0 %v2325
    %v3430 = vpop.f32.mrf.mxu0
    %v3431 = vadd.f32 %v3366, %v3430
    %3432 = vmatmul.f32.gmra.mxu0 %v2326
    %v3433 = vpop.f32.mrf.mxu0
    %v3434 = vadd.f32 %v3369, %v3433
    %3435 = vmatmul.f32.gmra.mxu0 %v2327
    %v3436 = vpop.f32.mrf.mxu0
    %v3437 = vadd.f32 %v3372, %v3436
    %3438 = vmatmul.f32.gmra.mxu0 %v2328
    %v3439 = vpop.f32.mrf.mxu0
    %v3440 = vadd.f32 %v3375, %v3439
    %3441 = vmatmul.f32.gmra.mxu0 %v2329
    %v3442 = vpop.f32.mrf.mxu0
    %v3443 = vadd.f32 %v3378, %v3442
    %3444 = vmatmul.f32.gmra.mxu0 %v2330
    %v3445 = vpop.f32.mrf.mxu0
    %v3446 = vadd.f32 %v3381, %v3445
    %3447 = vmatmul.f32.gmra.mxu0 %v2331
    %v3448 = vpop.f32.mrf.mxu0
    %v3449 = vadd.f32 %v3384, %v3448
    %3450 = vmatmul.f32.gmra.mxu0 %v2332
    %v3451 = vpop.f32.mrf.mxu0
    %v3452 = vadd.f32 %v3387, %v3451
    %3453 = vmatmul.f32.gmra.mxu0 %v2333
    %v3454 = vpop.f32.mrf.mxu0
    %v3455 = vadd.f32 %v3390, %v3454
    %3456 = vmatmul.f32.gmra.mxu0 %v2334
    %v3457 = vpop.f32.mrf.mxu0
    %v3458 = vadd.f32 %v3393, %v3457
    %3459 = vmatmul.f32.gmra.mxu0 %v2335
    %v3460 = vpop.f32.mrf.mxu0
    %v3461 = vadd.f32 %v3396, %v3460
    %3462 = vmatmul.f32.gmra.mxu0 %v2336
    %v3463 = vpop.f32.mrf.mxu0
    %v3464 = vadd.f32 %v3399, %v3463
    %3465 = vmatmul.f32.gmra.mxu0 %v2337
    %v3466 = vpop.f32.mrf.mxu0
    %v3467 = vadd.f32 %v3402, %v3466
    %3468 = vmatmul.f32.gmra.mxu0 %v2338
    %v3469 = vpop.f32.mrf.mxu0
    %v3470 = vadd.f32 %v3405, %v3469
    %3471 = vmatmul.f32.gmra.mxu0 %v2339
    %v3472 = vpop.f32.mrf.mxu0
    %v3473 = vadd.f32 %v3408, %v3472
    %3474 = vmatmul.f32.gmra.mxu0 %v2340
    %v3475 = vpop.f32.mrf.mxu0
    %v3476 = vadd.f32 %v3411, %v3475
    %3477 = vdwg.mxu0
    %3478 = vmatpush.msra.mxu0 %v2908
    %3479 = vmatpush.msra.mxu0 %v2905
    %3480 = vmatpush.msra.mxu0 %v2902
    %3481 = vmatpush.msra.mxu0 %v2899
    %3482 = vmatpush.msra.mxu0 %v2896
    %3483 = vmatpush.msra.mxu0 %v2893
    %3484 = vmatpush.msra.mxu0 %v2890
    %3485 = vmatpush.msra.mxu0 %v2887
    %3486 = vmatpush.msra.mxu0 %v2884
    %3487 = vmatpush.msra.mxu0 %v2881
    %3488 = vmatpush.msra.mxu0 %v2878
    %3489 = vmatpush.msra.mxu0 %v2875
    %3490 = vmatpush.msra.mxu0 %v2872
    %3491 = vmatpush.msra.mxu0 %v2869
    %3492 = vmatpush.msra.mxu0 %v2866
    %3493 = vmatpush.msra.mxu0 %v2863
    %3494 = vmatmul.f32.gmra.mxu0 %v2293
    %v3495 = vpop.f32.mrf.mxu0
    %v3496 = vadd.f32 0.0, %v3495
    %3497 = vmatmul.f32.gmra.mxu0 %v2294
    %v3498 = vpop.f32.mrf.mxu0
    %v3499 = vadd.f32 0.0, %v3498
    %3500 = vmatmul.f32.gmra.mxu0 %v2295
    %v3501 = vpop.f32.mrf.mxu0
    %v3502 = vadd.f32 0.0, %v3501
    %3503 = vmatmul.f32.gmra.mxu0 %v2296
    %v3504 = vpop.f32.mrf.mxu0
    %v3505 = vadd.f32 0.0, %v3504
    %3506 = vmatmul.f32.gmra.mxu0 %v2297
    %v3507 = vpop.f32.mrf.mxu0
    %v3508 = vadd.f32 0.0, %v3507
    %3509 = vmatmul.f32.gmra.mxu0 %v2298
    %v3510 = vpop.f32.mrf.mxu0
    %v3511 = vadd.f32 0.0, %v3510
    %3512 = vmatmul.f32.gmra.mxu0 %v2299
    %v3513 = vpop.f32.mrf.mxu0
    %v3514 = vadd.f32 0.0, %v3513
    %3515 = vmatmul.f32.gmra.mxu0 %v2300
    %v3516 = vpop.f32.mrf.mxu0
    %v3517 = vadd.f32 0.0, %v3516
    %3518 = vmatmul.f32.gmra.mxu0 %v2301
    %v3519 = vpop.f32.mrf.mxu0
    %v3520 = vadd.f32 0.0, %v3519
    %3521 = vmatmul.f32.gmra.mxu0 %v2302
    %v3522 = vpop.f32.mrf.mxu0
    %v3523 = vadd.f32 0.0, %v3522
    %3524 = vmatmul.f32.gmra.mxu0 %v2303
    %v3525 = vpop.f32.mrf.mxu0
    %v3526 = vadd.f32 0.0, %v3525
    %3527 = vmatmul.f32.gmra.mxu0 %v2304
    %v3528 = vpop.f32.mrf.mxu0
    %v3529 = vadd.f32 0.0, %v3528
    %3530 = vmatmul.f32.gmra.mxu0 %v2305
    %v3531 = vpop.f32.mrf.mxu0
    %v3532 = vadd.f32 0.0, %v3531
    %3533 = vmatmul.f32.gmra.mxu0 %v2306
    %v3534 = vpop.f32.mrf.mxu0
    %v3535 = vadd.f32 0.0, %v3534
    %3536 = vmatmul.f32.gmra.mxu0 %v2307
    %v3537 = vpop.f32.mrf.mxu0
    %v3538 = vadd.f32 0.0, %v3537
    %3539 = vmatmul.f32.gmra.mxu0 %v2308
    %v3540 = vpop.f32.mrf.mxu0
    %v3541 = vadd.f32 0.0, %v3540
    %3542 = vdwg.mxu0
    %3543 = vmatpush.msra.mxu0 %v2956
    %3544 = vmatpush.msra.mxu0 %v2953
    %3545 = vmatpush.msra.mxu0 %v2950
    %3546 = vmatpush.msra.mxu0 %v2947
    %3547 = vmatpush.msra.mxu0 %v2944
    %3548 = vmatpush.msra.mxu0 %v2941
    %3549 = vmatpush.msra.mxu0 %v2938
    %3550 = vmatpush.msra.mxu0 %v2935
    %3551 = vmatpush.msra.mxu0 %v2932
    %3552 = vmatpush.msra.mxu0 %v2929
    %3553 = vmatpush.msra.mxu0 %v2926
    %3554 = vmatpush.msra.mxu0 %v2923
    %3555 = vmatpush.msra.mxu0 %v2920
    %3556 = vmatpush.msra.mxu0 %v2917
    %3557 = vmatpush.msra.mxu0 %v2914
    %3558 = vmatpush.msra.mxu0 %v2911
    %3559 = vmatmul.f32.gmra.mxu0 %v2325
    %v3560 = vpop.f32.mrf.mxu0
    %v3561 = vadd.f32 %v3496, %v3560
    %3562 = vmatmul.f32.gmra.mxu0 %v2326
    %v3563 = vpop.f32.mrf.mxu0
    %v3564 = vadd.f32 %v3499, %v3563
    %3565 = vmatmul.f32.gmra.mxu0 %v2327
    %v3566 = vpop.f32.mrf.mxu0
    %v3567 = vadd.f32 %v3502, %v3566
    %3568 = vmatmul.f32.gmra.mxu0 %v2328
    %v3569 = vpop.f32.mrf.mxu0
    %v3570 = vadd.f32 %v3505, %v3569
    %3571 = vmatmul.f32.gmra.mxu0 %v2329
    %v3572 = vpop.f32.mrf.mxu0
    %v3573 = vadd.f32 %v3508, %v3572
    %3574 = vmatmul.f32.gmra.mxu0 %v2330
    %v3575 = vpop.f32.mrf.mxu0
    %v3576 = vadd.f32 %v3511, %v3575
    %3577 = vmatmul.f32.gmra.mxu0 %v2331
    %v3578 = vpop.f32.mrf.mxu0
    %v3579 = vadd.f32 %v3514, %v3578
    %3580 = vmatmul.f32.gmra.mxu0 %v2332
    %v3581 = vpop.f32.mrf.mxu0
    %v3582 = vadd.f32 %v3517, %v3581
    %3583 = vmatmul.f32.gmra.mxu0 %v2333
    %v3584 = vpop.f32.mrf.mxu0
    %v3585 = vadd.f32 %v3520, %v3584
    %3586 = vmatmul.f32.gmra.mxu0 %v2334
    %v3587 = vpop.f32.mrf.mxu0
    %v3588 = vadd.f32 %v3523, %v3587
    %3589 = vmatmul.f32.gmra.mxu0 %v2335
    %v3590 = vpop.f32.mrf.mxu0
    %v3591 = vadd.f32 %v3526, %v3590
    %3592 = vmatmul.f32.gmra.mxu0 %v2336
    %v3593 = vpop.f32.mrf.mxu0
    %v3594 = vadd.f32 %v3529, %v3593
    %3595 = vmatmul.f32.gmra.mxu0 %v2337
    %v3596 = vpop.f32.mrf.mxu0
    %v3597 = vadd.f32 %v3532, %v3596
    %3598 = vmatmul.f32.gmra.mxu0 %v2338
    %v3599 = vpop.f32.mrf.mxu0
    %v3600 = vadd.f32 %v3535, %v3599
    %3601 = vmatmul.f32.gmra.mxu0 %v2339
    %v3602 = vpop.f32.mrf.mxu0
    %v3603 = vadd.f32 %v3538, %v3602
    %3604 = vmatmul.f32.gmra.mxu0 %v2340
    %v3605 = vpop.f32.mrf.mxu0
    %v3606 = vadd.f32 %v3541, %v3605
    %3607 = vdwg.mxu0
    %3608 = vmatpush.msra.mxu0 %v2909
    %3609 = vmatpush.msra.mxu0 %v2906
    %3610 = vmatpush.msra.mxu0 %v2903
    %3611 = vmatpush.msra.mxu0 %v2900
    %3612 = vmatpush.msra.mxu0 %v2897
    %3613 = vmatpush.msra.mxu0 %v2894
    %3614 = vmatpush.msra.mxu0 %v2891
    %3615 = vmatpush.msra.mxu0 %v2888
    %3616 = vmatpush.msra.mxu0 %v2885
    %3617 = vmatpush.msra.mxu0 %v2882
    %3618 = vmatpush.msra.mxu0 %v2879
    %3619 = vmatpush.msra.mxu0 %v2876
    %3620 = vmatpush.msra.mxu0 %v2873
    %3621 = vmatpush.msra.mxu0 %v2870
    %3622 = vmatpush.msra.mxu0 %v2867
    %3623 = vmatpush.msra.mxu0 %v2864
    %3624 = vmatmul.f32.gmra.mxu0 %v2293
    %v3625 = vpop.f32.mrf.mxu0
    %v3626 = vadd.f32 0.0, %v3625
    %3627 = vmatmul.f32.gmra.mxu0 %v2294
    %v3628 = vpop.f32.mrf.mxu0
    %v3629 = vadd.f32 0.0, %v3628
    %3630 = vmatmul.f32.gmra.mxu0 %v2295
    %v3631 = vpop.f32.mrf.mxu0
    %v3632 = vadd.f32 0.0, %v3631
    %3633 = vmatmul.f32.gmra.mxu0 %v2296
    %v3634 = vpop.f32.mrf.mxu0
    %v3635 = vadd.f32 0.0, %v3634
    %3636 = vmatmul.f32.gmra.mxu0 %v2297
    %v3637 = vpop.f32.mrf.mxu0
    %v3638 = vadd.f32 0.0, %v3637
    %3639 = vmatmul.f32.gmra.mxu0 %v2298
    %v3640 = vpop.f32.mrf.mxu0
    %v3641 = vadd.f32 0.0, %v3640
    %3642 = vmatmul.f32.gmra.mxu0 %v2299
    %v3643 = vpop.f32.mrf.mxu0
    %v3644 = vadd.f32 0.0, %v3643
    %3645 = vmatmul.f32.gmra.mxu0 %v2300
    %v3646 = vpop.f32.mrf.mxu0
    %v3647 = vadd.f32 0.0, %v3646
    %3648 = vmatmul.f32.gmra.mxu0 %v2301
    %v3649 = vpop.f32.mrf.mxu0
    %v3650 = vadd.f32 0.0, %v3649
    %3651 = vmatmul.f32.gmra.mxu0 %v2302
    %v3652 = vpop.f32.mrf.mxu0
    %v3653 = vadd.f32 0.0, %v3652
    %3654 = vmatmul.f32.gmra.mxu0 %v2303
    %v3655 = vpop.f32.mrf.mxu0
    %v3656 = vadd.f32 0.0, %v3655
    %3657 = vmatmul.f32.gmra.mxu0 %v2304
    %v3658 = vpop.f32.mrf.mxu0
    %v3659 = vadd.f32 0.0, %v3658
    %3660 = vmatmul.f32.gmra.mxu0 %v2305
    %v3661 = vpop.f32.mrf.mxu0
    %v3662 = vadd.f32 0.0, %v3661
    %3663 = vmatmul.f32.gmra.mxu0 %v2306
    %v3664 = vpop.f32.mrf.mxu0
    %v3665 = vadd.f32 0.0, %v3664
    %3666 = vmatmul.f32.gmra.mxu0 %v2307
    %v3667 = vpop.f32.mrf.mxu0
    %v3668 = vadd.f32 0.0, %v3667
    %3669 = vmatmul.f32.gmra.mxu0 %v2308
    %v3670 = vpop.f32.mrf.mxu0
    %v3671 = vadd.f32 0.0, %v3670
    %3672 = vdwg.mxu0
    %3673 = vmatpush.msra.mxu0 %v2957
    %3674 = vmatpush.msra.mxu0 %v2954
    %3675 = vmatpush.msra.mxu0 %v2951
    %3676 = vmatpush.msra.mxu0 %v2948
    %3677 = vmatpush.msra.mxu0 %v2945
    %3678 = vmatpush.msra.mxu0 %v2942
    %3679 = vmatpush.msra.mxu0 %v2939
    %3680 = vmatpush.msra.mxu0 %v2936
    %3681 = vmatpush.msra.mxu0 %v2933
    %3682 = vmatpush.msra.mxu0 %v2930
    %3683 = vmatpush.msra.mxu0 %v2927
    %3684 = vmatpush.msra.mxu0 %v2924
    %3685 = vmatpush.msra.mxu0 %v2921
    %3686 = vmatpush.msra.mxu0 %v2918
    %3687 = vmatpush.msra.mxu0 %v2915
    %3688 = vmatpush.msra.mxu0 %v2912
    %3689 = vmatmul.f32.gmra.mxu0 %v2325
    %v3690 = vpop.f32.mrf.mxu0
    %v3691 = vadd.f32 %v3626, %v3690
    %3692 = vmatmul.f32.gmra.mxu0 %v2326
    %v3693 = vpop.f32.mrf.mxu0
    %v3694 = vadd.f32 %v3629, %v3693
    %3695 = vmatmul.f32.gmra.mxu0 %v2327
    %v3696 = vpop.f32.mrf.mxu0
    %v3697 = vadd.f32 %v3632, %v3696
    %3698 = vmatmul.f32.gmra.mxu0 %v2328
    %v3699 = vpop.f32.mrf.mxu0
    %v3700 = vadd.f32 %v3635, %v3699
    %3701 = vmatmul.f32.gmra.mxu0 %v2329
    %v3702 = vpop.f32.mrf.mxu0
    %v3703 = vadd.f32 %v3638, %v3702
    %3704 = vmatmul.f32.gmra.mxu0 %v2330
    %v3705 = vpop.f32.mrf.mxu0
    %v3706 = vadd.f32 %v3641, %v3705
    %3707 = vmatmul.f32.gmra.mxu0 %v2331
    %v3708 = vpop.f32.mrf.mxu0
    %v3709 = vadd.f32 %v3644, %v3708
    %3710 = vmatmul.f32.gmra.mxu0 %v2332
    %v3711 = vpop.f32.mrf.mxu0
    %v3712 = vadd.f32 %v3647, %v3711
    %3713 = vmatmul.f32.gmra.mxu0 %v2333
    %v3714 = vpop.f32.mrf.mxu0
    %v3715 = vadd.f32 %v3650, %v3714
    %3716 = vmatmul.f32.gmra.mxu0 %v2334
    %v3717 = vpop.f32.mrf.mxu0
    %v3718 = vadd.f32 %v3653, %v3717
    %3719 = vmatmul.f32.gmra.mxu0 %v2335
    %v3720 = vpop.f32.mrf.mxu0
    %v3721 = vadd.f32 %v3656, %v3720
    %3722 = vmatmul.f32.gmra.mxu0 %v2336
    %v3723 = vpop.f32.mrf.mxu0
    %v3724 = vadd.f32 %v3659, %v3723
    %3725 = vmatmul.f32.gmra.mxu0 %v2337
    %v3726 = vpop.f32.mrf.mxu0
    %v3727 = vadd.f32 %v3662, %v3726
    %3728 = vmatmul.f32.gmra.mxu0 %v2338
    %v3729 = vpop.f32.mrf.mxu0
    %v3730 = vadd.f32 %v3665, %v3729
    %3731 = vmatmul.f32.gmra.mxu0 %v2339
    %v3732 = vpop.f32.mrf.mxu0
    %v3733 = vadd.f32 %v3668, %v3732
    %3734 = vmatmul.f32.gmra.mxu0 %v2340
    %v3735 = vpop.f32.mrf.mxu0
    %v3736 = vadd.f32 %v3671, %v3735
    %3737 = vdwg.mxu0
    %v3738 = vmul.f32 %v3041, %v3431
    %v3739 = vmul.f32 %v3171, %v3561
    %v3740 = vmul.f32 %v3301, %v3691
    %v3741 = vmul.f32 %v3044, %v3434
    %v3742 = vmul.f32 %v3174, %v3564
    %v3743 = vmul.f32 %v3304, %v3694
    %v3744 = vmul.f32 %v3047, %v3437
    %v3745 = vmul.f32 %v3177, %v3567
    %v3746 = vmul.f32 %v3307, %v3697
    %v3747 = vmul.f32 %v3050, %v3440
    %v3748 = vmul.f32 %v3180, %v3570
    %v3749 = vmul.f32 %v3310, %v3700
    %v3750 = vmul.f32 %v3053, %v3443
    %v3751 = vmul.f32 %v3183, %v3573
    %v3752 = vmul.f32 %v3313, %v3703
    %v3753 = vmul.f32 %v3056, %v3446
    %v3754 = vmul.f32 %v3186, %v3576
    %v3755 = vmul.f32 %v3316, %v3706
    %v3756 = vmul.f32 %v3059, %v3449
    %v3757 = vmul.f32 %v3189, %v3579
    %v3758 = vmul.f32 %v3319, %v3709
    %v3759 = vmul.f32 %v3062, %v3452
    %v3760 = vmul.f32 %v3192, %v3582
    %v3761 = vmul.f32 %v3322, %v3712
    %v3762 = vmul.f32 %v3065, %v3455
    %v3763 = vmul.f32 %v3195, %v3585
    %v3764 = vmul.f32 %v3325, %v3715
    %v3765 = vmul.f32 %v3068, %v3458
    %v3766 = vmul.f32 %v3198, %v3588
    %v3767 = vmul.f32 %v3328, %v3718
    %v3768 = vmul.f32 %v3071, %v3461
    %v3769 = vmul.f32 %v3201, %v3591
    %v3770 = vmul.f32 %v3331, %v3721
    %v3771 = vmul.f32 %v3074, %v3464
    %v3772 = vmul.f32 %v3204, %v3594
    %v3773 = vmul.f32 %v3334, %v3724
    %v3774 = vmul.f32 %v3077, %v3467
    %v3775 = vmul.f32 %v3207, %v3597
    %v3776 = vmul.f32 %v3337, %v3727
    %v3777 = vmul.f32 %v3080, %v3470
    %v3778 = vmul.f32 %v3210, %v3600
    %v3779 = vmul.f32 %v3340, %v3730
    %v3780 = vmul.f32 %v3083, %v3473
    %v3781 = vmul.f32 %v3213, %v3603
    %v3782 = vmul.f32 %v3343, %v3733
    %v3783 = vmul.f32 %v3086, %v3476
    %v3784 = vmul.f32 %v3216, %v3606
    %v3785 = vmul.f32 %v3346, %v3736
    %v3786 = vadd.f32 %v3738, %v3741
    %v3787 = vadd.f32 %v3786, %v3744
    %v3788 = vadd.f32 %v3787, %v3747
    %v3789 = vadd.f32 %v3788, %v3750
    %v3790 = vadd.f32 %v3789, %v3753
    %v3791 = vadd.f32 %v3790, %v3756
    %v3792 = vadd.f32 %v3791, %v3759
    %v3793 = vadd.f32 %v3792, %v3762
    %v3794 = vadd.f32 %v3793, %v3765
    %v3795 = vadd.f32 %v3794, %v3768
    %v3796 = vadd.f32 %v3795, %v3771
    %v3797 = vadd.f32 %v3796, %v3774
    %v3798 = vadd.f32 %v3797, %v3777
    %v3799 = vadd.f32 %v3798, %v3780
    %v3800 = vadd.f32 %v3799, %v3783
    %v3801 = vrot.slane %v3800, 4
    %v3802 = vadd.f32 %v3800, %v3801
    %v3803 = vrot.slane %v3802, 2
    %v3804 = vadd.f32 %v3802, %v3803
    %v3805 = vrot.slane %v3804, 1
    %v3806 = vadd.f32 %v3804, %v3805
    %v3807 = vadd.f32 %v3739, %v3742
    %v3808 = vadd.f32 %v3807, %v3745
    %v3809 = vadd.f32 %v3808, %v3748
    %v3810 = vadd.f32 %v3809, %v3751
    %v3811 = vadd.f32 %v3810, %v3754
    %v3812 = vadd.f32 %v3811, %v3757
    %v3813 = vadd.f32 %v3812, %v3760
    %v3814 = vadd.f32 %v3813, %v3763
    %v3815 = vadd.f32 %v3814, %v3766
    %v3816 = vadd.f32 %v3815, %v3769
    %v3817 = vadd.f32 %v3816, %v3772
    %v3818 = vadd.f32 %v3817, %v3775
    %v3819 = vadd.f32 %v3818, %v3778
    %v3820 = vadd.f32 %v3819, %v3781
    %v3821 = vadd.f32 %v3820, %v3784
    %v3822 = vrot.slane %v3821, 4
    %v3823 = vadd.f32 %v3821, %v3822
    %v3824 = vrot.slane %v3823, 2
    %v3825 = vadd.f32 %v3823, %v3824
    %v3826 = vrot.slane %v3825, 1
    %v3827 = vadd.f32 %v3825, %v3826
    %v3828 = vadd.f32 %v3740, %v3743
    %v3829 = vadd.f32 %v3828, %v3746
    %v3830 = vadd.f32 %v3829, %v3749
    %v3831 = vadd.f32 %v3830, %v3752
    %v3832 = vadd.f32 %v3831, %v3755
    %v3833 = vadd.f32 %v3832, %v3758
    %v3834 = vadd.f32 %v3833, %v3761
    %v3835 = vadd.f32 %v3834, %v3764
    %v3836 = vadd.f32 %v3835, %v3767
    %v3837 = vadd.f32 %v3836, %v3770
    %v3838 = vadd.f32 %v3837, %v3773
    %v3839 = vadd.f32 %v3838, %v3776
    %v3840 = vadd.f32 %v3839, %v3779
    %v3841 = vadd.f32 %v3840, %v3782
    %v3842 = vadd.f32 %v3841, %v3785
    %v3843 = vrot.slane %v3842, 4
    %v3844 = vadd.f32 %v3842, %v3843
    %v3845 = vrot.slane %v3844, 2
    %v3846 = vadd.f32 %v3844, %v3845
    %v3847 = vrot.slane %v3846, 1
    %v3848 = vadd.f32 %v3846, %v3847
    %v3852 = vrot.slane %v3827, 7
    %v3853 = vrot.slane %v3848, 6
    %vm3854 = vcmask 1040384
    %v3855 = vsel %vm3854, %v3806, %v3852
    %vm3856 = vcmask 1041408
    %v3857 = vsel %vm3856, %v3855, %v3853
    %v3859 = vlaneseq
    %vm3860 = vcmp.ge.s32.totalorder %v3859, 0
    %vm3861 = vcmp.lt.s32.totalorder %v3859, 384
    %vm3862 = vmand %vm3860, %vm3861
    %3863 = vst.msk [vmem:[%s10] sm:$0x7] %vm3862, %v3857
    // Predicated region
    $region46: #{my_gcn_forward.1} parent=1 // pred_check
      _
    $region47: #{my_gcn_forward.1} parent=1 // pred_check_branch
      %3865 = sbr.rel (0) target = $region49
    $region48: #{my_gcn_forward.1} parent=1 // pred_region
      _
    $region49: #{my_gcn_forward.1} parent=1 // pred_fallthru
      _
    // Predicated region
    $region50: #{my_gcn_forward.1} parent=1 // pred_check
      _
    $region51: #{my_gcn_forward.1} parent=1 // pred_check_branch
      %3867 = sbr.rel (0) target = $region53
    $region52: #{my_gcn_forward.1} parent=1 // pred_region
      _
    $region53: #{my_gcn_forward.1} parent=1 // pred_fallthru
      _
    %3868 = vsyncpa [#allocation3], 1

</llo_original>
